<compile_context>
chip_gen: v6e
topology: v6e:2x2x1
jax: 0.10.0
libtpu: 0.0.40
codegen_flags: <defaults>
</compile_context>

<pallas_src>
import functools

import jax
import jax.numpy as jnp
from jax.experimental import pallas as pl
from jax.experimental.pallas import tpu as pltpu

LANE = 128     # TPU lane width: outputs are lane-dense (N_pad, 128) slabs
H_PAD = 128    # hidden dim padded to full lane width
ROW_PAD = 16   # bf16 matmul operands pack 16 rows per vreg sublane group


def _round_up(x, m):
    return ((x + m - 1) // m) * m


def _mm(a_bf16, b_bf16):
    """MXU matmul on already-bf16 operands, f32 accumulation."""
    return jnp.dot(a_bf16, b_bf16, preferred_element_type=jnp.float32)


# --------------------------- fused Pallas kernel -----------------------------

def _fused_kernel(*refs, node_types, edge_types, num_layers, target, out_dims, hidden):
    """Entire HeteroSAGE forward in one kernel invocation.

    Ref order: [x per nt] [adj per et] [emb_w, emb_b per nt]
               [w_stacked, b per layer per et] [gamma, beta per nt]
               [w1, b1, w2_pad, b2_pad per nt]  |  [out per nt]  |  [h scratch per nt]
    """
    n_nt = len(node_types)
    h_scr = dict(zip(node_types, refs[-n_nt:]))
    out_refs = dict(zip(node_types, refs[-2 * n_nt:-n_nt]))
    it = iter(refs[:-2 * n_nt])

    x = {nt: next(it) for nt in node_types}
    adj = {et: next(it) for et in edge_types}
    emb = {nt: (next(it), next(it)) for nt in node_types}
    convs = [{et: (next(it), next(it)) for et in edge_types} for _ in range(num_layers)]
    ln = {nt: (next(it), next(it)) for nt in node_types}
    head = {nt: (next(it), next(it), next(it), next(it)) for nt in node_types}

    bf16 = jnp.bfloat16
    inv_hidden = jnp.float32(1.0 / hidden)
    # Valid-hidden-lane mask, hoisted once (padded lanes of h stay exactly 0).
    hid_mask = (jax.lax.broadcasted_iota(jnp.int32, (1, H_PAD), 1) < hidden
                ).astype(jnp.float32)

    # Hoist loads of values reused across layers.
    adj_v = {et: adj[et][...] for et in edge_types}
    ln_v = {nt: (ln[nt][0][...], ln[nt][1][...]) for nt in node_types}

    # Per-node-type embedding Linear (operands already bf16; padded lanes -> 0).
    for nt in node_types:
        w, b = emb[nt]
        h_scr[nt][...] = _mm(x[nt][...], w[...]) + b[...]

    for layer in convs:
        # One f32 read + one bf16 cast of h per node type per layer.
        h_f32 = {nt: h_scr[nt][...] for nt in node_types}
        h_bf = {nt: h_f32[nt].astype(bf16) for nt in node_types}

        # HeteroGraphConv aggregate='sum': explicit accumulation over edge types per dst.
        conv_out = {}
        for et in edge_types:
            src, _rel, dst = et
            w_stk, b = layer[et]
            agg = _mm(adj_v[et], h_bf[src])                       # mean aggregation A @ H_src
            cat = jnp.concatenate([h_bf[dst], agg.astype(bf16)], axis=-1)
            term = _mm(cat, w_stk[...]) + b[...]                  # fused fc_self || fc_neigh
            conv_out[dst] = term if dst not in conv_out else conv_out[dst] + term

        for nt in node_types:
            z = jnp.maximum(conv_out[nt], 0.0) + h_f32[nt]        # relu + residual
            gamma, beta = ln_v[nt]
            mu = jnp.sum(z, axis=-1, keepdims=True) * inv_hidden  # padded z lanes are 0
            c = z - mu * hid_mask                                 # padded lanes stay 0
            var = jnp.sum(c * c, axis=-1, keepdims=True) * inv_hidden
            h_scr[nt][...] = c * jax.lax.rsqrt(var + 1e-5) * gamma + beta
        # TODO(synk): F.dropout is identity in eval mode; training-mode RNG dropout not done.

    for nt in node_types:
        w1, b1, w2, b2 = head[nt]
        hb = h_scr[nt][...].astype(bf16)
        z = jnp.maximum(_mm(hb, w1[...]) + b1[...], 0.0)          # Linear + ReLU (+Dropout=id)
        y = _mm(z.astype(bf16), w2[...]) + b2[...]                # lane-dense (N_pad, 128)
        if nt == target:
            d = out_dims[nt]
            valid = jax.lax.broadcasted_iota(jnp.int32, y.shape, 1) < d
            ym = jnp.where(valid, y, jnp.float32(-1e30))          # mask BEFORE exp
            m = jnp.max(ym, axis=-1, keepdims=True)
            e = jnp.exp(ym - m)                                   # padded lanes -> 0
            lse = jnp.log(jnp.sum(e, axis=-1, keepdims=True))
            y = jnp.where(valid, y - m - lse, 0.0)                # masked log_softmax
        out_refs[nt][...] = y.astype(out_refs[nt].dtype)


# --------------------------- wrapper ----------------------------------------

def hetero_sage_forward(params, adj, x_dict, *, node_types, edge_types, target,
                        out_dims, num_layers):
    node_types = tuple(node_types)
    edge_types = tuple(edge_types)
    dst_types = {et[2] for et in edge_types}
    # TODO(synk): a node type with no incoming edge type is dropped from the feature
    # dict by DGL's HeteroGraphConv; that path is not modeled here.
    assert all(nt in dst_types for nt in node_types)
    assert all(out_dims[nt] <= LANE for nt in node_types)

    bf16, f32 = jnp.bfloat16, jnp.float32
    hidden = params['emb'][node_types[0]][0].shape[1]
    assert hidden <= H_PAD

    n_real = {nt: x_dict[nt].shape[0] for nt in node_types}
    n_pad = {nt: _round_up(n_real[nt], ROW_PAD) for nt in node_types}
    d_in_pad = {nt: _round_up(x_dict[nt].shape[1], LANE) for nt in node_types}

    def pad2(a, rows, cols):
        return jnp.pad(a, ((0, rows - a.shape[0]), (0, cols - a.shape[1])))

    def pad_vec(v, cols):
        return jnp.pad(v.reshape(1, -1), ((0, 0), (0, cols - v.shape[0])))

    inputs = []
    add = inputs.append

    # Inputs in the exact order the kernel unpacks them.
    for nt in node_types:                                      # lane-dense, row-padded x
        add(pad2(x_dict[nt], n_pad[nt], d_in_pad[nt]).astype(bf16))
    for et in edge_types:                                      # padded dense adjacency
        src, _rel, dst = et
        add(pad2(adj[et], n_pad[dst], n_pad[src]).astype(bf16))
    for nt in node_types:                                      # embedding Linear
        w, b = params['emb'][nt]
        add(pad2(w, d_in_pad[nt], H_PAD).astype(bf16))
        add(pad_vec(b, H_PAD).astype(f32))
    for layer in params['convs']:                              # fused [W_self; W_neigh]
        for et in edge_types:
            w_self, b_self, w_neigh = layer[et]
            w_stk = jnp.concatenate([pad2(w_self, H_PAD, H_PAD),
                                     pad2(w_neigh, H_PAD, H_PAD)], axis=0)
            add(w_stk.astype(bf16))
            add(pad_vec(b_self, H_PAD).astype(f32))
    for nt in node_types:                                      # LayerNorm: ZERO-padded
        g, b = params['ln'][nt]
        add(pad_vec(g, H_PAD).astype(f32))
        add(pad_vec(b, H_PAD).astype(f32))
    for nt in node_types:                                      # heads, lane-dense outputs
        w1, b1, w2, b2 = params['head'][nt]
        add(pad2(w1, H_PAD, H_PAD).astype(bf16))
        add(pad_vec(b1, H_PAD).astype(f32))
        add(pad2(w2, H_PAD, LANE).astype(bf16))
        add(pad_vec(b2, LANE).astype(f32))

    # TODO(synk): non-target slabs could be written as bf16 to halve writeback bytes;
    # kept f32 for exact parity with the in-script reference.
    out_shape = tuple(jax.ShapeDtypeStruct((n_pad[nt], LANE), f32) for nt in node_types)
    scratch_shapes = [pltpu.VMEM((n_pad[nt], H_PAD), f32) for nt in node_types]

    def _nbytes(shape, dtype):
        n = 1
        for s in shape:
            n *= int(s)
        return n * jnp.dtype(dtype).itemsize

    in_bytes = sum(_nbytes(a.shape, a.dtype) for a in inputs)
    out_bytes = sum(_nbytes(s.shape, s.dtype) for s in out_shape)
    scr_bytes = sum(_nbytes((n_pad[nt], H_PAD), f32) for nt in node_types)

    # Advisory cost estimate for XLA's scheduler.
    flops = 0
    for nt in node_types:
        flops += 2 * n_pad[nt] * d_in_pad[nt] * H_PAD                      # embedding
        flops += 2 * n_pad[nt] * H_PAD * H_PAD + 2 * n_pad[nt] * H_PAD * LANE  # head
    for _ in range(num_layers):
        for et in edge_types:
            src, _rel, dst = et
            flops += 2 * n_pad[dst] * n_pad[src] * H_PAD                   # aggregation
            flops += 2 * n_pad[dst] * (2 * H_PAD) * H_PAD                  # fused fc
    transcendentals = n_pad[target] * LANE + num_layers * sum(n_pad[nt] for nt in node_types)

    kernel = functools.partial(
        _fused_kernel, node_types=node_types, edge_types=edge_types,
        num_layers=num_layers, target=target, out_dims=dict(out_dims), hidden=hidden)

    def _call(single_buffered):
        buf = 1 if single_buffered else 2
        resident = buf * in_bytes + 2 * out_bytes + scr_bytes
        vmem_limit = min(128 << 20, max(32 << 20, int(resident * 1.25) + (4 << 20)))

        in_specs = []
        for a in inputs:
            zeros = (0,) * a.ndim
            idx = lambda i, _z=zeros: _z
            if single_buffered:
                # grid=(1,): single-buffer every resident full-array input.
                in_specs.append(pl.BlockSpec(a.shape, idx, pipeline_mode=pl.Buffered(1)))
            else:
                in_specs.append(pl.BlockSpec(a.shape, idx))
        out_specs = tuple(pl.BlockSpec(s.shape, lambda i, _z=(0,) * len(s.shape): _z)
                          for s in out_shape)

        return pl.pallas_call(
            kernel,
            out_shape=out_shape,
            grid=(1,),
            in_specs=in_specs,
            out_specs=out_specs,
            scratch_shapes=scratch_shapes,
            compiler_params=pltpu.CompilerParams(
                dimension_semantics=("arbitrary",),
                vmem_limit_bytes=vmem_limit),
            cost_estimate=pl.CostEstimate(flops=flops, transcendentals=transcendentals,
                                          bytes_accessed=in_bytes + out_bytes),
        )(*inputs)

    try:
        outs = _call(True)
    except Exception:
        # TODO(synk): pl.Buffered(1) pipeline_mode rejected on this jax build;
        # fall back to default double buffering (identical numerics).
        outs = _call(False)

    return {nt: outs[i][:n_real[nt], :out_dims[nt]] for i, nt in enumerate(node_types)}


# --------------------------- params & reference ------------------------------

def init_params(key, node_in, hidden, out_dim, edge_types, num_layers, target):
    def lin(k, din, dout):
        k1, k2 = jax.random.split(k)
        return (jax.random.normal(k1, (din, dout), jnp.float32) * 0.1,
                jax.random.normal(k2, (dout,), jnp.float32) * 0.1)

    keys = iter(jax.random.split(key, 128))
    params = {'emb': {}, 'convs': [], 'ln': {}, 'head': {}}
    for nt, din in node_in.items():
        params['emb'][nt] = lin(next(keys), din, hidden)
    for _ in range(num_layers):
        layer = {}
        for et in edge_types:
            w_self, b_self = lin(next(keys), hidden, hidden)
            w_neigh, _ = lin(next(keys), hidden, hidden)  # DGL fc_neigh has no bias
            layer[et] = (w_self, b_self, w_neigh)
        params['convs'].append(layer)
    for nt in node_in:
        params['ln'][nt] = (jnp.ones((hidden,), jnp.float32),
                            jnp.zeros((hidden,), jnp.float32))
        dout = out_dim if nt == target else hidden
        w1, b1 = lin(next(keys), hidden, hidden)
        w2, b2 = lin(next(keys), hidden, dout)
        params['head'][nt] = (w1, b1, w2, b2)
    return params


def reference_forward(params, adj, x_dict, *, node_types, edge_types, target, num_layers):
    # Plain-JAX reference using the same numeric recipe (bf16 MXU operands, f32
    # accumulation, f32 LayerNorm / softmax) so the comparison is tight.
    def mm(a, b):
        return jnp.dot(a.astype(jnp.bfloat16), b.astype(jnp.bfloat16),
                       preferred_element_type=jnp.float32)

    h = {nt: mm(x_dict[nt], params['emb'][nt][0]) + params['emb'][nt][1]
         for nt in node_types}
    for layer in params['convs']:
        conv_out = {}
        for et in edge_types:
            src, _rel, dst = et
            w_self, b_self, w_neigh = layer[et]
            term = mm(h[dst], w_self) + b_self + mm(mm(adj[et], h[src]), w_neigh)
            conv_out[dst] = term if dst not in conv_out else conv_out[dst] + term
        new_h = {}
        for nt in node_types:
            z = jnp.maximum(conv_out[nt], 0.0) + h[nt]
            mu = z.mean(-1, keepdims=True)
            var = ((z - mu) ** 2).mean(-1, keepdims=True)
            gamma, beta = params['ln'][nt]
            new_h[nt] = (z - mu) * jax.lax.rsqrt(var + 1e-5) * gamma + beta
        h = new_h
    out = {}
    for nt in node_types:
        w1, b1, w2, b2 = params['head'][nt]
        y = mm(jnp.maximum(mm(h[nt], w1) + b1, 0.0), w2) + b2
        if nt == target:
            y = jax.nn.log_softmax(y, axis=1)
        out[nt] = y
    return out


# --------------------------- demo / test -------------------------------------

if __name__ == "__main__":
    key = jax.random.PRNGKey(0)
    node_types = ['author', 'paper']
    edge_types = [('paper', 'written_by', 'author'),
                  ('author', 'writes', 'paper')]
    node_in = {'author': 12, 'paper': 20}
    n_nodes = {'author': 16, 'paper': 24}
    hidden, out_dim, num_layers, target = 32, 8, 2, 'author'
    out_dims = {nt: (out_dim if nt == target else hidden) for nt in node_types}

    kx_a, kx_p, ka1, ka2, kp = jax.random.split(key, 5)
    x_dict = {
        'author': jax.random.normal(kx_a, (n_nodes['author'], node_in['author']), jnp.float32),
        'paper':  jax.random.normal(kx_p, (n_nodes['paper'],  node_in['paper']),  jnp.float32),
    }

    def make_adj(k, ndst, nsrc):
        a = jax.random.bernoulli(k, 0.3, (ndst, nsrc)).astype(jnp.float32)
        deg = jnp.maximum(a.sum(axis=1, keepdims=True), 1.0)
        return a / deg  # row-normalized -> mean aggregation

    adj = {
        edge_types[0]: make_adj(ka1, n_nodes['author'], n_nodes['paper']),
        edge_types[1]: make_adj(ka2, n_nodes['paper'],  n_nodes['author']),
    }

    params = init_params(kp, node_in, hidden, out_dim, edge_types, num_layers, target)

    out = hetero_sage_forward(params, adj, x_dict, node_types=node_types,
                              edge_types=edge_types, target=target,
                              out_dims=out_dims, num_layers=num_layers)
    out = jax.tree_util.tree_map(jax.block_until_ready, out)

    ref = reference_forward(params, adj, x_dict, node_types=node_types,
                            edge_types=edge_types, target=target, num_layers=num_layers)

    for nt in node_types:
        assert out[nt].shape == (n_nodes[nt], out_dims[nt])
        assert out[nt].shape == ref[nt].shape
        assert jnp.allclose(out[nt], ref[nt], atol=1e-3, rtol=1e-3), nt

    print("KERNEL_OK")
</pallas_src>

<mosaic_0001>
module attributes {stable_mosaic.version = 11 : i64} {
  func.func @_fused_kernel(%arg0: i32, %arg1: memref<16x128xbf16, #tpu.memory_space<vmem>>, %arg2: memref<32x128xbf16, #tpu.memory_space<vmem>>, %arg3: memref<16x32xbf16, #tpu.memory_space<vmem>>, %arg4: memref<32x16xbf16, #tpu.memory_space<vmem>>, %arg5: memref<128x128xbf16, #tpu.memory_space<vmem>>, %arg6: memref<1x128xf32, #tpu.memory_space<vmem>>, %arg7: memref<128x128xbf16, #tpu.memory_space<vmem>>, %arg8: memref<1x128xf32, #tpu.memory_space<vmem>>, %arg9: memref<256x128xbf16, #tpu.memory_space<vmem>>, %arg10: memref<1x128xf32, #tpu.memory_space<vmem>>, %arg11: memref<256x128xbf16, #tpu.memory_space<vmem>>, %arg12: memref<1x128xf32, #tpu.memory_space<vmem>>, %arg13: memref<256x128xbf16, #tpu.memory_space<vmem>>, %arg14: memref<1x128xf32, #tpu.memory_space<vmem>>, %arg15: memref<256x128xbf16, #tpu.memory_space<vmem>>, %arg16: memref<1x128xf32, #tpu.memory_space<vmem>>, %arg17: memref<1x128xf32, #tpu.memory_space<vmem>>, %arg18: memref<1x128xf32, #tpu.memory_space<vmem>>, %arg19: memref<1x128xf32, #tpu.memory_space<vmem>>, %arg20: memref<1x128xf32, #tpu.memory_space<vmem>>, %arg21: memref<128x128xbf16, #tpu.memory_space<vmem>>, %arg22: memref<1x128xf32, #tpu.memory_space<vmem>>, %arg23: memref<128x128xbf16, #tpu.memory_space<vmem>>, %arg24: memref<1x128xf32, #tpu.memory_space<vmem>>, %arg25: memref<128x128xbf16, #tpu.memory_space<vmem>>, %arg26: memref<1x128xf32, #tpu.memory_space<vmem>>, %arg27: memref<128x128xbf16, #tpu.memory_space<vmem>>, %arg28: memref<1x128xf32, #tpu.memory_space<vmem>>, %arg29: memref<16x128xf32, #tpu.memory_space<vmem>>, %arg30: memref<32x128xf32, #tpu.memory_space<vmem>>, %arg31: memref<16x128xf32, #tpu.memory_space<vmem>>, %arg32: memref<32x128xf32, #tpu.memory_space<vmem>>) attributes {dimension_semantics = [#tpu.dimension_semantics<arbitrary>], iteration_bounds = array<i64: 1>, scalar_prefetch = 0 : i64, scratch_operands = 2 : i64, tpu.core_type = #tpu.core_type<tc>, window_params = [{pipeline_mode = #tpu.pipeline_mode<synchronous>, transform_indices = @transform_0, window_bounds = array<i64: 16, 128>}, {pipeline_mode = #tpu.pipeline_mode<synchronous>, transform_indices = @transform_1, window_bounds = array<i64: 32, 128>}, {pipeline_mode = #tpu.pipeline_mode<synchronous>, transform_indices = @transform_2, window_bounds = array<i64: 16, 32>}, {pipeline_mode = #tpu.pipeline_mode<synchronous>, transform_indices = @transform_3, window_bounds = array<i64: 32, 16>}, {pipeline_mode = #tpu.pipeline_mode<synchronous>, transform_indices = @transform_4, window_bounds = array<i64: 128, 128>}, {pipeline_mode = #tpu.pipeline_mode<synchronous>, transform_indices = @transform_5, window_bounds = array<i64: 1, 128>}, {pipeline_mode = #tpu.pipeline_mode<synchronous>, transform_indices = @transform_6, window_bounds = array<i64: 128, 128>}, {pipeline_mode = #tpu.pipeline_mode<synchronous>, transform_indices = @transform_7, window_bounds = array<i64: 1, 128>}, {pipeline_mode = #tpu.pipeline_mode<synchronous>, transform_indices = @transform_8, window_bounds = array<i64: 256, 128>}, {pipeline_mode = #tpu.pipeline_mode<synchronous>, transform_indices = @transform_9, window_bounds = array<i64: 1, 128>}, {pipeline_mode = #tpu.pipeline_mode<synchronous>, transform_indices = @transform_10, window_bounds = array<i64: 256, 128>}, {pipeline_mode = #tpu.pipeline_mode<synchronous>, transform_indices = @transform_11, window_bounds = array<i64: 1, 128>}, {pipeline_mode = #tpu.pipeline_mode<synchronous>, transform_indices = @transform_12, window_bounds = array<i64: 256, 128>}, {pipeline_mode = #tpu.pipeline_mode<synchronous>, transform_indices = @transform_13, window_bounds = array<i64: 1, 128>}, {pipeline_mode = #tpu.pipeline_mode<synchronous>, transform_indices = @transform_14, window_bounds = array<i64: 256, 128>}, {pipeline_mode = #tpu.pipeline_mode<synchronous>, transform_indices = @transform_15, window_bounds = array<i64: 1, 128>}, {pipeline_mode = #tpu.pipeline_mode<synchronous>, transform_indices = @transform_16, window_bounds = array<i64: 1, 128>}, {pipeline_mode = #tpu.pipeline_mode<synchronous>, transform_indices = @transform_17, window_bounds = array<i64: 1, 128>}, {pipeline_mode = #tpu.pipeline_mode<synchronous>, transform_indices = @transform_18, window_bounds = array<i64: 1, 128>}, {pipeline_mode = #tpu.pipeline_mode<synchronous>, transform_indices = @transform_19, window_bounds = array<i64: 1, 128>}, {pipeline_mode = #tpu.pipeline_mode<synchronous>, transform_indices = @transform_20, window_bounds = array<i64: 128, 128>}, {pipeline_mode = #tpu.pipeline_mode<synchronous>, transform_indices = @transform_21, window_bounds = array<i64: 1, 128>}, {pipeline_mode = #tpu.pipeline_mode<synchronous>, transform_indices = @transform_22, window_bounds = array<i64: 128, 128>}, {pipeline_mode = #tpu.pipeline_mode<synchronous>, transform_indices = @transform_23, window_bounds = array<i64: 1, 128>}, {pipeline_mode = #tpu.pipeline_mode<synchronous>, transform_indices = @transform_24, window_bounds = array<i64: 128, 128>}, {pipeline_mode = #tpu.pipeline_mode<synchronous>, transform_indices = @transform_25, window_bounds = array<i64: 1, 128>}, {pipeline_mode = #tpu.pipeline_mode<synchronous>, transform_indices = @transform_26, window_bounds = array<i64: 128, 128>}, {pipeline_mode = #tpu.pipeline_mode<synchronous>, transform_indices = @transform_27, window_bounds = array<i64: 1, 128>}, {pipeline_mode = #tpu.pipeline_mode<synchronous>, transform_indices = @transform_28, window_bounds = array<i64: 16, 128>}, {pipeline_mode = #tpu.pipeline_mode<synchronous>, transform_indices = @transform_29, window_bounds = array<i64: 32, 128>}]} {
    %0 = tpu.iota {dimensions = array<i32: 1>} : vector<1x128xi32>
    %c32_i32 = arith.constant 32 : i32
    %1 = vector.broadcast %c32_i32 : i32 to vector<1x128xi32>
    %2 = arith.cmpi slt, %0, %1 : vector<1x128xi32>
    %3 = arith.extui %2 : vector<1x128xi1> to vector<1x128xi32>
    %4 = arith.sitofp %3 : vector<1x128xi32> to vector<1x128xf32>
    %c0 = arith.constant 0 : index
    %c0_0 = arith.constant 0 : index
    %5 = vector.load %arg3[%c0, %c0_0] : memref<16x32xbf16, #tpu.memory_space<vmem>>, vector<16x32xbf16>
    %c0_1 = arith.constant 0 : index
    %c0_2 = arith.constant 0 : index
    %6 = vector.load %arg4[%c0_1, %c0_2] : memref<32x16xbf16, #tpu.memory_space<vmem>>, vector<32x16xbf16>
    %c0_3 = arith.constant 0 : index
    %c0_4 = arith.constant 0 : index
    %7 = vector.load %arg17[%c0_3, %c0_4] : memref<1x128xf32, #tpu.memory_space<vmem>>, vector<1x128xf32>
    %c0_5 = arith.constant 0 : index
    %c0_6 = arith.constant 0 : index
    %8 = vector.load %arg18[%c0_5, %c0_6] : memref<1x128xf32, #tpu.memory_space<vmem>>, vector<1x128xf32>
    %c0_7 = arith.constant 0 : index
    %c0_8 = arith.constant 0 : index
    %9 = vector.load %arg19[%c0_7, %c0_8] : memref<1x128xf32, #tpu.memory_space<vmem>>, vector<1x128xf32>
    %c0_9 = arith.constant 0 : index
    %c0_10 = arith.constant 0 : index
    %10 = vector.load %arg20[%c0_9, %c0_10] : memref<1x128xf32, #tpu.memory_space<vmem>>, vector<1x128xf32>
    %c0_11 = arith.constant 0 : index
    %c0_12 = arith.constant 0 : index
    %11 = vector.load %arg1[%c0_11, %c0_12] : memref<16x128xbf16, #tpu.memory_space<vmem>>, vector<16x128xbf16>
    %c0_13 = arith.constant 0 : index
    %c0_14 = arith.constant 0 : index
    %12 = vector.load %arg5[%c0_13, %c0_14] : memref<128x128xbf16, #tpu.memory_space<vmem>>, vector<128x128xbf16>
    %cst = arith.constant dense<0.000000e+00> : vector<16x128xf32>
    %13 = tpu.matmul %11, %12, %cst {dimension_numbers = #tpu.dot_dimension_numbers<[1], [0], [0], [1], [0, 0, 1, 1], [], []>} : vector<16x128xbf16>, vector<128x128xbf16>, vector<16x128xf32> -> vector<16x128xf32>
    %c0_15 = arith.constant 0 : index
    %c0_16 = arith.constant 0 : index
    %14 = vector.load %arg6[%c0_15, %c0_16] : memref<1x128xf32, #tpu.memory_space<vmem>>, vector<1x128xf32>
    %15 = vector.broadcast %14 : vector<1x128xf32> to vector<16x128xf32>
    %16 = arith.addf %13, %15 : vector<16x128xf32>
    %c0_17 = arith.constant 0 : index
    %c0_18 = arith.constant 0 : index
    %17 = vector.load %arg31[%c0_17, %c0_18] : memref<16x128xf32, #tpu.memory_space<vmem>>, vector<16x128xf32>
    tpu.vector_store %arg31[%c0_17, %c0_18], %16 {strides = array<i32>} : memref<16x128xf32, #tpu.memory_space<vmem>>, vector<16x128xf32>,
    %c0_19 = arith.constant 0 : index
    %c0_20 = arith.constant 0 : index
    %18 = vector.load %arg2[%c0_19, %c0_20] : memref<32x128xbf16, #tpu.memory_space<vmem>>, vector<32x128xbf16>
    %c0_21 = arith.constant 0 : index
    %c0_22 = arith.constant 0 : index
    %19 = vector.load %arg7[%c0_21, %c0_22] : memref<128x128xbf16, #tpu.memory_space<vmem>>, vector<128x128xbf16>
    %cst_23 = arith.constant dense<0.000000e+00> : vector<32x128xf32>
    %20 = tpu.matmul %18, %19, %cst_23 {dimension_numbers = #tpu.dot_dimension_numbers<[1], [0], [0], [1], [0, 0, 1, 1], [], []>} : vector<32x128xbf16>, vector<128x128xbf16>, vector<32x128xf32> -> vector<32x128xf32>
    %c0_24 = arith.constant 0 : index
    %c0_25 = arith.constant 0 : index
    %21 = vector.load %arg8[%c0_24, %c0_25] : memref<1x128xf32, #tpu.memory_space<vmem>>, vector<1x128xf32>
    %22 = vector.broadcast %21 : vector<1x128xf32> to vector<32x128xf32>
    %23 = arith.addf %20, %22 : vector<32x128xf32>
    %c0_26 = arith.constant 0 : index
    %c0_27 = arith.constant 0 : index
    %24 = vector.load %arg32[%c0_26, %c0_27] : memref<32x128xf32, #tpu.memory_space<vmem>>, vector<32x128xf32>
    tpu.vector_store %arg32[%c0_26, %c0_27], %23 {strides = array<i32>} : memref<32x128xf32, #tpu.memory_space<vmem>>, vector<32x128xf32>,
    %c0_28 = arith.constant 0 : index
    %c0_29 = arith.constant 0 : index
    %25 = vector.load %arg31[%c0_28, %c0_29] : memref<16x128xf32, #tpu.memory_space<vmem>>, vector<16x128xf32>
    %c0_30 = arith.constant 0 : index
    %c0_31 = arith.constant 0 : index
    %26 = vector.load %arg32[%c0_30, %c0_31] : memref<32x128xf32, #tpu.memory_space<vmem>>, vector<32x128xf32>
    %27 = arith.truncf %25 : vector<16x128xf32> to vector<16x128xbf16>
    %28 = arith.truncf %26 : vector<32x128xf32> to vector<32x128xbf16>
    %cst_32 = arith.constant dense<0.000000e+00> : vector<16x128xf32>
    %29 = tpu.matmul %5, %28, %cst_32 {dimension_numbers = #tpu.dot_dimension_numbers<[1], [0], [0], [1], [0, 0, 1, 1], [], []>} : vector<16x32xbf16>, vector<32x128xbf16>, vector<16x128xf32> -> vector<16x128xf32>
    %30 = arith.truncf %29 : vector<16x128xf32> to vector<16x128xbf16>
    %31 = tpu.concatenate %27, %30 in 1 : vector<16x128xbf16>, vector<16x128xbf16> -> vector<16x256xbf16>
    %c0_33 = arith.constant 0 : index
    %c0_34 = arith.constant 0 : index
    %32 = vector.load %arg9[%c0_33, %c0_34] : memref<256x128xbf16, #tpu.memory_space<vmem>>, vector<256x128xbf16>
    %cst_35 = arith.constant dense<0.000000e+00> : vector<16x128xf32>
    %33 = tpu.matmul %31, %32, %cst_35 {dimension_numbers = #tpu.dot_dimension_numbers<[1], [0], [0], [1], [0, 0, 1, 1], [], []>} : vector<16x256xbf16>, vector<256x128xbf16>, vector<16x128xf32> -> vector<16x128xf32>
    %c0_36 = arith.constant 0 : index
    %c0_37 = arith.constant 0 : index
    %34 = vector.load %arg10[%c0_36, %c0_37] : memref<1x128xf32, #tpu.memory_space<vmem>>, vector<1x128xf32>
    %35 = vector.broadcast %34 : vector<1x128xf32> to vector<16x128xf32>
    %36 = arith.addf %33, %35 : vector<16x128xf32>
    %cst_38 = arith.constant dense<0.000000e+00> : vector<32x128xf32>
    %37 = tpu.matmul %6, %27, %cst_38 {dimension_numbers = #tpu.dot_dimension_numbers<[1], [0], [0], [1], [0, 0, 1, 1], [], []>} : vector<32x16xbf16>, vector<16x128xbf16>, vector<32x128xf32> -> vector<32x128xf32>
    %38 = arith.truncf %37 : vector<32x128xf32> to vector<32x128xbf16>
    %39 = tpu.concatenate %28, %38 in 1 : vector<32x128xbf16>, vector<32x128xbf16> -> vector<32x256xbf16>
    %c0_39 = arith.constant 0 : index
    %c0_40 = arith.constant 0 : index
    %40 = vector.load %arg11[%c0_39, %c0_40] : memref<256x128xbf16, #tpu.memory_space<vmem>>, vector<256x128xbf16>
    %cst_41 = arith.constant dense<0.000000e+00> : vector<32x128xf32>
    %41 = tpu.matmul %39, %40, %cst_41 {dimension_numbers = #tpu.dot_dimension_numbers<[1], [0], [0], [1], [0, 0, 1, 1], [], []>} : vector<32x256xbf16>, vector<256x128xbf16>, vector<32x128xf32> -> vector<32x128xf32>
    %c0_42 = arith.constant 0 : index
    %c0_43 = arith.constant 0 : index
    %42 = vector.load %arg12[%c0_42, %c0_43] : memref<1x128xf32, #tpu.memory_space<vmem>>, vector<1x128xf32>
    %43 = vector.broadcast %42 : vector<1x128xf32> to vector<32x128xf32>
    %44 = arith.addf %41, %43 : vector<32x128xf32>
    %cst_44 = arith.constant 0.000000e+00 : f32
    %45 = vector.broadcast %cst_44 : f32 to vector<16x128xf32>
    %46 = arith.maximumf %36, %45 : vector<16x128xf32>
    %47 = arith.addf %46, %25 : vector<16x128xf32>
    %cst_45 = arith.constant dense<0.000000e+00> : vector<16xf32>
    %48 = vector.multi_reduction <add>, %47, %cst_45 [1] : vector<16x128xf32> to vector<16xf32>
    %49 = vector.shape_cast %48 : vector<16xf32> to vector<16x1xf32>
    %cst_46 = arith.constant 3.125000e-02 : f32
    %50 = vector.broadcast %cst_46 : f32 to vector<16x1xf32>
    %51 = arith.mulf %49, %50 : vector<16x1xf32>
    %52 = vector.broadcast %51 : vector<16x1xf32> to vector<16x128xf32>
    %53 = vector.broadcast %4 : vector<1x128xf32> to vector<16x128xf32>
    %54 = arith.mulf %52, %53 : vector<16x128xf32>
    %55 = arith.subf %47, %54 : vector<16x128xf32>
    %56 = arith.mulf %55, %55 : vector<16x128xf32>
    %cst_47 = arith.constant dense<0.000000e+00> : vector<16xf32>
    %57 = vector.multi_reduction <add>, %56, %cst_47 [1] : vector<16x128xf32> to vector<16xf32>
    %58 = vector.shape_cast %57 : vector<16xf32> to vector<16x1xf32>
    %cst_48 = arith.constant 3.125000e-02 : f32
    %59 = vector.broadcast %cst_48 : f32 to vector<16x1xf32>
    %60 = arith.mulf %58, %59 : vector<16x1xf32>
    %cst_49 = arith.constant 9.99999974E-6 : f32
    %61 = vector.broadcast %cst_49 : f32 to vector<16x1xf32>
    %62 = arith.addf %60, %61 : vector<16x1xf32>
    %63 = math.rsqrt %62 : vector<16x1xf32>
    %64 = vector.broadcast %63 : vector<16x1xf32> to vector<16x128xf32>
    %65 = arith.mulf %55, %64 : vector<16x128xf32>
    %66 = vector.broadcast %7 : vector<1x128xf32> to vector<16x128xf32>
    %67 = arith.mulf %65, %66 : vector<16x128xf32>
    %68 = vector.broadcast %8 : vector<1x128xf32> to vector<16x128xf32>
    %69 = arith.addf %67, %68 : vector<16x128xf32>
    %c0_50 = arith.constant 0 : index
    %c0_51 = arith.constant 0 : index
    %70 = vector.load %arg31[%c0_50, %c0_51] : memref<16x128xf32, #tpu.memory_space<vmem>>, vector<16x128xf32>
    tpu.vector_store %arg31[%c0_50, %c0_51], %69 {strides = array<i32>} : memref<16x128xf32, #tpu.memory_space<vmem>>, vector<16x128xf32>,
    %cst_52 = arith.constant 0.000000e+00 : f32
    %71 = vector.broadcast %cst_52 : f32 to vector<32x128xf32>
    %72 = arith.maximumf %44, %71 : vector<32x128xf32>
    %73 = arith.addf %72, %26 : vector<32x128xf32>
    %cst_53 = arith.constant dense<0.000000e+00> : vector<32xf32>
    %74 = vector.multi_reduction <add>, %73, %cst_53 [1] : vector<32x128xf32> to vector<32xf32>
    %75 = vector.shape_cast %74 : vector<32xf32> to vector<32x1xf32>
    %cst_54 = arith.constant 3.125000e-02 : f32
    %76 = vector.broadcast %cst_54 : f32 to vector<32x1xf32>
    %77 = arith.mulf %75, %76 : vector<32x1xf32>
    %78 = vector.broadcast %77 : vector<32x1xf32> to vector<32x128xf32>
    %79 = vector.broadcast %4 : vector<1x128xf32> to vector<32x128xf32>
    %80 = arith.mulf %78, %79 : vector<32x128xf32>
    %81 = arith.subf %73, %80 : vector<32x128xf32>
    %82 = arith.mulf %81, %81 : vector<32x128xf32>
    %cst_55 = arith.constant dense<0.000000e+00> : vector<32xf32>
    %83 = vector.multi_reduction <add>, %82, %cst_55 [1] : vector<32x128xf32> to vector<32xf32>
    %84 = vector.shape_cast %83 : vector<32xf32> to vector<32x1xf32>
    %cst_56 = arith.constant 3.125000e-02 : f32
    %85 = vector.broadcast %cst_56 : f32 to vector<32x1xf32>
    %86 = arith.mulf %84, %85 : vector<32x1xf32>
    %cst_57 = arith.constant 9.99999974E-6 : f32
    %87 = vector.broadcast %cst_57 : f32 to vector<32x1xf32>
    %88 = arith.addf %86, %87 : vector<32x1xf32>
    %89 = math.rsqrt %88 : vector<32x1xf32>
    %90 = vector.broadcast %89 : vector<32x1xf32> to vector<32x128xf32>
    %91 = arith.mulf %81, %90 : vector<32x128xf32>
    %92 = vector.broadcast %9 : vector<1x128xf32> to vector<32x128xf32>
    %93 = arith.mulf %91, %92 : vector<32x128xf32>
    %94 = vector.broadcast %10 : vector<1x128xf32> to vector<32x128xf32>
    %95 = arith.addf %93, %94 : vector<32x128xf32>
    %c0_58 = arith.constant 0 : index
    %c0_59 = arith.constant 0 : index
    %96 = vector.load %arg32[%c0_58, %c0_59] : memref<32x128xf32, #tpu.memory_space<vmem>>, vector<32x128xf32>
    tpu.vector_store %arg32[%c0_58, %c0_59], %95 {strides = array<i32>} : memref<32x128xf32, #tpu.memory_space<vmem>>, vector<32x128xf32>,
    %c0_60 = arith.constant 0 : index
    %c0_61 = arith.constant 0 : index
    %97 = vector.load %arg31[%c0_60, %c0_61] : memref<16x128xf32, #tpu.memory_space<vmem>>, vector<16x128xf32>
    %c0_62 = arith.constant 0 : index
    %c0_63 = arith.constant 0 : index
    %98 = vector.load %arg32[%c0_62, %c0_63] : memref<32x128xf32, #tpu.memory_space<vmem>>, vector<32x128xf32>
    %99 = arith.truncf %97 : vector<16x128xf32> to vector<16x128xbf16>
    %100 = arith.truncf %98 : vector<32x128xf32> to vector<32x128xbf16>
    %cst_64 = arith.constant dense<0.000000e+00> : vector<16x128xf32>
    %101 = tpu.matmul %5, %100, %cst_64 {dimension_numbers = #tpu.dot_dimension_numbers<[1], [0], [0], [1], [0, 0, 1, 1], [], []>} : vector<16x32xbf16>, vector<32x128xbf16>, vector<16x128xf32> -> vector<16x128xf32>
    %102 = arith.truncf %101 : vector<16x128xf32> to vector<16x128xbf16>
    %103 = tpu.concatenate %99, %102 in 1 : vector<16x128xbf16>, vector<16x128xbf16> -> vector<16x256xbf16>
    %c0_65 = arith.constant 0 : index
    %c0_66 = arith.constant 0 : index
    %104 = vector.load %arg13[%c0_65, %c0_66] : memref<256x128xbf16, #tpu.memory_space<vmem>>, vector<256x128xbf16>
    %cst_67 = arith.constant dense<0.000000e+00> : vector<16x128xf32>
    %105 = tpu.matmul %103, %104, %cst_67 {dimension_numbers = #tpu.dot_dimension_numbers<[1], [0], [0], [1], [0, 0, 1, 1], [], []>} : vector<16x256xbf16>, vector<256x128xbf16>, vector<16x128xf32> -> vector<16x128xf32>
    %c0_68 = arith.constant 0 : index
    %c0_69 = arith.constant 0 : index
    %106 = vector.load %arg14[%c0_68, %c0_69] : memref<1x128xf32, #tpu.memory_space<vmem>>, vector<1x128xf32>
    %107 = vector.broadcast %106 : vector<1x128xf32> to vector<16x128xf32>
    %108 = arith.addf %105, %107 : vector<16x128xf32>
    %cst_70 = arith.constant dense<0.000000e+00> : vector<32x128xf32>
    %109 = tpu.matmul %6, %99, %cst_70 {dimension_numbers = #tpu.dot_dimension_numbers<[1], [0], [0], [1], [0, 0, 1, 1], [], []>} : vector<32x16xbf16>, vector<16x128xbf16>, vector<32x128xf32> -> vector<32x128xf32>
    %110 = arith.truncf %109 : vector<32x128xf32> to vector<32x128xbf16>
    %111 = tpu.concatenate %100, %110 in 1 : vector<32x128xbf16>, vector<32x128xbf16> -> vector<32x256xbf16>
    %c0_71 = arith.constant 0 : index
    %c0_72 = arith.constant 0 : index
    %112 = vector.load %arg15[%c0_71, %c0_72] : memref<256x128xbf16, #tpu.memory_space<vmem>>, vector<256x128xbf16>
    %cst_73 = arith.constant dense<0.000000e+00> : vector<32x128xf32>
    %113 = tpu.matmul %111, %112, %cst_73 {dimension_numbers = #tpu.dot_dimension_numbers<[1], [0], [0], [1], [0, 0, 1, 1], [], []>} : vector<32x256xbf16>, vector<256x128xbf16>, vector<32x128xf32> -> vector<32x128xf32>
    %c0_74 = arith.constant 0 : index
    %c0_75 = arith.constant 0 : index
    %114 = vector.load %arg16[%c0_74, %c0_75] : memref<1x128xf32, #tpu.memory_space<vmem>>, vector<1x128xf32>
    %115 = vector.broadcast %114 : vector<1x128xf32> to vector<32x128xf32>
    %116 = arith.addf %113, %115 : vector<32x128xf32>
    %cst_76 = arith.constant 0.000000e+00 : f32
    %117 = vector.broadcast %cst_76 : f32 to vector<16x128xf32>
    %118 = arith.maximumf %108, %117 : vector<16x128xf32>
    %119 = arith.addf %118, %97 : vector<16x128xf32>
    %cst_77 = arith.constant dense<0.000000e+00> : vector<16xf32>
    %120 = vector.multi_reduction <add>, %119, %cst_77 [1] : vector<16x128xf32> to vector<16xf32>
    %121 = vector.shape_cast %120 : vector<16xf32> to vector<16x1xf32>
    %cst_78 = arith.constant 3.125000e-02 : f32
    %122 = vector.broadcast %cst_78 : f32 to vector<16x1xf32>
    %123 = arith.mulf %121, %122 : vector<16x1xf32>
    %124 = vector.broadcast %123 : vector<16x1xf32> to vector<16x128xf32>
    %125 = vector.broadcast %4 : vector<1x128xf32> to vector<16x128xf32>
    %126 = arith.mulf %124, %125 : vector<16x128xf32>
    %127 = arith.subf %119, %126 : vector<16x128xf32>
    %128 = arith.mulf %127, %127 : vector<16x128xf32>
    %cst_79 = arith.constant dense<0.000000e+00> : vector<16xf32>
    %129 = vector.multi_reduction <add>, %128, %cst_79 [1] : vector<16x128xf32> to vector<16xf32>
    %130 = vector.shape_cast %129 : vector<16xf32> to vector<16x1xf32>
    %cst_80 = arith.constant 3.125000e-02 : f32
    %131 = vector.broadcast %cst_80 : f32 to vector<16x1xf32>
    %132 = arith.mulf %130, %131 : vector<16x1xf32>
    %cst_81 = arith.constant 9.99999974E-6 : f32
    %133 = vector.broadcast %cst_81 : f32 to vector<16x1xf32>
    %134 = arith.addf %132, %133 : vector<16x1xf32>
    %135 = math.rsqrt %134 : vector<16x1xf32>
    %136 = vector.broadcast %135 : vector<16x1xf32> to vector<16x128xf32>
    %137 = arith.mulf %127, %136 : vector<16x128xf32>
    %138 = vector.broadcast %7 : vector<1x128xf32> to vector<16x128xf32>
    %139 = arith.mulf %137, %138 : vector<16x128xf32>
    %140 = vector.broadcast %8 : vector<1x128xf32> to vector<16x128xf32>
    %141 = arith.addf %139, %140 : vector<16x128xf32>
    %c0_82 = arith.constant 0 : index
    %c0_83 = arith.constant 0 : index
    %142 = vector.load %arg31[%c0_82, %c0_83] : memref<16x128xf32, #tpu.memory_space<vmem>>, vector<16x128xf32>
    tpu.vector_store %arg31[%c0_82, %c0_83], %141 {strides = array<i32>} : memref<16x128xf32, #tpu.memory_space<vmem>>, vector<16x128xf32>,
    %cst_84 = arith.constant 0.000000e+00 : f32
    %143 = vector.broadcast %cst_84 : f32 to vector<32x128xf32>
    %144 = arith.maximumf %116, %143 : vector<32x128xf32>
    %145 = arith.addf %144, %98 : vector<32x128xf32>
    %cst_85 = arith.constant dense<0.000000e+00> : vector<32xf32>
    %146 = vector.multi_reduction <add>, %145, %cst_85 [1] : vector<32x128xf32> to vector<32xf32>
    %147 = vector.shape_cast %146 : vector<32xf32> to vector<32x1xf32>
    %cst_86 = arith.constant 3.125000e-02 : f32
    %148 = vector.broadcast %cst_86 : f32 to vector<32x1xf32>
    %149 = arith.mulf %147, %148 : vector<32x1xf32>
    %150 = vector.broadcast %149 : vector<32x1xf32> to vector<32x128xf32>
    %151 = vector.broadcast %4 : vector<1x128xf32> to vector<32x128xf32>
    %152 = arith.mulf %150, %151 : vector<32x128xf32>
    %153 = arith.subf %145, %152 : vector<32x128xf32>
    %154 = arith.mulf %153, %153 : vector<32x128xf32>
    %cst_87 = arith.constant dense<0.000000e+00> : vector<32xf32>
    %155 = vector.multi_reduction <add>, %154, %cst_87 [1] : vector<32x128xf32> to vector<32xf32>
    %156 = vector.shape_cast %155 : vector<32xf32> to vector<32x1xf32>
    %cst_88 = arith.constant 3.125000e-02 : f32
    %157 = vector.broadcast %cst_88 : f32 to vector<32x1xf32>
    %158 = arith.mulf %156, %157 : vector<32x1xf32>
    %cst_89 = arith.constant 9.99999974E-6 : f32
    %159 = vector.broadcast %cst_89 : f32 to vector<32x1xf32>
    %160 = arith.addf %158, %159 : vector<32x1xf32>
    %161 = math.rsqrt %160 : vector<32x1xf32>
    %162 = vector.broadcast %161 : vector<32x1xf32> to vector<32x128xf32>
    %163 = arith.mulf %153, %162 : vector<32x128xf32>
    %164 = vector.broadcast %9 : vector<1x128xf32> to vector<32x128xf32>
    %165 = arith.mulf %163, %164 : vector<32x128xf32>
    %166 = vector.broadcast %10 : vector<1x128xf32> to vector<32x128xf32>
    %167 = arith.addf %165, %166 : vector<32x128xf32>
    %c0_90 = arith.constant 0 : index
    %c0_91 = arith.constant 0 : index
    %168 = vector.load %arg32[%c0_90, %c0_91] : memref<32x128xf32, #tpu.memory_space<vmem>>, vector<32x128xf32>
    tpu.vector_store %arg32[%c0_90, %c0_91], %167 {strides = array<i32>} : memref<32x128xf32, #tpu.memory_space<vmem>>, vector<32x128xf32>,
    %c0_92 = arith.constant 0 : index
    %c0_93 = arith.constant 0 : index
    %169 = vector.load %arg31[%c0_92, %c0_93] : memref<16x128xf32, #tpu.memory_space<vmem>>, vector<16x128xf32>
    %170 = arith.truncf %169 : vector<16x128xf32> to vector<16x128xbf16>
    %c0_94 = arith.constant 0 : index
    %c0_95 = arith.constant 0 : index
    %171 = vector.load %arg21[%c0_94, %c0_95] : memref<128x128xbf16, #tpu.memory_space<vmem>>, vector<128x128xbf16>
    %cst_96 = arith.constant dense<0.000000e+00> : vector<16x128xf32>
    %172 = tpu.matmul %170, %171, %cst_96 {dimension_numbers = #tpu.dot_dimension_numbers<[1], [0], [0], [1], [0, 0, 1, 1], [], []>} : vector<16x128xbf16>, vector<128x128xbf16>, vector<16x128xf32> -> vector<16x128xf32>
    %c0_97 = arith.constant 0 : index
    %c0_98 = arith.constant 0 : index
    %173 = vector.load %arg22[%c0_97, %c0_98] : memref<1x128xf32, #tpu.memory_space<vmem>>, vector<1x128xf32>
    %174 = vector.broadcast %173 : vector<1x128xf32> to vector<16x128xf32>
    %175 = arith.addf %172, %174 : vector<16x128xf32>
    %cst_99 = arith.constant 0.000000e+00 : f32
    %176 = vector.broadcast %cst_99 : f32 to vector<16x128xf32>
    %177 = arith.maximumf %175, %176 : vector<16x128xf32>
    %178 = arith.truncf %177 : vector<16x128xf32> to vector<16x128xbf16>
    %c0_100 = arith.constant 0 : index
    %c0_101 = arith.constant 0 : index
    %179 = vector.load %arg23[%c0_100, %c0_101] : memref<128x128xbf16, #tpu.memory_space<vmem>>, vector<128x128xbf16>
    %cst_102 = arith.constant dense<0.000000e+00> : vector<16x128xf32>
    %180 = tpu.matmul %178, %179, %cst_102 {dimension_numbers = #tpu.dot_dimension_numbers<[1], [0], [0], [1], [0, 0, 1, 1], [], []>} : vector<16x128xbf16>, vector<128x128xbf16>, vector<16x128xf32> -> vector<16x128xf32>
    %c0_103 = arith.constant 0 : index
    %c0_104 = arith.constant 0 : index
    %181 = vector.load %arg24[%c0_103, %c0_104] : memref<1x128xf32, #tpu.memory_space<vmem>>, vector<1x128xf32>
    %182 = vector.broadcast %181 : vector<1x128xf32> to vector<16x128xf32>
    %183 = arith.addf %180, %182 : vector<16x128xf32>
    %184 = tpu.iota {dimensions = array<i32: 1>} : vector<16x128xi32>
    %c8_i32 = arith.constant 8 : i32
    %185 = vector.broadcast %c8_i32 : i32 to vector<16x128xi32>
    %186 = arith.cmpi slt, %184, %185 : vector<16x128xi32>
    %cst_105 = arith.constant -1.000000e+30 : f32
    %187 = vector.broadcast %cst_105 : f32 to vector<16x128xf32>
    %188 = arith.select %186, %183, %187 : vector<16x128xi1>, vector<16x128xf32>
    %cst_106 = arith.constant dense<0xFF800000> : vector<16xf32>
    %189 = vector.multi_reduction <maximumf>, %188, %cst_106 [1] : vector<16x128xf32> to vector<16xf32>
    %190 = vector.shape_cast %189 : vector<16xf32> to vector<16x1xf32>
    %191 = vector.broadcast %190 : vector<16x1xf32> to vector<16x128xf32>
    %192 = arith.subf %188, %191 : vector<16x128xf32>
    %193 = math.exp %192 : vector<16x128xf32>
    %cst_107 = arith.constant dense<0.000000e+00> : vector<16xf32>
    %194 = vector.multi_reduction <add>, %193, %cst_107 [1] : vector<16x128xf32> to vector<16xf32>
    %195 = vector.shape_cast %194 : vector<16xf32> to vector<16x1xf32>
    %196 = math.log %195 : vector<16x1xf32>
    %197 = vector.broadcast %190 : vector<16x1xf32> to vector<16x128xf32>
    %198 = arith.subf %183, %197 : vector<16x128xf32>
    %199 = vector.broadcast %196 : vector<16x1xf32> to vector<16x128xf32>
    %200 = arith.subf %198, %199 : vector<16x128xf32>
    %cst_108 = arith.constant 0.000000e+00 : f32
    %201 = vector.broadcast %cst_108 : f32 to vector<16x128xf32>
    %202 = arith.select %186, %200, %201 : vector<16x128xi1>, vector<16x128xf32>
    %c0_109 = arith.constant 0 : index
    %c0_110 = arith.constant 0 : index
    %203 = vector.load %arg29[%c0_109, %c0_110] : memref<16x128xf32, #tpu.memory_space<vmem>>, vector<16x128xf32>
    tpu.vector_store %arg29[%c0_109, %c0_110], %202 {strides = array<i32>} : memref<16x128xf32, #tpu.memory_space<vmem>>, vector<16x128xf32>,
    %c0_111 = arith.constant 0 : index
    %c0_112 = arith.constant 0 : index
    %204 = vector.load %arg32[%c0_111, %c0_112] : memref<32x128xf32, #tpu.memory_space<vmem>>, vector<32x128xf32>
    %205 = arith.truncf %204 : vector<32x128xf32> to vector<32x128xbf16>
    %c0_113 = arith.constant 0 : index
    %c0_114 = arith.constant 0 : index
    %206 = vector.load %arg25[%c0_113, %c0_114] : memref<128x128xbf16, #tpu.memory_space<vmem>>, vector<128x128xbf16>
    %cst_115 = arith.constant dense<0.000000e+00> : vector<32x128xf32>
    %207 = tpu.matmul %205, %206, %cst_115 {dimension_numbers = #tpu.dot_dimension_numbers<[1], [0], [0], [1], [0, 0, 1, 1], [], []>} : vector<32x128xbf16>, vector<128x128xbf16>, vector<32x128xf32> -> vector<32x128xf32>
    %c0_116 = arith.constant 0 : index
    %c0_117 = arith.constant 0 : index
    %208 = vector.load %arg26[%c0_116, %c0_117] : memref<1x128xf32, #tpu.memory_space<vmem>>, vector<1x128xf32>
    %209 = vector.broadcast %208 : vector<1x128xf32> to vector<32x128xf32>
    %210 = arith.addf %207, %209 : vector<32x128xf32>
    %cst_118 = arith.constant 0.000000e+00 : f32
    %211 = vector.broadcast %cst_118 : f32 to vector<32x128xf32>
    %212 = arith.maximumf %210, %211 : vector<32x128xf32>
    %213 = arith.truncf %212 : vector<32x128xf32> to vector<32x128xbf16>
    %c0_119 = arith.constant 0 : index
    %c0_120 = arith.constant 0 : index
    %214 = vector.load %arg27[%c0_119, %c0_120] : memref<128x128xbf16, #tpu.memory_space<vmem>>, vector<128x128xbf16>
    %cst_121 = arith.constant dense<0.000000e+00> : vector<32x128xf32>
    %215 = tpu.matmul %213, %214, %cst_121 {dimension_numbers = #tpu.dot_dimension_numbers<[1], [0], [0], [1], [0, 0, 1, 1], [], []>} : vector<32x128xbf16>, vector<128x128xbf16>, vector<32x128xf32> -> vector<32x128xf32>
    %c0_122 = arith.constant 0 : index
    %c0_123 = arith.constant 0 : index
    %216 = vector.load %arg28[%c0_122, %c0_123] : memref<1x128xf32, #tpu.memory_space<vmem>>, vector<1x128xf32>
    %217 = vector.broadcast %216 : vector<1x128xf32> to vector<32x128xf32>
    %218 = arith.addf %215, %217 : vector<32x128xf32>
    %c0_124 = arith.constant 0 : index
    %c0_125 = arith.constant 0 : index
    %219 = vector.load %arg30[%c0_124, %c0_125] : memref<32x128xf32, #tpu.memory_space<vmem>>, vector<32x128xf32>
    tpu.vector_store %arg30[%c0_124, %c0_125], %218 {strides = array<i32>} : memref<32x128xf32, #tpu.memory_space<vmem>>, vector<32x128xf32>,
    return
  }
  func.func @transform_0(%arg0: i32) -> (i32, i32) {
    %c0_i32 = arith.constant 0 : i32
    %c0_i32_0 = arith.constant 0 : i32
    %c0_i32_1 = arith.constant 0 : i32
    return %c0_i32, %c0_i32_0 : i32, i32
  }
  func.func @transform_1(%arg0: i32) -> (i32, i32) {
    %c0_i32 = arith.constant 0 : i32
    %c0_i32_0 = arith.constant 0 : i32
    %c0_i32_1 = arith.constant 0 : i32
    return %c0_i32, %c0_i32_0 : i32, i32
  }
  func.func @transform_2(%arg0: i32) -> (i32, i32) {
    %c0_i32 = arith.constant 0 : i32
    %c0_i32_0 = arith.constant 0 : i32
    %c0_i32_1 = arith.constant 0 : i32
    return %c0_i32, %c0_i32_0 : i32, i32
  }
  func.func @transform_3(%arg0: i32) -> (i32, i32) {
    %c0_i32 = arith.constant 0 : i32
    %c0_i32_0 = arith.constant 0 : i32
    %c0_i32_1 = arith.constant 0 : i32
    return %c0_i32, %c0_i32_0 : i32, i32
  }
  func.func @transform_4(%arg0: i32) -> (i32, i32) {
    %c0_i32 = arith.constant 0 : i32
    %c0_i32_0 = arith.constant 0 : i32
    %c0_i32_1 = arith.constant 0 : i32
    return %c0_i32, %c0_i32_0 : i32, i32
  }
  func.func @transform_5(%arg0: i32) -> (i32, i32) {
    %c0_i32 = arith.constant 0 : i32
    %c0_i32_0 = arith.constant 0 : i32
    %c0_i32_1 = arith.constant 0 : i32
    return %c0_i32, %c0_i32_0 : i32, i32
  }
  func.func @transform_6(%arg0: i32) -> (i32, i32) {
    %c0_i32 = arith.constant 0 : i32
    %c0_i32_0 = arith.constant 0 : i32
    %c0_i32_1 = arith.constant 0 : i32
    return %c0_i32, %c0_i32_0 : i32, i32
  }
  func.func @transform_7(%arg0: i32) -> (i32, i32) {
    %c0_i32 = arith.constant 0 : i32
    %c0_i32_0 = arith.constant 0 : i32
    %c0_i32_1 = arith.constant 0 : i32
    return %c0_i32, %c0_i32_0 : i32, i32
  }
  func.func @transform_8(%arg0: i32) -> (i32, i32) {
    %c0_i32 = arith.constant 0 : i32
    %c0_i32_0 = arith.constant 0 : i32
    %c0_i32_1 = arith.constant 0 : i32
    return %c0_i32, %c0_i32_0 : i32, i32
  }
  func.func @transform_9(%arg0: i32) -> (i32, i32) {
    %c0_i32 = arith.constant 0 : i32
    %c0_i32_0 = arith.constant 0 : i32
    %c0_i32_1 = arith.constant 0 : i32
    return %c0_i32, %c0_i32_0 : i32, i32
  }
  func.func @transform_10(%arg0: i32) -> (i32, i32) {
    %c0_i32 = arith.constant 0 : i32
    %c0_i32_0 = arith.constant 0 : i32
    %c0_i32_1 = arith.constant 0 : i32
    return %c0_i32, %c0_i32_0 : i32, i32
  }
  func.func @transform_11(%arg0: i32) -> (i32, i32) {
    %c0_i32 = arith.constant 0 : i32
    %c0_i32_0 = arith.constant 0 : i32
    %c0_i32_1 = arith.constant 0 : i32
    return %c0_i32, %c0_i32_0 : i32, i32
  }
  func.func @transform_12(%arg0: i32) -> (i32, i32) {
    %c0_i32 = arith.constant 0 : i32
    %c0_i32_0 = arith.constant 0 : i32
    %c0_i32_1 = arith.constant 0 : i32
    return %c0_i32, %c0_i32_0 : i32, i32
  }
  func.func @transform_13(%arg0: i32) -> (i32, i32) {
    %c0_i32 = arith.constant 0 : i32
    %c0_i32_0 = arith.constant 0 : i32
    %c0_i32_1 = arith.constant 0 : i32
    return %c0_i32, %c0_i32_0 : i32, i32
  }
  func.func @transform_14(%arg0: i32) -> (i32, i32) {
    %c0_i32 = arith.constant 0 : i32
    %c0_i32_0 = arith.constant 0 : i32
    %c0_i32_1 = arith.constant 0 : i32
    return %c0_i32, %c0_i32_0 : i32, i32
  }
  func.func @transform_15(%arg0: i32) -> (i32, i32) {
    %c0_i32 = arith.constant 0 : i32
    %c0_i32_0 = arith.constant 0 : i32
    %c0_i32_1 = arith.constant 0 : i32
    return %c0_i32, %c0_i32_0 : i32, i32
  }
  func.func @transform_16(%arg0: i32) -> (i32, i32) {
    %c0_i32 = arith.constant 0 : i32
    %c0_i32_0 = arith.constant 0 : i32
    %c0_i32_1 = arith.constant 0 : i32
    return %c0_i32, %c0_i32_0 : i32, i32
  }
  func.func @transform_17(%arg0: i32) -> (i32, i32) {
    %c0_i32 = arith.constant 0 : i32
    %c0_i32_0 = arith.constant 0 : i32
    %c0_i32_1 = arith.constant 0 : i32
    return %c0_i32, %c0_i32_0 : i32, i32
  }
  func.func @transform_18(%arg0: i32) -> (i32, i32) {
    %c0_i32 = arith.constant 0 : i32
    %c0_i32_0 = arith.constant 0 : i32
    %c0_i32_1 = arith.constant 0 : i32
    return %c0_i32, %c0_i32_0 : i32, i32
  }
  func.func @transform_19(%arg0: i32) -> (i32, i32) {
    %c0_i32 = arith.constant 0 : i32
    %c0_i32_0 = arith.constant 0 : i32
    %c0_i32_1 = arith.constant 0 : i32
    return %c0_i32, %c0_i32_0 : i32, i32
  }
  func.func @transform_20(%arg0: i32) -> (i32, i32) {
    %c0_i32 = arith.constant 0 : i32
    %c0_i32_0 = arith.constant 0 : i32
    %c0_i32_1 = arith.constant 0 : i32
    return %c0_i32, %c0_i32_0 : i32, i32
  }
  func.func @transform_21(%arg0: i32) -> (i32, i32) {
    %c0_i32 = arith.constant 0 : i32
    %c0_i32_0 = arith.constant 0 : i32
    %c0_i32_1 = arith.constant 0 : i32
    return %c0_i32, %c0_i32_0 : i32, i32
  }
  func.func @transform_22(%arg0: i32) -> (i32, i32) {
    %c0_i32 = arith.constant 0 : i32
    %c0_i32_0 = arith.constant 0 : i32
    %c0_i32_1 = arith.constant 0 : i32
    return %c0_i32, %c0_i32_0 : i32, i32
  }
  func.func @transform_23(%arg0: i32) -> (i32, i32) {
    %c0_i32 = arith.constant 0 : i32
    %c0_i32_0 = arith.constant 0 : i32
    %c0_i32_1 = arith.constant 0 : i32
    return %c0_i32, %c0_i32_0 : i32, i32
  }
  func.func @transform_24(%arg0: i32) -> (i32, i32) {
    %c0_i32 = arith.constant 0 : i32
    %c0_i32_0 = arith.constant 0 : i32
    %c0_i32_1 = arith.constant 0 : i32
    return %c0_i32, %c0_i32_0 : i32, i32
  }
  func.func @transform_25(%arg0: i32) -> (i32, i32) {
    %c0_i32 = arith.constant 0 : i32
    %c0_i32_0 = arith.constant 0 : i32
    %c0_i32_1 = arith.constant 0 : i32
    return %c0_i32, %c0_i32_0 : i32, i32
  }
  func.func @transform_26(%arg0: i32) -> (i32, i32) {
    %c0_i32 = arith.constant 0 : i32
    %c0_i32_0 = arith.constant 0 : i32
    %c0_i32_1 = arith.constant 0 : i32
    return %c0_i32, %c0_i32_0 : i32, i32
  }
  func.func @transform_27(%arg0: i32) -> (i32, i32) {
    %c0_i32 = arith.constant 0 : i32
    %c0_i32_0 = arith.constant 0 : i32
    %c0_i32_1 = arith.constant 0 : i32
    return %c0_i32, %c0_i32_0 : i32, i32
  }
  func.func @transform_28(%arg0: i32) -> (i32, i32) {
    %c0_i32 = arith.constant 0 : i32
    %c0_i32_0 = arith.constant 0 : i32
    %c0_i32_1 = arith.constant 0 : i32
    return %c0_i32, %c0_i32_0 : i32, i32
  }
  func.func @transform_29(%arg0: i32) -> (i32, i32) {
    %c0_i32 = arith.constant 0 : i32
    %c0_i32_0 = arith.constant 0 : i32
    %c0_i32_1 = arith.constant 0 : i32
    return %c0_i32, %c0_i32_0 : i32, i32
  }
}

module attributes {stable_mosaic.version = 11 : i64} {
  func.func @_fused_kernel(%arg0: i32, %arg1: memref<16x128xbf16, #tpu.memory_space<vmem>>, %arg2: memref<32x128xbf16, #tpu.memory_space<vmem>>, %arg3: memref<16x32xbf16, #tpu.memory_space<vmem>>, %arg4: memref<32x16xbf16, #tpu.memory_space<vmem>>, %arg5: memref<128x128xbf16, #tpu.memory_space<vmem>>, %arg6: memref<1x128xf32, #tpu.memory_space<vmem>>, %arg7: memref<128x128xbf16, #tpu.memory_space<vmem>>, %arg8: memref<1x128xf32, #tpu.memory_space<vmem>>, %arg9: memref<256x128xbf16, #tpu.memory_space<vmem>>, %arg10: memref<1x128xf32, #tpu.memory_space<vmem>>, %arg11: memref<256x128xbf16, #tpu.memory_space<vmem>>, %arg12: memref<1x128xf32, #tpu.memory_space<vmem>>, %arg13: memref<256x128xbf16, #tpu.memory_space<vmem>>, %arg14: memref<1x128xf32, #tpu.memory_space<vmem>>, %arg15: memref<256x128xbf16, #tpu.memory_space<vmem>>, %arg16: memref<1x128xf32, #tpu.memory_space<vmem>>, %arg17: memref<1x128xf32, #tpu.memory_space<vmem>>, %arg18: memref<1x128xf32, #tpu.memory_space<vmem>>, %arg19: memref<1x128xf32, #tpu.memory_space<vmem>>, %arg20: memref<1x128xf32, #tpu.memory_space<vmem>>, %arg21: memref<128x128xbf16, #tpu.memory_space<vmem>>, %arg22: memref<1x128xf32, #tpu.memory_space<vmem>>, %arg23: memref<128x128xbf16, #tpu.memory_space<vmem>>, %arg24: memref<1x128xf32, #tpu.memory_space<vmem>>, %arg25: memref<128x128xbf16, #tpu.memory_space<vmem>>, %arg26: memref<1x128xf32, #tpu.memory_space<vmem>>, %arg27: memref<128x128xbf16, #tpu.memory_space<vmem>>, %arg28: memref<1x128xf32, #tpu.memory_space<vmem>>, %arg29: memref<16x128xf32, #tpu.memory_space<vmem>>, %arg30: memref<32x128xf32, #tpu.memory_space<vmem>>, %arg31: memref<16x128xf32, #tpu.memory_space<vmem>>, %arg32: memref<32x128xf32, #tpu.memory_space<vmem>>) attributes {dimension_semantics = [#tpu.dimension_semantics<arbitrary>], iteration_bounds = array<i64: 1>, scalar_prefetch = 0 : i64, scratch_operands = 2 : i64, tpu.core_type = #tpu.core_type<tc>, window_params = [{pipeline_mode = #tpu.pipeline_mode<synchronous>, transform_indices = @transform_0, window_bounds = array<i64: 16, 128>}, {pipeline_mode = #tpu.pipeline_mode<synchronous>, transform_indices = @transform_1, window_bounds = array<i64: 32, 128>}, {pipeline_mode = #tpu.pipeline_mode<synchronous>, transform_indices = @transform_2, window_bounds = array<i64: 16, 32>}, {pipeline_mode = #tpu.pipeline_mode<synchronous>, transform_indices = @transform_3, window_bounds = array<i64: 32, 16>}, {pipeline_mode = #tpu.pipeline_mode<synchronous>, transform_indices = @transform_4, window_bounds = array<i64: 128, 128>}, {pipeline_mode = #tpu.pipeline_mode<synchronous>, transform_indices = @transform_5, window_bounds = array<i64: 1, 128>}, {pipeline_mode = #tpu.pipeline_mode<synchronous>, transform_indices = @transform_6, window_bounds = array<i64: 128, 128>}, {pipeline_mode = #tpu.pipeline_mode<synchronous>, transform_indices = @transform_7, window_bounds = array<i64: 1, 128>}, {pipeline_mode = #tpu.pipeline_mode<synchronous>, transform_indices = @transform_8, window_bounds = array<i64: 256, 128>}, {pipeline_mode = #tpu.pipeline_mode<synchronous>, transform_indices = @transform_9, window_bounds = array<i64: 1, 128>}, {pipeline_mode = #tpu.pipeline_mode<synchronous>, transform_indices = @transform_10, window_bounds = array<i64: 256, 128>}, {pipeline_mode = #tpu.pipeline_mode<synchronous>, transform_indices = @transform_11, window_bounds = array<i64: 1, 128>}, {pipeline_mode = #tpu.pipeline_mode<synchronous>, transform_indices = @transform_12, window_bounds = array<i64: 256, 128>}, {pipeline_mode = #tpu.pipeline_mode<synchronous>, transform_indices = @transform_13, window_bounds = array<i64: 1, 128>}, {pipeline_mode = #tpu.pipeline_mode<synchronous>, transform_indices = @transform_14, window_bounds = array<i64: 256, 128>}, {pipeline_mode = #tpu.pipeline_mode<synchronous>, transform_indices = @transform_15, window_bounds = array<i64: 1, 128>}, {pipeline_mode = #tpu.pipeline_mode<synchronous>, transform_indices = @transform_16, window_bounds = array<i64: 1, 128>}, {pipeline_mode = #tpu.pipeline_mode<synchronous>, transform_indices = @transform_17, window_bounds = array<i64: 1, 128>}, {pipeline_mode = #tpu.pipeline_mode<synchronous>, transform_indices = @transform_18, window_bounds = array<i64: 1, 128>}, {pipeline_mode = #tpu.pipeline_mode<synchronous>, transform_indices = @transform_19, window_bounds = array<i64: 1, 128>}, {pipeline_mode = #tpu.pipeline_mode<synchronous>, transform_indices = @transform_20, window_bounds = array<i64: 128, 128>}, {pipeline_mode = #tpu.pipeline_mode<synchronous>, transform_indices = @transform_21, window_bounds = array<i64: 1, 128>}, {pipeline_mode = #tpu.pipeline_mode<synchronous>, transform_indices = @transform_22, window_bounds = array<i64: 128, 128>}, {pipeline_mode = #tpu.pipeline_mode<synchronous>, transform_indices = @transform_23, window_bounds = array<i64: 1, 128>}, {pipeline_mode = #tpu.pipeline_mode<synchronous>, transform_indices = @transform_24, window_bounds = array<i64: 128, 128>}, {pipeline_mode = #tpu.pipeline_mode<synchronous>, transform_indices = @transform_25, window_bounds = array<i64: 1, 128>}, {pipeline_mode = #tpu.pipeline_mode<synchronous>, transform_indices = @transform_26, window_bounds = array<i64: 128, 128>}, {pipeline_mode = #tpu.pipeline_mode<synchronous>, transform_indices = @transform_27, window_bounds = array<i64: 1, 128>}, {pipeline_mode = #tpu.pipeline_mode<synchronous>, transform_indices = @transform_28, window_bounds = array<i64: 16, 128>}, {pipeline_mode = #tpu.pipeline_mode<synchronous>, transform_indices = @transform_29, window_bounds = array<i64: 32, 128>}]} {
    %0 = tpu.iota {dimensions = array<i32: 1>} : vector<1x128xi32>
    %c32_i32 = arith.constant 32 : i32
    %1 = vector.broadcast %c32_i32 : i32 to vector<1x128xi32>
    %2 = arith.cmpi slt, %0, %1 : vector<1x128xi32>
    %3 = arith.extui %2 : vector<1x128xi1> to vector<1x128xi32>
    %4 = arith.sitofp %3 : vector<1x128xi32> to vector<1x128xf32>
    %c0 = arith.constant 0 : index
    %c0_0 = arith.constant 0 : index
    %5 = vector.load %arg3[%c0, %c0_0] : memref<16x32xbf16, #tpu.memory_space<vmem>>, vector<16x32xbf16>
    %c0_1 = arith.constant 0 : index
    %c0_2 = arith.constant 0 : index
    %6 = vector.load %arg4[%c0_1, %c0_2] : memref<32x16xbf16, #tpu.memory_space<vmem>>, vector<32x16xbf16>
    %c0_3 = arith.constant 0 : index
    %c0_4 = arith.constant 0 : index
    %7 = vector.load %arg17[%c0_3, %c0_4] : memref<1x128xf32, #tpu.memory_space<vmem>>, vector<1x128xf32>
    %c0_5 = arith.constant 0 : index
    %c0_6 = arith.constant 0 : index
    %8 = vector.load %arg18[%c0_5, %c0_6] : memref<1x128xf32, #tpu.memory_space<vmem>>, vector<1x128xf32>
    %c0_7 = arith.constant 0 : index
    %c0_8 = arith.constant 0 : index
    %9 = vector.load %arg19[%c0_7, %c0_8] : memref<1x128xf32, #tpu.memory_space<vmem>>, vector<1x128xf32>
    %c0_9 = arith.constant 0 : index
    %c0_10 = arith.constant 0 : index
    %10 = vector.load %arg20[%c0_9, %c0_10] : memref<1x128xf32, #tpu.memory_space<vmem>>, vector<1x128xf32>
    %c0_11 = arith.constant 0 : index
    %c0_12 = arith.constant 0 : index
    %11 = vector.load %arg1[%c0_11, %c0_12] : memref<16x128xbf16, #tpu.memory_space<vmem>>, vector<16x128xbf16>
    %c0_13 = arith.constant 0 : index
    %c0_14 = arith.constant 0 : index
    %12 = vector.load %arg5[%c0_13, %c0_14] : memref<128x128xbf16, #tpu.memory_space<vmem>>, vector<128x128xbf16>
    %cst = arith.constant dense<0.000000e+00> : vector<16x128xf32>
    %13 = tpu.matmul %11, %12, %cst {dimension_numbers = #tpu.dot_dimension_numbers<[1], [0], [0], [1], [0, 0, 1, 1], [], []>} : vector<16x128xbf16>, vector<128x128xbf16>, vector<16x128xf32> -> vector<16x128xf32>
    %c0_15 = arith.constant 0 : index
    %c0_16 = arith.constant 0 : index
    %14 = vector.load %arg6[%c0_15, %c0_16] : memref<1x128xf32, #tpu.memory_space<vmem>>, vector<1x128xf32>
    %15 = vector.broadcast %14 : vector<1x128xf32> to vector<16x128xf32>
    %16 = arith.addf %13, %15 : vector<16x128xf32>
    %c0_17 = arith.constant 0 : index
    %c0_18 = arith.constant 0 : index
    %17 = vector.load %arg31[%c0_17, %c0_18] : memref<16x128xf32, #tpu.memory_space<vmem>>, vector<16x128xf32>
    tpu.vector_store %arg31[%c0_17, %c0_18], %16 {strides = array<i32>} : memref<16x128xf32, #tpu.memory_space<vmem>>, vector<16x128xf32>,
    %c0_19 = arith.constant 0 : index
    %c0_20 = arith.constant 0 : index
    %18 = vector.load %arg2[%c0_19, %c0_20] : memref<32x128xbf16, #tpu.memory_space<vmem>>, vector<32x128xbf16>
    %c0_21 = arith.constant 0 : index
    %c0_22 = arith.constant 0 : index
    %19 = vector.load %arg7[%c0_21, %c0_22] : memref<128x128xbf16, #tpu.memory_space<vmem>>, vector<128x128xbf16>
    %cst_23 = arith.constant dense<0.000000e+00> : vector<32x128xf32>
    %20 = tpu.matmul %18, %19, %cst_23 {dimension_numbers = #tpu.dot_dimension_numbers<[1], [0], [0], [1], [0, 0, 1, 1], [], []>} : vector<32x128xbf16>, vector<128x128xbf16>, vector<32x128xf32> -> vector<32x128xf32>
    %c0_24 = arith.constant 0 : index
    %c0_25 = arith.constant 0 : index
    %21 = vector.load %arg8[%c0_24, %c0_25] : memref<1x128xf32, #tpu.memory_space<vmem>>, vector<1x128xf32>
    %22 = vector.broadcast %21 : vector<1x128xf32> to vector<32x128xf32>
    %23 = arith.addf %20, %22 : vector<32x128xf32>
    %c0_26 = arith.constant 0 : index
    %c0_27 = arith.constant 0 : index
    %24 = vector.load %arg32[%c0_26, %c0_27] : memref<32x128xf32, #tpu.memory_space<vmem>>, vector<32x128xf32>
    tpu.vector_store %arg32[%c0_26, %c0_27], %23 {strides = array<i32>} : memref<32x128xf32, #tpu.memory_space<vmem>>, vector<32x128xf32>,
    %c0_28 = arith.constant 0 : index
    %c0_29 = arith.constant 0 : index
    %25 = vector.load %arg31[%c0_28, %c0_29] : memref<16x128xf32, #tpu.memory_space<vmem>>, vector<16x128xf32>
    %c0_30 = arith.constant 0 : index
    %c0_31 = arith.constant 0 : index
    %26 = vector.load %arg32[%c0_30, %c0_31] : memref<32x128xf32, #tpu.memory_space<vmem>>, vector<32x128xf32>
    %27 = arith.truncf %25 : vector<16x128xf32> to vector<16x128xbf16>
    %28 = arith.truncf %26 : vector<32x128xf32> to vector<32x128xbf16>
    %cst_32 = arith.constant dense<0.000000e+00> : vector<16x128xf32>
    %29 = tpu.matmul %5, %28, %cst_32 {dimension_numbers = #tpu.dot_dimension_numbers<[1], [0], [0], [1], [0, 0, 1, 1], [], []>} : vector<16x32xbf16>, vector<32x128xbf16>, vector<16x128xf32> -> vector<16x128xf32>
    %30 = arith.truncf %29 : vector<16x128xf32> to vector<16x128xbf16>
    %31 = tpu.concatenate %27, %30 in 1 : vector<16x128xbf16>, vector<16x128xbf16> -> vector<16x256xbf16>
    %c0_33 = arith.constant 0 : index
    %c0_34 = arith.constant 0 : index
    %32 = vector.load %arg9[%c0_33, %c0_34] : memref<256x128xbf16, #tpu.memory_space<vmem>>, vector<256x128xbf16>
    %cst_35 = arith.constant dense<0.000000e+00> : vector<16x128xf32>
    %33 = tpu.matmul %31, %32, %cst_35 {dimension_numbers = #tpu.dot_dimension_numbers<[1], [0], [0], [1], [0, 0, 1, 1], [], []>} : vector<16x256xbf16>, vector<256x128xbf16>, vector<16x128xf32> -> vector<16x128xf32>
    %c0_36 = arith.constant 0 : index
    %c0_37 = arith.constant 0 : index
    %34 = vector.load %arg10[%c0_36, %c0_37] : memref<1x128xf32, #tpu.memory_space<vmem>>, vector<1x128xf32>
    %35 = vector.broadcast %34 : vector<1x128xf32> to vector<16x128xf32>
    %36 = arith.addf %33, %35 : vector<16x128xf32>
    %cst_38 = arith.constant dense<0.000000e+00> : vector<32x128xf32>
    %37 = tpu.matmul %6, %27, %cst_38 {dimension_numbers = #tpu.dot_dimension_numbers<[1], [0], [0], [1], [0, 0, 1, 1], [], []>} : vector<32x16xbf16>, vector<16x128xbf16>, vector<32x128xf32> -> vector<32x128xf32>
    %38 = arith.truncf %37 : vector<32x128xf32> to vector<32x128xbf16>
    %39 = tpu.concatenate %28, %38 in 1 : vector<32x128xbf16>, vector<32x128xbf16> -> vector<32x256xbf16>
    %c0_39 = arith.constant 0 : index
    %c0_40 = arith.constant 0 : index
    %40 = vector.load %arg11[%c0_39, %c0_40] : memref<256x128xbf16, #tpu.memory_space<vmem>>, vector<256x128xbf16>
    %cst_41 = arith.constant dense<0.000000e+00> : vector<32x128xf32>
    %41 = tpu.matmul %39, %40, %cst_41 {dimension_numbers = #tpu.dot_dimension_numbers<[1], [0], [0], [1], [0, 0, 1, 1], [], []>} : vector<32x256xbf16>, vector<256x128xbf16>, vector<32x128xf32> -> vector<32x128xf32>
    %c0_42 = arith.constant 0 : index
    %c0_43 = arith.constant 0 : index
    %42 = vector.load %arg12[%c0_42, %c0_43] : memref<1x128xf32, #tpu.memory_space<vmem>>, vector<1x128xf32>
    %43 = vector.broadcast %42 : vector<1x128xf32> to vector<32x128xf32>
    %44 = arith.addf %41, %43 : vector<32x128xf32>
    %cst_44 = arith.constant 0.000000e+00 : f32
    %45 = vector.broadcast %cst_44 : f32 to vector<16x128xf32>
    %46 = arith.maximumf %36, %45 : vector<16x128xf32>
    %47 = arith.addf %46, %25 : vector<16x128xf32>
    %cst_45 = arith.constant dense<0.000000e+00> : vector<16xf32>
    %48 = vector.multi_reduction <add>, %47, %cst_45 [1] : vector<16x128xf32> to vector<16xf32>
    %49 = vector.shape_cast %48 : vector<16xf32> to vector<16x1xf32>
    %cst_46 = arith.constant 3.125000e-02 : f32
    %50 = vector.broadcast %cst_46 : f32 to vector<16x1xf32>
    %51 = arith.mulf %49, %50 : vector<16x1xf32>
    %52 = vector.broadcast %51 : vector<16x1xf32> to vector<16x128xf32>
    %53 = vector.broadcast %4 : vector<1x128xf32> to vector<16x128xf32>
    %54 = arith.mulf %52, %53 : vector<16x128xf32>
    %55 = arith.subf %47, %54 : vector<16x128xf32>
    %56 = arith.mulf %55, %55 : vector<16x128xf32>
    %cst_47 = arith.constant dense<0.000000e+00> : vector<16xf32>
    %57 = vector.multi_reduction <add>, %56, %cst_47 [1] : vector<16x128xf32> to vector<16xf32>
    %58 = vector.shape_cast %57 : vector<16xf32> to vector<16x1xf32>
    %cst_48 = arith.constant 3.125000e-02 : f32
    %59 = vector.broadcast %cst_48 : f32 to vector<16x1xf32>
    %60 = arith.mulf %58, %59 : vector<16x1xf32>
    %cst_49 = arith.constant 9.99999974E-6 : f32
    %61 = vector.broadcast %cst_49 : f32 to vector<16x1xf32>
    %62 = arith.addf %60, %61 : vector<16x1xf32>
    %63 = math.rsqrt %62 : vector<16x1xf32>
    %64 = vector.broadcast %63 : vector<16x1xf32> to vector<16x128xf32>
    %65 = arith.mulf %55, %64 : vector<16x128xf32>
    %66 = vector.broadcast %7 : vector<1x128xf32> to vector<16x128xf32>
    %67 = arith.mulf %65, %66 : vector<16x128xf32>
    %68 = vector.broadcast %8 : vector<1x128xf32> to vector<16x128xf32>
    %69 = arith.addf %67, %68 : vector<16x128xf32>
    %c0_50 = arith.constant 0 : index
    %c0_51 = arith.constant 0 : index
    %70 = vector.load %arg31[%c0_50, %c0_51] : memref<16x128xf32, #tpu.memory_space<vmem>>, vector<16x128xf32>
    tpu.vector_store %arg31[%c0_50, %c0_51], %69 {strides = array<i32>} : memref<16x128xf32, #tpu.memory_space<vmem>>, vector<16x128xf32>,
    %cst_52 = arith.constant 0.000000e+00 : f32
    %71 = vector.broadcast %cst_52 : f32 to vector<32x128xf32>
    %72 = arith.maximumf %44, %71 : vector<32x128xf32>
    %73 = arith.addf %72, %26 : vector<32x128xf32>
    %cst_53 = arith.constant dense<0.000000e+00> : vector<32xf32>
    %74 = vector.multi_reduction <add>, %73, %cst_53 [1] : vector<32x128xf32> to vector<32xf32>
    %75 = vector.shape_cast %74 : vector<32xf32> to vector<32x1xf32>
    %cst_54 = arith.constant 3.125000e-02 : f32
    %76 = vector.broadcast %cst_54 : f32 to vector<32x1xf32>
    %77 = arith.mulf %75, %76 : vector<32x1xf32>
    %78 = vector.broadcast %77 : vector<32x1xf32> to vector<32x128xf32>
    %79 = vector.broadcast %4 : vector<1x128xf32> to vector<32x128xf32>
    %80 = arith.mulf %78, %79 : vector<32x128xf32>
    %81 = arith.subf %73, %80 : vector<32x128xf32>
    %82 = arith.mulf %81, %81 : vector<32x128xf32>
    %cst_55 = arith.constant dense<0.000000e+00> : vector<32xf32>
    %83 = vector.multi_reduction <add>, %82, %cst_55 [1] : vector<32x128xf32> to vector<32xf32>
    %84 = vector.shape_cast %83 : vector<32xf32> to vector<32x1xf32>
    %cst_56 = arith.constant 3.125000e-02 : f32
    %85 = vector.broadcast %cst_56 : f32 to vector<32x1xf32>
    %86 = arith.mulf %84, %85 : vector<32x1xf32>
    %cst_57 = arith.constant 9.99999974E-6 : f32
    %87 = vector.broadcast %cst_57 : f32 to vector<32x1xf32>
    %88 = arith.addf %86, %87 : vector<32x1xf32>
    %89 = math.rsqrt %88 : vector<32x1xf32>
    %90 = vector.broadcast %89 : vector<32x1xf32> to vector<32x128xf32>
    %91 = arith.mulf %81, %90 : vector<32x128xf32>
    %92 = vector.broadcast %9 : vector<1x128xf32> to vector<32x128xf32>
    %93 = arith.mulf %91, %92 : vector<32x128xf32>
    %94 = vector.broadcast %10 : vector<1x128xf32> to vector<32x128xf32>
    %95 = arith.addf %93, %94 : vector<32x128xf32>
    %c0_58 = arith.constant 0 : index
    %c0_59 = arith.constant 0 : index
    %96 = vector.load %arg32[%c0_58, %c0_59] : memref<32x128xf32, #tpu.memory_space<vmem>>, vector<32x128xf32>
    tpu.vector_store %arg32[%c0_58, %c0_59], %95 {strides = array<i32>} : memref<32x128xf32, #tpu.memory_space<vmem>>, vector<32x128xf32>,
    %c0_60 = arith.constant 0 : index
    %c0_61 = arith.constant 0 : index
    %97 = vector.load %arg31[%c0_60, %c0_61] : memref<16x128xf32, #tpu.memory_space<vmem>>, vector<16x128xf32>
    %c0_62 = arith.constant 0 : index
    %c0_63 = arith.constant 0 : index
    %98 = vector.load %arg32[%c0_62, %c0_63] : memref<32x128xf32, #tpu.memory_space<vmem>>, vector<32x128xf32>
    %99 = arith.truncf %97 : vector<16x128xf32> to vector<16x128xbf16>
    %100 = arith.truncf %98 : vector<32x128xf32> to vector<32x128xbf16>
    %cst_64 = arith.constant dense<0.000000e+00> : vector<16x128xf32>
    %101 = tpu.matmul %5, %100, %cst_64 {dimension_numbers = #tpu.dot_dimension_numbers<[1], [0], [0], [1], [0, 0, 1, 1], [], []>} : vector<16x32xbf16>, vector<32x128xbf16>, vector<16x128xf32> -> vector<16x128xf32>
    %102 = arith.truncf %101 : vector<16x128xf32> to vector<16x128xbf16>
    %103 = tpu.concatenate %99, %102 in 1 : vector<16x128xbf16>, vector<16x128xbf16> -> vector<16x256xbf16>
    %c0_65 = arith.constant 0 : index
    %c0_66 = arith.constant 0 : index
    %104 = vector.load %arg13[%c0_65, %c0_66] : memref<256x128xbf16, #tpu.memory_space<vmem>>, vector<256x128xbf16>
    %cst_67 = arith.constant dense<0.000000e+00> : vector<16x128xf32>
    %105 = tpu.matmul %103, %104, %cst_67 {dimension_numbers = #tpu.dot_dimension_numbers<[1], [0], [0], [1], [0, 0, 1, 1], [], []>} : vector<16x256xbf16>, vector<256x128xbf16>, vector<16x128xf32> -> vector<16x128xf32>
    %c0_68 = arith.constant 0 : index
    %c0_69 = arith.constant 0 : index
    %106 = vector.load %arg14[%c0_68, %c0_69] : memref<1x128xf32, #tpu.memory_space<vmem>>, vector<1x128xf32>
    %107 = vector.broadcast %106 : vector<1x128xf32> to vector<16x128xf32>
    %108 = arith.addf %105, %107 : vector<16x128xf32>
    %cst_70 = arith.constant dense<0.000000e+00> : vector<32x128xf32>
    %109 = tpu.matmul %6, %99, %cst_70 {dimension_numbers = #tpu.dot_dimension_numbers<[1], [0], [0], [1], [0, 0, 1, 1], [], []>} : vector<32x16xbf16>, vector<16x128xbf16>, vector<32x128xf32> -> vector<32x128xf32>
    %110 = arith.truncf %109 : vector<32x128xf32> to vector<32x128xbf16>
    %111 = tpu.concatenate %100, %110 in 1 : vector<32x128xbf16>, vector<32x128xbf16> -> vector<32x256xbf16>
    %c0_71 = arith.constant 0 : index
    %c0_72 = arith.constant 0 : index
    %112 = vector.load %arg15[%c0_71, %c0_72] : memref<256x128xbf16, #tpu.memory_space<vmem>>, vector<256x128xbf16>
    %cst_73 = arith.constant dense<0.000000e+00> : vector<32x128xf32>
    %113 = tpu.matmul %111, %112, %cst_73 {dimension_numbers = #tpu.dot_dimension_numbers<[1], [0], [0], [1], [0, 0, 1, 1], [], []>} : vector<32x256xbf16>, vector<256x128xbf16>, vector<32x128xf32> -> vector<32x128xf32>
    %c0_74 = arith.constant 0 : index
    %c0_75 = arith.constant 0 : index
    %114 = vector.load %arg16[%c0_74, %c0_75] : memref<1x128xf32, #tpu.memory_space<vmem>>, vector<1x128xf32>
    %115 = vector.broadcast %114 : vector<1x128xf32> to vector<32x128xf32>
    %116 = arith.addf %113, %115 : vector<32x128xf32>
    %cst_76 = arith.constant 0.000000e+00 : f32
    %117 = vector.broadcast %cst_76 : f32 to vector<16x128xf32>
    %118 = arith.maximumf %108, %117 : vector<16x128xf32>
    %119 = arith.addf %118, %97 : vector<16x128xf32>
    %cst_77 = arith.constant dense<0.000000e+00> : vector<16xf32>
    %120 = vector.multi_reduction <add>, %119, %cst_77 [1] : vector<16x128xf32> to vector<16xf32>
    %121 = vector.shape_cast %120 : vector<16xf32> to vector<16x1xf32>
    %cst_78 = arith.constant 3.125000e-02 : f32
    %122 = vector.broadcast %cst_78 : f32 to vector<16x1xf32>
    %123 = arith.mulf %121, %122 : vector<16x1xf32>
    %124 = vector.broadcast %123 : vector<16x1xf32> to vector<16x128xf32>
    %125 = vector.broadcast %4 : vector<1x128xf32> to vector<16x128xf32>
    %126 = arith.mulf %124, %125 : vector<16x128xf32>
    %127 = arith.subf %119, %126 : vector<16x128xf32>
    %128 = arith.mulf %127, %127 : vector<16x128xf32>
    %cst_79 = arith.constant dense<0.000000e+00> : vector<16xf32>
    %129 = vector.multi_reduction <add>, %128, %cst_79 [1] : vector<16x128xf32> to vector<16xf32>
    %130 = vector.shape_cast %129 : vector<16xf32> to vector<16x1xf32>
    %cst_80 = arith.constant 3.125000e-02 : f32
    %131 = vector.broadcast %cst_80 : f32 to vector<16x1xf32>
    %132 = arith.mulf %130, %131 : vector<16x1xf32>
    %cst_81 = arith.constant 9.99999974E-6 : f32
    %133 = vector.broadcast %cst_81 : f32 to vector<16x1xf32>
    %134 = arith.addf %132, %133 : vector<16x1xf32>
    %135 = math.rsqrt %134 : vector<16x1xf32>
    %136 = vector.broadcast %135 : vector<16x1xf32> to vector<16x128xf32>
    %137 = arith.mulf %127, %136 : vector<16x128xf32>
    %138 = vector.broadcast %7 : vector<1x128xf32> to vector<16x128xf32>
    %139 = arith.mulf %137, %138 : vector<16x128xf32>
    %140 = vector.broadcast %8 : vector<1x128xf32> to vector<16x128xf32>
    %141 = arith.addf %139, %140 : vector<16x128xf32>
    %c0_82 = arith.constant 0 : index
    %c0_83 = arith.constant 0 : index
    %142 = vector.load %arg31[%c0_82, %c0_83] : memref<16x128xf32, #tpu.memory_space<vmem>>, vector<16x128xf32>
    tpu.vector_store %arg31[%c0_82, %c0_83], %141 {strides = array<i32>} : memref<16x128xf32, #tpu.memory_space<vmem>>, vector<16x128xf32>,
    %cst_84 = arith.constant 0.000000e+00 : f32
    %143 = vector.broadcast %cst_84 : f32 to vector<32x128xf32>
    %144 = arith.maximumf %116, %143 : vector<32x128xf32>
    %145 = arith.addf %144, %98 : vector<32x128xf32>
    %cst_85 = arith.constant dense<0.000000e+00> : vector<32xf32>
    %146 = vector.multi_reduction <add>, %145, %cst_85 [1] : vector<32x128xf32> to vector<32xf32>
    %147 = vector.shape_cast %146 : vector<32xf32> to vector<32x1xf32>
    %cst_86 = arith.constant 3.125000e-02 : f32
    %148 = vector.broadcast %cst_86 : f32 to vector<32x1xf32>
    %149 = arith.mulf %147, %148 : vector<32x1xf32>
    %150 = vector.broadcast %149 : vector<32x1xf32> to vector<32x128xf32>
    %151 = vector.broadcast %4 : vector<1x128xf32> to vector<32x128xf32>
    %152 = arith.mulf %150, %151 : vector<32x128xf32>
    %153 = arith.subf %145, %152 : vector<32x128xf32>
    %154 = arith.mulf %153, %153 : vector<32x128xf32>
    %cst_87 = arith.constant dense<0.000000e+00> : vector<32xf32>
    %155 = vector.multi_reduction <add>, %154, %cst_87 [1] : vector<32x128xf32> to vector<32xf32>
    %156 = vector.shape_cast %155 : vector<32xf32> to vector<32x1xf32>
    %cst_88 = arith.constant 3.125000e-02 : f32
    %157 = vector.broadcast %cst_88 : f32 to vector<32x1xf32>
    %158 = arith.mulf %156, %157 : vector<32x1xf32>
    %cst_89 = arith.constant 9.99999974E-6 : f32
    %159 = vector.broadcast %cst_89 : f32 to vector<32x1xf32>
    %160 = arith.addf %158, %159 : vector<32x1xf32>
    %161 = math.rsqrt %160 : vector<32x1xf32>
    %162 = vector.broadcast %161 : vector<32x1xf32> to vector<32x128xf32>
    %163 = arith.mulf %153, %162 : vector<32x128xf32>
    %164 = vector.broadcast %9 : vector<1x128xf32> to vector<32x128xf32>
    %165 = arith.mulf %163, %164 : vector<32x128xf32>
    %166 = vector.broadcast %10 : vector<1x128xf32> to vector<32x128xf32>
    %167 = arith.addf %165, %166 : vector<32x128xf32>
    %c0_90 = arith.constant 0 : index
    %c0_91 = arith.constant 0 : index
    %168 = vector.load %arg32[%c0_90, %c0_91] : memref<32x128xf32, #tpu.memory_space<vmem>>, vector<32x128xf32>
    tpu.vector_store %arg32[%c0_90, %c0_91], %167 {strides = array<i32>} : memref<32x128xf32, #tpu.memory_space<vmem>>, vector<32x128xf32>,
    %c0_92 = arith.constant 0 : index
    %c0_93 = arith.constant 0 : index
    %169 = vector.load %arg31[%c0_92, %c0_93] : memref<16x128xf32, #tpu.memory_space<vmem>>, vector<16x128xf32>
    %170 = arith.truncf %169 : vector<16x128xf32> to vector<16x128xbf16>
    %c0_94 = arith.constant 0 : index
    %c0_95 = arith.constant 0 : index
    %171 = vector.load %arg21[%c0_94, %c0_95] : memref<128x128xbf16, #tpu.memory_space<vmem>>, vector<128x128xbf16>
    %cst_96 = arith.constant dense<0.000000e+00> : vector<16x128xf32>
    %172 = tpu.matmul %170, %171, %cst_96 {dimension_numbers = #tpu.dot_dimension_numbers<[1], [0], [0], [1], [0, 0, 1, 1], [], []>} : vector<16x128xbf16>, vector<128x128xbf16>, vector<16x128xf32> -> vector<16x128xf32>
    %c0_97 = arith.constant 0 : index
    %c0_98 = arith.constant 0 : index
    %173 = vector.load %arg22[%c0_97, %c0_98] : memref<1x128xf32, #tpu.memory_space<vmem>>, vector<1x128xf32>
    %174 = vector.broadcast %173 : vector<1x128xf32> to vector<16x128xf32>
    %175 = arith.addf %172, %174 : vector<16x128xf32>
    %cst_99 = arith.constant 0.000000e+00 : f32
    %176 = vector.broadcast %cst_99 : f32 to vector<16x128xf32>
    %177 = arith.maximumf %175, %176 : vector<16x128xf32>
    %178 = arith.truncf %177 : vector<16x128xf32> to vector<16x128xbf16>
    %c0_100 = arith.constant 0 : index
    %c0_101 = arith.constant 0 : index
    %179 = vector.load %arg23[%c0_100, %c0_101] : memref<128x128xbf16, #tpu.memory_space<vmem>>, vector<128x128xbf16>
    %cst_102 = arith.constant dense<0.000000e+00> : vector<16x128xf32>
    %180 = tpu.matmul %178, %179, %cst_102 {dimension_numbers = #tpu.dot_dimension_numbers<[1], [0], [0], [1], [0, 0, 1, 1], [], []>} : vector<16x128xbf16>, vector<128x128xbf16>, vector<16x128xf32> -> vector<16x128xf32>
    %c0_103 = arith.constant 0 : index
    %c0_104 = arith.constant 0 : index
    %181 = vector.load %arg24[%c0_103, %c0_104] : memref<1x128xf32, #tpu.memory_space<vmem>>, vector<1x128xf32>
    %182 = vector.broadcast %181 : vector<1x128xf32> to vector<16x128xf32>
    %183 = arith.addf %180, %182 : vector<16x128xf32>
    %184 = tpu.iota {dimensions = array<i32: 1>} : vector<16x128xi32>
    %c8_i32 = arith.constant 8 : i32
    %185 = vector.broadcast %c8_i32 : i32 to vector<16x128xi32>
    %186 = arith.cmpi slt, %184, %185 : vector<16x128xi32>
    %cst_105 = arith.constant -1.000000e+30 : f32
    %187 = vector.broadcast %cst_105 : f32 to vector<16x128xf32>
    %188 = arith.select %186, %183, %187 : vector<16x128xi1>, vector<16x128xf32>
    %cst_106 = arith.constant dense<0xFF800000> : vector<16xf32>
    %189 = vector.multi_reduction <maximumf>, %188, %cst_106 [1] : vector<16x128xf32> to vector<16xf32>
    %190 = vector.shape_cast %189 : vector<16xf32> to vector<16x1xf32>
    %191 = vector.broadcast %190 : vector<16x1xf32> to vector<16x128xf32>
    %192 = arith.subf %188, %191 : vector<16x128xf32>
    %193 = math.exp %192 : vector<16x128xf32>
    %cst_107 = arith.constant dense<0.000000e+00> : vector<16xf32>
    %194 = vector.multi_reduction <add>, %193, %cst_107 [1] : vector<16x128xf32> to vector<16xf32>
    %195 = vector.shape_cast %194 : vector<16xf32> to vector<16x1xf32>
    %196 = math.log %195 : vector<16x1xf32>
    %197 = vector.broadcast %190 : vector<16x1xf32> to vector<16x128xf32>
    %198 = arith.subf %183, %197 : vector<16x128xf32>
    %199 = vector.broadcast %196 : vector<16x1xf32> to vector<16x128xf32>
    %200 = arith.subf %198, %199 : vector<16x128xf32>
    %cst_108 = arith.constant 0.000000e+00 : f32
    %201 = vector.broadcast %cst_108 : f32 to vector<16x128xf32>
    %202 = arith.select %186, %200, %201 : vector<16x128xi1>, vector<16x128xf32>
    %c0_109 = arith.constant 0 : index
    %c0_110 = arith.constant 0 : index
    %203 = vector.load %arg29[%c0_109, %c0_110] : memref<16x128xf32, #tpu.memory_space<vmem>>, vector<16x128xf32>
    tpu.vector_store %arg29[%c0_109, %c0_110], %202 {strides = array<i32>} : memref<16x128xf32, #tpu.memory_space<vmem>>, vector<16x128xf32>,
    %c0_111 = arith.constant 0 : index
    %c0_112 = arith.constant 0 : index
    %204 = vector.load %arg32[%c0_111, %c0_112] : memref<32x128xf32, #tpu.memory_space<vmem>>, vector<32x128xf32>
    %205 = arith.truncf %204 : vector<32x128xf32> to vector<32x128xbf16>
    %c0_113 = arith.constant 0 : index
    %c0_114 = arith.constant 0 : index
    %206 = vector.load %arg25[%c0_113, %c0_114] : memref<128x128xbf16, #tpu.memory_space<vmem>>, vector<128x128xbf16>
    %cst_115 = arith.constant dense<0.000000e+00> : vector<32x128xf32>
    %207 = tpu.matmul %205, %206, %cst_115 {dimension_numbers = #tpu.dot_dimension_numbers<[1], [0], [0], [1], [0, 0, 1, 1], [], []>} : vector<32x128xbf16>, vector<128x128xbf16>, vector<32x128xf32> -> vector<32x128xf32>
    %c0_116 = arith.constant 0 : index
    %c0_117 = arith.constant 0 : index
    %208 = vector.load %arg26[%c0_116, %c0_117] : memref<1x128xf32, #tpu.memory_space<vmem>>, vector<1x128xf32>
    %209 = vector.broadcast %208 : vector<1x128xf32> to vector<32x128xf32>
    %210 = arith.addf %207, %209 : vector<32x128xf32>
    %cst_118 = arith.constant 0.000000e+00 : f32
    %211 = vector.broadcast %cst_118 : f32 to vector<32x128xf32>
    %212 = arith.maximumf %210, %211 : vector<32x128xf32>
    %213 = arith.truncf %212 : vector<32x128xf32> to vector<32x128xbf16>
    %c0_119 = arith.constant 0 : index
    %c0_120 = arith.constant 0 : index
    %214 = vector.load %arg27[%c0_119, %c0_120] : memref<128x128xbf16, #tpu.memory_space<vmem>>, vector<128x128xbf16>
    %cst_121 = arith.constant dense<0.000000e+00> : vector<32x128xf32>
    %215 = tpu.matmul %213, %214, %cst_121 {dimension_numbers = #tpu.dot_dimension_numbers<[1], [0], [0], [1], [0, 0, 1, 1], [], []>} : vector<32x128xbf16>, vector<128x128xbf16>, vector<32x128xf32> -> vector<32x128xf32>
    %c0_122 = arith.constant 0 : index
    %c0_123 = arith.constant 0 : index
    %216 = vector.load %arg28[%c0_122, %c0_123] : memref<1x128xf32, #tpu.memory_space<vmem>>, vector<1x128xf32>
    %217 = vector.broadcast %216 : vector<1x128xf32> to vector<32x128xf32>
    %218 = arith.addf %215, %217 : vector<32x128xf32>
    %c0_124 = arith.constant 0 : index
    %c0_125 = arith.constant 0 : index
    %219 = vector.load %arg30[%c0_124, %c0_125] : memref<32x128xf32, #tpu.memory_space<vmem>>, vector<32x128xf32>
    tpu.vector_store %arg30[%c0_124, %c0_125], %218 {strides = array<i32>} : memref<32x128xf32, #tpu.memory_space<vmem>>, vector<32x128xf32>,
    return
  }
  func.func @transform_0(%arg0: i32) -> (i32, i32) {
    %c0_i32 = arith.constant 0 : i32
    %c0_i32_0 = arith.constant 0 : i32
    %c0_i32_1 = arith.constant 0 : i32
    return %c0_i32, %c0_i32_0 : i32, i32
  }
  func.func @transform_1(%arg0: i32) -> (i32, i32) {
    %c0_i32 = arith.constant 0 : i32
    %c0_i32_0 = arith.constant 0 : i32
    %c0_i32_1 = arith.constant 0 : i32
    return %c0_i32, %c0_i32_0 : i32, i32
  }
  func.func @transform_2(%arg0: i32) -> (i32, i32) {
    %c0_i32 = arith.constant 0 : i32
    %c0_i32_0 = arith.constant 0 : i32
    %c0_i32_1 = arith.constant 0 : i32
    return %c0_i32, %c0_i32_0 : i32, i32
  }
  func.func @transform_3(%arg0: i32) -> (i32, i32) {
    %c0_i32 = arith.constant 0 : i32
    %c0_i32_0 = arith.constant 0 : i32
    %c0_i32_1 = arith.constant 0 : i32
    return %c0_i32, %c0_i32_0 : i32, i32
  }
  func.func @transform_4(%arg0: i32) -> (i32, i32) {
    %c0_i32 = arith.constant 0 : i32
    %c0_i32_0 = arith.constant 0 : i32
    %c0_i32_1 = arith.constant 0 : i32
    return %c0_i32, %c0_i32_0 : i32, i32
  }
  func.func @transform_5(%arg0: i32) -> (i32, i32) {
    %c0_i32 = arith.constant 0 : i32
    %c0_i32_0 = arith.constant 0 : i32
    %c0_i32_1 = arith.constant 0 : i32
    return %c0_i32, %c0_i32_0 : i32, i32
  }
  func.func @transform_6(%arg0: i32) -> (i32, i32) {
    %c0_i32 = arith.constant 0 : i32
    %c0_i32_0 = arith.constant 0 : i32
    %c0_i32_1 = arith.constant 0 : i32
    return %c0_i32, %c0_i32_0 : i32, i32
  }
  func.func @transform_7(%arg0: i32) -> (i32, i32) {
    %c0_i32 = arith.constant 0 : i32
    %c0_i32_0 = arith.constant 0 : i32
    %c0_i32_1 = arith.constant 0 : i32
    return %c0_i32, %c0_i32_0 : i32, i32
  }
  func.func @transform_8(%arg0: i32) -> (i32, i32) {
    %c0_i32 = arith.constant 0 : i32
    %c0_i32_0 = arith.constant 0 : i32
    %c0_i32_1 = arith.constant 0 : i32
    return %c0_i32, %c0_i32_0 : i32, i32
  }
  func.func @transform_9(%arg0: i32) -> (i32, i32) {
    %c0_i32 = arith.constant 0 : i32
    %c0_i32_0 = arith.constant 0 : i32
    %c0_i32_1 = arith.constant 0 : i32
    return %c0_i32, %c0_i32_0 : i32, i32
  }
  func.func @transform_10(%arg0: i32) -> (i32, i32) {
    %c0_i32 = arith.constant 0 : i32
    %c0_i32_0 = arith.constant 0 : i32
    %c0_i32_1 = arith.constant 0 : i32
    return %c0_i32, %c0_i32_0 : i32, i32
  }
  func.func @transform_11(%arg0: i32) -> (i32, i32) {
    %c0_i32 = arith.constant 0 : i32
    %c0_i32_0 = arith.constant 0 : i32
    %c0_i32_1 = arith.constant 0 : i32
    return %c0_i32, %c0_i32_0 : i32, i32
  }
  func.func @transform_12(%arg0: i32) -> (i32, i32) {
    %c0_i32 = arith.constant 0 : i32
    %c0_i32_0 = arith.constant 0 : i32
    %c0_i32_1 = arith.constant 0 : i32
    return %c0_i32, %c0_i32_0 : i32, i32
  }
  func.func @transform_13(%arg0: i32) -> (i32, i32) {
    %c0_i32 = arith.constant 0 : i32
    %c0_i32_0 = arith.constant 0 : i32
    %c0_i32_1 = arith.constant 0 : i32
    return %c0_i32, %c0_i32_0 : i32, i32
  }
  func.func @transform_14(%arg0: i32) -> (i32, i32) {
    %c0_i32 = arith.constant 0 : i32
    %c0_i32_0 = arith.constant 0 : i32
    %c0_i32_1 = arith.constant 0 : i32
    return %c0_i32, %c0_i32_0 : i32, i32
  }
  func.func @transform_15(%arg0: i32) -> (i32, i32) {
    %c0_i32 = arith.constant 0 : i32
    %c0_i32_0 = arith.constant 0 : i32
    %c0_i32_1 = arith.constant 0 : i32
    return %c0_i32, %c0_i32_0 : i32, i32
  }
  func.func @transform_16(%arg0: i32) -> (i32, i32) {
    %c0_i32 = arith.constant 0 : i32
    %c0_i32_0 = arith.constant 0 : i32
    %c0_i32_1 = arith.constant 0 : i32
    return %c0_i32, %c0_i32_0 : i32, i32
  }
  func.func @transform_17(%arg0: i32) -> (i32, i32) {
    %c0_i32 = arith.constant 0 : i32
    %c0_i32_0 = arith.constant 0 : i32
    %c0_i32_1 = arith.constant 0 : i32
    return %c0_i32, %c0_i32_0 : i32, i32
  }
  func.func @transform_18(%arg0: i32) -> (i32, i32) {
    %c0_i32 = arith.constant 0 : i32
    %c0_i32_0 = arith.constant 0 : i32
    %c0_i32_1 = arith.constant 0 : i32
    return %c0_i32, %c0_i32_0 : i32, i32
  }
  func.func @transform_19(%arg0: i32) -> (i32, i32) {
    %c0_i32 = arith.constant 0 : i32
    %c0_i32_0 = arith.constant 0 : i32
    %c0_i32_1 = arith.constant 0 : i32
    return %c0_i32, %c0_i32_0 : i32, i32
  }
  func.func @transform_20(%arg0: i32) -> (i32, i32) {
    %c0_i32 = arith.constant 0 : i32
    %c0_i32_0 = arith.constant 0 : i32
    %c0_i32_1 = arith.constant 0 : i32
    return %c0_i32, %c0_i32_0 : i32, i32
  }
  func.func @transform_21(%arg0: i32) -> (i32, i32) {
    %c0_i32 = arith.constant 0 : i32
    %c0_i32_0 = arith.constant 0 : i32
    %c0_i32_1 = arith.constant 0 : i32
    return %c0_i32, %c0_i32_0 : i32, i32
  }
  func.func @transform_22(%arg0: i32) -> (i32, i32) {
    %c0_i32 = arith.constant 0 : i32
    %c0_i32_0 = arith.constant 0 : i32
    %c0_i32_1 = arith.constant 0 : i32
    return %c0_i32, %c0_i32_0 : i32, i32
  }
  func.func @transform_23(%arg0: i32) -> (i32, i32) {
    %c0_i32 = arith.constant 0 : i32
    %c0_i32_0 = arith.constant 0 : i32
    %c0_i32_1 = arith.constant 0 : i32
    return %c0_i32, %c0_i32_0 : i32, i32
  }
  func.func @transform_24(%arg0: i32) -> (i32, i32) {
    %c0_i32 = arith.constant 0 : i32
    %c0_i32_0 = arith.constant 0 : i32
    %c0_i32_1 = arith.constant 0 : i32
    return %c0_i32, %c0_i32_0 : i32, i32
  }
  func.func @transform_25(%arg0: i32) -> (i32, i32) {
    %c0_i32 = arith.constant 0 : i32
    %c0_i32_0 = arith.constant 0 : i32
    %c0_i32_1 = arith.constant 0 : i32
    return %c0_i32, %c0_i32_0 : i32, i32
  }
  func.func @transform_26(%arg0: i32) -> (i32, i32) {
    %c0_i32 = arith.constant 0 : i32
    %c0_i32_0 = arith.constant 0 : i32
    %c0_i32_1 = arith.constant 0 : i32
    return %c0_i32, %c0_i32_0 : i32, i32
  }
  func.func @transform_27(%arg0: i32) -> (i32, i32) {
    %c0_i32 = arith.constant 0 : i32
    %c0_i32_0 = arith.constant 0 : i32
    %c0_i32_1 = arith.constant 0 : i32
    return %c0_i32, %c0_i32_0 : i32, i32
  }
  func.func @transform_28(%arg0: i32) -> (i32, i32) {
    %c0_i32 = arith.constant 0 : i32
    %c0_i32_0 = arith.constant 0 : i32
    %c0_i32_1 = arith.constant 0 : i32
    return %c0_i32, %c0_i32_0 : i32, i32
  }
  func.func @transform_29(%arg0: i32) -> (i32, i32) {
    %c0_i32 = arith.constant 0 : i32
    %c0_i32_0 = arith.constant 0 : i32
    %c0_i32_1 = arith.constant 0 : i32
    return %c0_i32, %c0_i32_0 : i32, i32
  }
}

</mosaic_0001>

<llo_original>
// kernel: tpu_custom_call.1
$region0: #{tpu_custom_call.1}
  #allocation0 [shape = 'u32[]', space=smem, size = 0x4, offset = 0x4, fixed_abs, tag = 'smem constant byte address 0x4 - core index']
  #allocation1 [shape = 'u32[144,128]{1,0:T(1,128)}', space=vmem, size = 0x12000, scoped, tag = 'internal scratch']
  #allocation2 [shape = 'f32[16,128]{1,0:T(8,128)}', space=vmem, size = 0x2000, scoped, tag = 'scratch operand']
  #allocation3 [shape = 'f32[32,128]{1,0:T(8,128)}', space=vmem, size = 0x4000, scoped, tag = 'scratch operand']
  %s0 = inlined_call_operand.smem [shape: u32[30], index: -1, kind: input, shape index: {}]
  %s1 = sld [smem:[%s0]]
  %s2 = scalar_lea.smem %s0, 1
  %s3 = sld [smem:[%s2]]
  %s4 = scalar_lea.smem %s0, 2
  %s5 = sld [smem:[%s4]]
  %s6 = scalar_lea.smem %s0, 3
  %s7 = sld [smem:[%s6]]
  %s8 = scalar_lea.smem %s0, 4
  %s9 = sld [smem:[%s8]]
  %s10 = scalar_lea.smem %s0, 5
  %s11 = sld [smem:[%s10]]
  %s12 = scalar_lea.smem %s0, 6
  %s13 = sld [smem:[%s12]]
  %s14 = scalar_lea.smem %s0, 7
  %s15 = sld [smem:[%s14]]
  %s16 = scalar_lea.smem %s0, 8
  %s17 = sld [smem:[%s16]]
  %s18 = scalar_lea.smem %s0, 9
  %s19 = sld [smem:[%s18]]
  %s20 = scalar_lea.smem %s0, 10
  %s21 = sld [smem:[%s20]]
  %s22 = scalar_lea.smem %s0, 11
  %s23 = sld [smem:[%s22]]
  %s24 = scalar_lea.smem %s0, 12
  %s25 = sld [smem:[%s24]]
  %s26 = scalar_lea.smem %s0, 13
  %s27 = sld [smem:[%s26]]
  %s28 = scalar_lea.smem %s0, 14
  %s29 = sld [smem:[%s28]]
  %s30 = scalar_lea.smem %s0, 15
  %s31 = sld [smem:[%s30]]
  %s32 = scalar_lea.smem %s0, 16
  %s33 = sld [smem:[%s32]]
  %s34 = scalar_lea.smem %s0, 17
  %s35 = sld [smem:[%s34]]
  %s36 = scalar_lea.smem %s0, 18
  %s37 = sld [smem:[%s36]]
  %s38 = scalar_lea.smem %s0, 19
  %s39 = sld [smem:[%s38]]
  %s40 = scalar_lea.smem %s0, 20
  %s41 = sld [smem:[%s40]]
  %s42 = scalar_lea.smem %s0, 21
  %s43 = sld [smem:[%s42]]
  %s44 = scalar_lea.smem %s0, 22
  %s45 = sld [smem:[%s44]]
  %s46 = scalar_lea.smem %s0, 23
  %s47 = sld [smem:[%s46]]
  %s48 = scalar_lea.smem %s0, 24
  %s49 = sld [smem:[%s48]]
  %s50 = scalar_lea.smem %s0, 25
  %s51 = sld [smem:[%s50]]
  %s52 = scalar_lea.smem %s0, 26
  %s53 = sld [smem:[%s52]]
  %s54 = scalar_lea.smem %s0, 27
  %s55 = sld [smem:[%s54]]
  %s56 = scalar_lea.smem %s0, 28
  %s57 = sld [smem:[%s56]]
  %s58 = scalar_lea.smem %s0, 29
  %s59 = sld [smem:[%s58]]
  %60 = xla_tuple %s57, %s59
  %s61 = sld [smem:[#allocation0]]
  $region222: #{tpu_custom_call.1} parent=0
    _
  %s63 = ssub.s32 1, %s61
  %s64 = scalar_select 0, %s63, %s61
  $region1: #{tpu_custom_call.1} parent=0
    #allocation4 [shape = 'u8[4096]{0}', space=vmem, size = 0x1000, scoped, tag = 'input window, operand 0, single buffered']
    #allocation5 [shape = 's32[1]{0}', space=sflag, size = 0x4, scoped, tag = 'scoped memory for tpu_custom_call.1']
    #allocation6 [shape = 's32[1]{0}', space=sflag, size = 0x4, scoped, tag = 'scoped memory for tpu_custom_call.1']
    #allocation7 [shape = 'u8[8192]{0}', space=vmem, size = 0x2000, scoped, tag = 'input window, operand 1, single buffered']
    #allocation8 [shape = 's32[1]{0}', space=sflag, size = 0x4, scoped, tag = 'scoped memory for tpu_custom_call.1']
    #allocation9 [shape = 'u8[4096]{0}', space=vmem, size = 0x1000, scoped, tag = 'input window, operand 2, single buffered']
    #allocation10 [shape = 'u8[32768]{0}', space=vmem, size = 0x8000, scoped, tag = 'input window, operand 4, single buffered']
    #allocation11 [shape = 's32[1]{0}', space=sflag, size = 0x4, scoped, tag = 'scoped memory for tpu_custom_call.1']
    #allocation12 [shape = 'u8[512]{0}', space=vmem, size = 0x400, scoped, tag = 'input window, operand 5, single buffered']
    #allocation13 [shape = 'u8[32768]{0}', space=vmem, size = 0x8000, scoped, tag = 'input window, operand 6, single buffered']
    #allocation14 [shape = 's32[1]{0}', space=sflag, size = 0x4, scoped, tag = 'scoped memory for tpu_custom_call.1']
    #allocation15 [shape = 'u8[512]{0}', space=vmem, size = 0x400, scoped, tag = 'input window, operand 7, single buffered']
    #allocation16 [shape = 'u8[65536]{0}', space=vmem, size = 0x10000, scoped, tag = 'input window, operand 8, single buffered']
    #allocation17 [shape = 's32[1]{0}', space=sflag, size = 0x4, scoped, tag = 'scoped memory for tpu_custom_call.1']
    #allocation18 [shape = 'u8[512]{0}', space=vmem, size = 0x400, scoped, tag = 'input window, operand 9, single buffered']
    #allocation19 [shape = 'u8[65536]{0}', space=vmem, size = 0x10000, scoped, tag = 'input window, operand 10, single buffered']
    #allocation20 [shape = 's32[1]{0}', space=sflag, size = 0x4, scoped, tag = 'scoped memory for tpu_custom_call.1']
    #allocation21 [shape = 'u8[512]{0}', space=vmem, size = 0x400, scoped, tag = 'input window, operand 11, single buffered']
    #allocation22 [shape = 'u8[65536]{0}', space=vmem, size = 0x10000, scoped, tag = 'input window, operand 12, single buffered']
    #allocation23 [shape = 's32[1]{0}', space=sflag, size = 0x4, scoped, tag = 'scoped memory for tpu_custom_call.1']
    #allocation24 [shape = 'u8[512]{0}', space=vmem, size = 0x400, scoped, tag = 'input window, operand 13, single buffered']
    #allocation25 [shape = 'u8[65536]{0}', space=vmem, size = 0x10000, scoped, tag = 'input window, operand 14, single buffered']
    #allocation26 [shape = 's32[1]{0}', space=sflag, size = 0x4, scoped, tag = 'scoped memory for tpu_custom_call.1']
    #allocation27 [shape = 'u8[512]{0}', space=vmem, size = 0x400, scoped, tag = 'input window, operand 15, single buffered']
    #allocation28 [shape = 'u8[512]{0}', space=vmem, size = 0x400, scoped, tag = 'input window, operand 16, single buffered']
    #allocation29 [shape = 's32[1]{0}', space=sflag, size = 0x4, scoped, tag = 'scoped memory for tpu_custom_call.1']
    #allocation30 [shape = 'u8[512]{0}', space=vmem, size = 0x400, scoped, tag = 'input window, operand 17, single buffered']
    #allocation31 [shape = 'u8[512]{0}', space=vmem, size = 0x400, scoped, tag = 'input window, operand 18, single buffered']
    #allocation32 [shape = 's32[1]{0}', space=sflag, size = 0x4, scoped, tag = 'scoped memory for tpu_custom_call.1']
    #allocation33 [shape = 'u8[512]{0}', space=vmem, size = 0x400, scoped, tag = 'input window, operand 19, single buffered']
    #allocation34 [shape = 'u8[32768]{0}', space=vmem, size = 0x8000, scoped, tag = 'input window, operand 20, single buffered']
    #allocation35 [shape = 's32[1]{0}', space=sflag, size = 0x4, scoped, tag = 'scoped memory for tpu_custom_call.1']
    #allocation36 [shape = 'u8[512]{0}', space=vmem, size = 0x400, scoped, tag = 'input window, operand 21, single buffered']
    #allocation37 [shape = 'u8[32768]{0}', space=vmem, size = 0x8000, scoped, tag = 'input window, operand 24, single buffered']
    #allocation38 [shape = 's32[1]{0}', space=sflag, size = 0x4, scoped, tag = 'scoped memory for tpu_custom_call.1']
    #allocation39 [shape = 'u8[32768]{0}', space=vmem, size = 0x8000, scoped, tag = 'input window, operand 26, single buffered']
    #allocation40 [shape = 'u8[8192]{0}', space=vmem, size = 0x2000, scoped, tag = 'output window, operand 0, single buffered']
    #allocation41 [shape = 'u8[16384]{0}', space=vmem, size = 0x4000, scoped, tag = 'output window, operand 1, single buffered']
    #allocation42 [shape = 's32[1]{0}', space=sflag, size = 0x4, scoped, tag = 'scoped memory for tpu_custom_call.1']
    %65 = vsyncpa [#allocation5], 0
    %66 = vsyncpa [#allocation8], 0
    %67 = vsyncpa [#allocation11], 0
    %68 = vsyncpa [#allocation14], 0
    %69 = vsyncpa [#allocation17], 0
    %70 = vsyncpa [#allocation20], 0
    %71 = vsyncpa [#allocation23], 0
    %72 = vsyncpa [#allocation26], 0
    %73 = vsyncpa [#allocation29], 0
    %74 = vsyncpa [#allocation32], 0
    %75 = vsyncpa [#allocation35], 0
    %76 = vsyncpa [#allocation38], 0
    %77 = vsyncpa [#allocation6], 0
    %78 = vsyncpa [#allocation42], 0
    // Predicated region
    $region2: #{tpu_custom_call.1} parent=1 // pred_check
      _
    $region3: #{tpu_custom_call.1} parent=1 // pred_check_branch
      %80 = sbr.rel (0) target = $region5
    $region4: #{tpu_custom_call.1} parent=1 // pred_region
      %s82 = ssub.s32 128, 128
      %83 = vsyncadd [#allocation5], %s82
      %s84 = sshll.u32 [#allocation4], 4
      %s85 = int_to_ptr.vmem [resolvable:$true] %s84
      %90 = dma.hbm_to_vmem [thread:$0]  %s1, 128, %s85, [#allocation5], 64, 64, 4
    $region5: #{tpu_custom_call.1} parent=1 // pred_fallthru
      _
    // Predicated region
    $region6: #{tpu_custom_call.1} parent=1 // pred_check
      _
    $region7: #{tpu_custom_call.1} parent=1 // pred_check_branch
      %92 = sbr.rel (0) target = $region9
    $region8: #{tpu_custom_call.1} parent=1 // pred_region
      %s94 = ssub.s32 256, 256
      %95 = vsyncadd [#allocation8], %s94
      %s96 = sshll.u32 [#allocation7], 4
      %s97 = int_to_ptr.vmem [resolvable:$true] %s96
      %102 = dma.hbm_to_vmem [thread:$0]  %s3, 256, %s97, [#allocation8], 64, 64, 4
    $region9: #{tpu_custom_call.1} parent=1 // pred_fallthru
      _
    // Predicated region
    $region10: #{tpu_custom_call.1} parent=1 // pred_check
      _
    $region11: #{tpu_custom_call.1} parent=1 // pred_check_branch
      %104 = sbr.rel (0) target = $region13
    $region12: #{tpu_custom_call.1} parent=1 // pred_region
      %s106 = ssub.s32 128, 128
      %107 = vsyncadd [#allocation8], %s106
      %s108 = sshll.u32 [#allocation9], 4
      %s109 = int_to_ptr.vmem [resolvable:$true] %s108
      %114 = dma.hbm_to_vmem [thread:$0]  %s5, 128, %s109, [#allocation8], 64, 64, 4
    $region13: #{tpu_custom_call.1} parent=1 // pred_fallthru
      _
    // Predicated region
    $region14: #{tpu_custom_call.1} parent=1 // pred_check
      _
    $region15: #{tpu_custom_call.1} parent=1 // pred_check_branch
      %116 = sbr.rel (0) target = $region17
    $region16: #{tpu_custom_call.1} parent=1 // pred_region
      _
    $region17: #{tpu_custom_call.1} parent=1 // pred_fallthru
      _
    // Predicated region
    $region18: #{tpu_custom_call.1} parent=1 // pred_check
      _
    $region19: #{tpu_custom_call.1} parent=1 // pred_check_branch
      %118 = sbr.rel (0) target = $region21
    $region20: #{tpu_custom_call.1} parent=1 // pred_region
      %s120 = ssub.s32 1024, 1024
      %121 = vsyncadd [#allocation11], %s120
      %s122 = sshll.u32 [#allocation10], 4
      %s123 = int_to_ptr.vmem [resolvable:$true] %s122
      %128 = dma.hbm_to_vmem [thread:$0]  %s9, 1024, %s123, [#allocation11], 64, 64, 4
    $region21: #{tpu_custom_call.1} parent=1 // pred_fallthru
      _
    // Predicated region
    $region22: #{tpu_custom_call.1} parent=1 // pred_check
      _
    $region23: #{tpu_custom_call.1} parent=1 // pred_check_branch
      %130 = sbr.rel (0) target = $region25
    $region24: #{tpu_custom_call.1} parent=1 // pred_region
      %s132 = ssub.s32 16, 16
      %133 = vsyncadd [#allocation11], %s132
      %s135 = sshll.u32 [#allocation12], 4
      %s136 = int_to_ptr.vmem [resolvable:$true] %s135
      %138 = dma.hbm_to_vmem [thread:$0]  %s11, 16, %s136, [#allocation11]
    $region25: #{tpu_custom_call.1} parent=1 // pred_fallthru
      _
    // Predicated region
    $region26: #{tpu_custom_call.1} parent=1 // pred_check
      _
    $region27: #{tpu_custom_call.1} parent=1 // pred_check_branch
      %140 = sbr.rel (0) target = $region29
    $region28: #{tpu_custom_call.1} parent=1 // pred_region
      %s142 = ssub.s32 1024, 1024
      %143 = vsyncadd [#allocation14], %s142
      %s144 = sshll.u32 [#allocation13], 4
      %s145 = int_to_ptr.vmem [resolvable:$true] %s144
      %150 = dma.hbm_to_vmem [thread:$0]  %s13, 1024, %s145, [#allocation14], 64, 64, 4
    $region29: #{tpu_custom_call.1} parent=1 // pred_fallthru
      _
    // Predicated region
    $region30: #{tpu_custom_call.1} parent=1 // pred_check
      _
    $region31: #{tpu_custom_call.1} parent=1 // pred_check_branch
      %152 = sbr.rel (0) target = $region33
    $region32: #{tpu_custom_call.1} parent=1 // pred_region
      %s154 = ssub.s32 16, 16
      %155 = vsyncadd [#allocation14], %s154
      %s157 = sshll.u32 [#allocation15], 4
      %s158 = int_to_ptr.vmem [resolvable:$true] %s157
      %160 = dma.hbm_to_vmem [thread:$0]  %s15, 16, %s158, [#allocation14]
    $region33: #{tpu_custom_call.1} parent=1 // pred_fallthru
      _
    // Predicated region
    $region34: #{tpu_custom_call.1} parent=1 // pred_check
      _
    $region35: #{tpu_custom_call.1} parent=1 // pred_check_branch
      %162 = sbr.rel (0) target = $region37
    $region36: #{tpu_custom_call.1} parent=1 // pred_region
      %s164 = ssub.s32 2048, 2048
      %165 = vsyncadd [#allocation17], %s164
      %s166 = sshll.u32 [#allocation16], 4
      %s167 = int_to_ptr.vmem [resolvable:$true] %s166
      %172 = dma.hbm_to_vmem [thread:$0]  %s17, 2048, %s167, [#allocation17], 64, 64, 4
    $region37: #{tpu_custom_call.1} parent=1 // pred_fallthru
      _
    // Predicated region
    $region38: #{tpu_custom_call.1} parent=1 // pred_check
      _
    $region39: #{tpu_custom_call.1} parent=1 // pred_check_branch
      %174 = sbr.rel (0) target = $region41
    $region40: #{tpu_custom_call.1} parent=1 // pred_region
      %s176 = ssub.s32 16, 16
      %177 = vsyncadd [#allocation17], %s176
      %s179 = sshll.u32 [#allocation18], 4
      %s180 = int_to_ptr.vmem [resolvable:$true] %s179
      %182 = dma.hbm_to_vmem [thread:$0]  %s19, 16, %s180, [#allocation17]
    $region41: #{tpu_custom_call.1} parent=1 // pred_fallthru
      _
    // Predicated region
    $region42: #{tpu_custom_call.1} parent=1 // pred_check
      _
    $region43: #{tpu_custom_call.1} parent=1 // pred_check_branch
      %184 = sbr.rel (0) target = $region45
    $region44: #{tpu_custom_call.1} parent=1 // pred_region
      %s186 = ssub.s32 2048, 2048
      %187 = vsyncadd [#allocation20], %s186
      %s188 = sshll.u32 [#allocation19], 4
      %s189 = int_to_ptr.vmem [resolvable:$true] %s188
      %194 = dma.hbm_to_vmem [thread:$0]  %s21, 2048, %s189, [#allocation20], 64, 64, 4
    $region45: #{tpu_custom_call.1} parent=1 // pred_fallthru
      _
    // Predicated region
    $region46: #{tpu_custom_call.1} parent=1 // pred_check
      _
    $region47: #{tpu_custom_call.1} parent=1 // pred_check_branch
      %196 = sbr.rel (0) target = $region49
    $region48: #{tpu_custom_call.1} parent=1 // pred_region
      %s198 = ssub.s32 16, 16
      %199 = vsyncadd [#allocation20], %s198
      %s201 = sshll.u32 [#allocation21], 4
      %s202 = int_to_ptr.vmem [resolvable:$true] %s201
      %204 = dma.hbm_to_vmem [thread:$0]  %s23, 16, %s202, [#allocation20]
    $region49: #{tpu_custom_call.1} parent=1 // pred_fallthru
      _
    // Predicated region
    $region50: #{tpu_custom_call.1} parent=1 // pred_check
      _
    $region51: #{tpu_custom_call.1} parent=1 // pred_check_branch
      %206 = sbr.rel (0) target = $region53
    $region52: #{tpu_custom_call.1} parent=1 // pred_region
      %s208 = ssub.s32 2048, 2048
      %209 = vsyncadd [#allocation23], %s208
      %s210 = sshll.u32 [#allocation22], 4
      %s211 = int_to_ptr.vmem [resolvable:$true] %s210
      %216 = dma.hbm_to_vmem [thread:$0]  %s25, 2048, %s211, [#allocation23], 64, 64, 4
    $region53: #{tpu_custom_call.1} parent=1 // pred_fallthru
      _
    // Predicated region
    $region54: #{tpu_custom_call.1} parent=1 // pred_check
      _
    $region55: #{tpu_custom_call.1} parent=1 // pred_check_branch
      %218 = sbr.rel (0) target = $region57
    $region56: #{tpu_custom_call.1} parent=1 // pred_region
      %s220 = ssub.s32 16, 16
      %221 = vsyncadd [#allocation23], %s220
      %s223 = sshll.u32 [#allocation24], 4
      %s224 = int_to_ptr.vmem [resolvable:$true] %s223
      %226 = dma.hbm_to_vmem [thread:$0]  %s27, 16, %s224, [#allocation23]
    $region57: #{tpu_custom_call.1} parent=1 // pred_fallthru
      _
    // Predicated region
    $region58: #{tpu_custom_call.1} parent=1 // pred_check
      _
    $region59: #{tpu_custom_call.1} parent=1 // pred_check_branch
      %228 = sbr.rel (0) target = $region61
    $region60: #{tpu_custom_call.1} parent=1 // pred_region
      %s230 = ssub.s32 2048, 2048
      %231 = vsyncadd [#allocation26], %s230
      %s232 = sshll.u32 [#allocation25], 4
      %s233 = int_to_ptr.vmem [resolvable:$true] %s232
      %238 = dma.hbm_to_vmem [thread:$0]  %s29, 2048, %s233, [#allocation26], 64, 64, 4
    $region61: #{tpu_custom_call.1} parent=1 // pred_fallthru
      _
    // Predicated region
    $region62: #{tpu_custom_call.1} parent=1 // pred_check
      _
    $region63: #{tpu_custom_call.1} parent=1 // pred_check_branch
      %240 = sbr.rel (0) target = $region65
    $region64: #{tpu_custom_call.1} parent=1 // pred_region
      %s242 = ssub.s32 16, 16
      %243 = vsyncadd [#allocation26], %s242
      %s245 = sshll.u32 [#allocation27], 4
      %s246 = int_to_ptr.vmem [resolvable:$true] %s245
      %248 = dma.hbm_to_vmem [thread:$0]  %s31, 16, %s246, [#allocation26]
    $region65: #{tpu_custom_call.1} parent=1 // pred_fallthru
      _
    // Predicated region
    $region66: #{tpu_custom_call.1} parent=1 // pred_check
      _
    $region67: #{tpu_custom_call.1} parent=1 // pred_check_branch
      %250 = sbr.rel (0) target = $region69
    $region68: #{tpu_custom_call.1} parent=1 // pred_region
      %s252 = ssub.s32 16, 16
      %253 = vsyncadd [#allocation29], %s252
      %s255 = sshll.u32 [#allocation28], 4
      %s256 = int_to_ptr.vmem [resolvable:$true] %s255
      %258 = dma.hbm_to_vmem [thread:$0]  %s33, 16, %s256, [#allocation29]
    $region69: #{tpu_custom_call.1} parent=1 // pred_fallthru
      _
    // Predicated region
    $region70: #{tpu_custom_call.1} parent=1 // pred_check
      _
    $region71: #{tpu_custom_call.1} parent=1 // pred_check_branch
      %260 = sbr.rel (0) target = $region73
    $region72: #{tpu_custom_call.1} parent=1 // pred_region
      %s262 = ssub.s32 16, 16
      %263 = vsyncadd [#allocation29], %s262
      %s265 = sshll.u32 [#allocation30], 4
      %s266 = int_to_ptr.vmem [resolvable:$true] %s265
      %268 = dma.hbm_to_vmem [thread:$0]  %s35, 16, %s266, [#allocation29]
    $region73: #{tpu_custom_call.1} parent=1 // pred_fallthru
      _
    // Predicated region
    $region74: #{tpu_custom_call.1} parent=1 // pred_check
      _
    $region75: #{tpu_custom_call.1} parent=1 // pred_check_branch
      %270 = sbr.rel (0) target = $region77
    $region76: #{tpu_custom_call.1} parent=1 // pred_region
      %s272 = ssub.s32 16, 16
      %273 = vsyncadd [#allocation32], %s272
      %s275 = sshll.u32 [#allocation31], 4
      %s276 = int_to_ptr.vmem [resolvable:$true] %s275
      %278 = dma.hbm_to_vmem [thread:$0]  %s37, 16, %s276, [#allocation32]
    $region77: #{tpu_custom_call.1} parent=1 // pred_fallthru
      _
    // Predicated region
    $region78: #{tpu_custom_call.1} parent=1 // pred_check
      _
    $region79: #{tpu_custom_call.1} parent=1 // pred_check_branch
      %280 = sbr.rel (0) target = $region81
    $region80: #{tpu_custom_call.1} parent=1 // pred_region
      %s282 = ssub.s32 16, 16
      %283 = vsyncadd [#allocation32], %s282
      %s285 = sshll.u32 [#allocation33], 4
      %s286 = int_to_ptr.vmem [resolvable:$true] %s285
      %288 = dma.hbm_to_vmem [thread:$0]  %s39, 16, %s286, [#allocation32]
    $region81: #{tpu_custom_call.1} parent=1 // pred_fallthru
      _
    // Predicated region
    $region82: #{tpu_custom_call.1} parent=1 // pred_check
      _
    $region83: #{tpu_custom_call.1} parent=1 // pred_check_branch
      %290 = sbr.rel (0) target = $region85
    $region84: #{tpu_custom_call.1} parent=1 // pred_region
      %s292 = ssub.s32 1024, 1024
      %293 = vsyncadd [#allocation35], %s292
      %s294 = sshll.u32 [#allocation34], 4
      %s295 = int_to_ptr.vmem [resolvable:$true] %s294
      %300 = dma.hbm_to_vmem [thread:$0]  %s41, 1024, %s295, [#allocation35], 64, 64, 4
    $region85: #{tpu_custom_call.1} parent=1 // pred_fallthru
      _
    // Predicated region
    $region86: #{tpu_custom_call.1} parent=1 // pred_check
      _
    $region87: #{tpu_custom_call.1} parent=1 // pred_check_branch
      %302 = sbr.rel (0) target = $region89
    $region88: #{tpu_custom_call.1} parent=1 // pred_region
      %s304 = ssub.s32 16, 16
      %305 = vsyncadd [#allocation35], %s304
      %s307 = sshll.u32 [#allocation36], 4
      %s308 = int_to_ptr.vmem [resolvable:$true] %s307
      %310 = dma.hbm_to_vmem [thread:$0]  %s43, 16, %s308, [#allocation35]
    $region89: #{tpu_custom_call.1} parent=1 // pred_fallthru
      _
    // Predicated region
    $region90: #{tpu_custom_call.1} parent=1 // pred_check
      _
    $region91: #{tpu_custom_call.1} parent=1 // pred_check_branch
      %312 = sbr.rel (0) target = $region93
    $region92: #{tpu_custom_call.1} parent=1 // pred_region
      _
    $region93: #{tpu_custom_call.1} parent=1 // pred_fallthru
      _
    // Predicated region
    $region94: #{tpu_custom_call.1} parent=1 // pred_check
      _
    $region95: #{tpu_custom_call.1} parent=1 // pred_check_branch
      %314 = sbr.rel (0) target = $region97
    $region96: #{tpu_custom_call.1} parent=1 // pred_region
      _
    $region97: #{tpu_custom_call.1} parent=1 // pred_fallthru
      _
    // Predicated region
    $region98: #{tpu_custom_call.1} parent=1 // pred_check
      _
    $region99: #{tpu_custom_call.1} parent=1 // pred_check_branch
      %316 = sbr.rel (0) target = $region101
    $region100: #{tpu_custom_call.1} parent=1 // pred_region
      %s318 = ssub.s32 1024, 1024
      %319 = vsyncadd [#allocation38], %s318
      %s320 = sshll.u32 [#allocation37], 4
      %s321 = int_to_ptr.vmem [resolvable:$true] %s320
      %326 = dma.hbm_to_vmem [thread:$0]  %s49, 1024, %s321, [#allocation38], 64, 64, 4
    $region101: #{tpu_custom_call.1} parent=1 // pred_fallthru
      _
    // Predicated region
    $region102: #{tpu_custom_call.1} parent=1 // pred_check
      _
    $region103: #{tpu_custom_call.1} parent=1 // pred_check_branch
      %328 = sbr.rel (0) target = $region105
    $region104: #{tpu_custom_call.1} parent=1 // pred_region
      _
    $region105: #{tpu_custom_call.1} parent=1 // pred_fallthru
      _
    // Predicated region
    $region106: #{tpu_custom_call.1} parent=1 // pred_check
      _
    $region107: #{tpu_custom_call.1} parent=1 // pred_check_branch
      %330 = sbr.rel (0) target = $region109
    $region108: #{tpu_custom_call.1} parent=1 // pred_region
      %s332 = ssub.s32 1024, 1024
      %333 = vsyncadd [#allocation38], %s332
      %s334 = sshll.u32 [#allocation39], 4
      %s335 = int_to_ptr.vmem [resolvable:$true] %s334
      %340 = dma.hbm_to_vmem [thread:$0]  %s53, 1024, %s335, [#allocation38], 64, 64, 4
    $region109: #{tpu_custom_call.1} parent=1 // pred_fallthru
      _
    // Predicated region
    $region110: #{tpu_custom_call.1} parent=1 // pred_check
      _
    $region111: #{tpu_custom_call.1} parent=1 // pred_check_branch
      %342 = sbr.rel (0) target = $region113
    $region112: #{tpu_custom_call.1} parent=1 // pred_region
      _
    $region113: #{tpu_custom_call.1} parent=1 // pred_fallthru
      _
    // Predicated region
    $region114: #{tpu_custom_call.1} parent=1 // pred_check
      _
    $region115: #{tpu_custom_call.1} parent=1 // pred_check_branch
      %344 = sbr.rel (0) target = $region117
    $region116: #{tpu_custom_call.1} parent=1 // pred_region
      %345 = dma.done [#allocation5], 128
    $region117: #{tpu_custom_call.1} parent=1 // pred_fallthru
      _
    // Predicated region
    $region118: #{tpu_custom_call.1} parent=1 // pred_check
      _
    $region119: #{tpu_custom_call.1} parent=1 // pred_check_branch
      %347 = sbr.rel (0) target = $region121
    $region120: #{tpu_custom_call.1} parent=1 // pred_region
      %348 = dma.done [#allocation8], 256
    $region121: #{tpu_custom_call.1} parent=1 // pred_fallthru
      _
    // Predicated region
    $region122: #{tpu_custom_call.1} parent=1 // pred_check
      _
    $region123: #{tpu_custom_call.1} parent=1 // pred_check_branch
      %350 = sbr.rel (0) target = $region125
    $region124: #{tpu_custom_call.1} parent=1 // pred_region
      %351 = dma.done [#allocation8], 128
    $region125: #{tpu_custom_call.1} parent=1 // pred_fallthru
      _
    // Predicated region
    $region126: #{tpu_custom_call.1} parent=1 // pred_check
      _
    $region127: #{tpu_custom_call.1} parent=1 // pred_check_branch
      %353 = sbr.rel (0) target = $region129
    $region128: #{tpu_custom_call.1} parent=1 // pred_region
      %354 = dma.done [#allocation11], 1024
    $region129: #{tpu_custom_call.1} parent=1 // pred_fallthru
      _
    // Predicated region
    $region130: #{tpu_custom_call.1} parent=1 // pred_check
      _
    $region131: #{tpu_custom_call.1} parent=1 // pred_check_branch
      %356 = sbr.rel (0) target = $region133
    $region132: #{tpu_custom_call.1} parent=1 // pred_region
      %357 = dma.done [#allocation11], 16
    $region133: #{tpu_custom_call.1} parent=1 // pred_fallthru
      _
    // Predicated region
    $region134: #{tpu_custom_call.1} parent=1 // pred_check
      _
    $region135: #{tpu_custom_call.1} parent=1 // pred_check_branch
      %359 = sbr.rel (0) target = $region137
    $region136: #{tpu_custom_call.1} parent=1 // pred_region
      %360 = dma.done [#allocation14], 1024
    $region137: #{tpu_custom_call.1} parent=1 // pred_fallthru
      _
    // Predicated region
    $region138: #{tpu_custom_call.1} parent=1 // pred_check
      _
    $region139: #{tpu_custom_call.1} parent=1 // pred_check_branch
      %362 = sbr.rel (0) target = $region141
    $region140: #{tpu_custom_call.1} parent=1 // pred_region
      %363 = dma.done [#allocation14], 16
    $region141: #{tpu_custom_call.1} parent=1 // pred_fallthru
      _
    // Predicated region
    $region142: #{tpu_custom_call.1} parent=1 // pred_check
      _
    $region143: #{tpu_custom_call.1} parent=1 // pred_check_branch
      %365 = sbr.rel (0) target = $region145
    $region144: #{tpu_custom_call.1} parent=1 // pred_region
      %366 = dma.done [#allocation17], 2048
    $region145: #{tpu_custom_call.1} parent=1 // pred_fallthru
      _
    // Predicated region
    $region146: #{tpu_custom_call.1} parent=1 // pred_check
      _
    $region147: #{tpu_custom_call.1} parent=1 // pred_check_branch
      %368 = sbr.rel (0) target = $region149
    $region148: #{tpu_custom_call.1} parent=1 // pred_region
      %369 = dma.done [#allocation17], 16
    $region149: #{tpu_custom_call.1} parent=1 // pred_fallthru
      _
    // Predicated region
    $region150: #{tpu_custom_call.1} parent=1 // pred_check
      _
    $region151: #{tpu_custom_call.1} parent=1 // pred_check_branch
      %371 = sbr.rel (0) target = $region153
    $region152: #{tpu_custom_call.1} parent=1 // pred_region
      %372 = dma.done [#allocation20], 2048
    $region153: #{tpu_custom_call.1} parent=1 // pred_fallthru
      _
    // Predicated region
    $region154: #{tpu_custom_call.1} parent=1 // pred_check
      _
    $region155: #{tpu_custom_call.1} parent=1 // pred_check_branch
      %374 = sbr.rel (0) target = $region157
    $region156: #{tpu_custom_call.1} parent=1 // pred_region
      %375 = dma.done [#allocation20], 16
    $region157: #{tpu_custom_call.1} parent=1 // pred_fallthru
      _
    // Predicated region
    $region158: #{tpu_custom_call.1} parent=1 // pred_check
      _
    $region159: #{tpu_custom_call.1} parent=1 // pred_check_branch
      %377 = sbr.rel (0) target = $region161
    $region160: #{tpu_custom_call.1} parent=1 // pred_region
      %378 = dma.done [#allocation23], 2048
    $region161: #{tpu_custom_call.1} parent=1 // pred_fallthru
      _
    // Predicated region
    $region162: #{tpu_custom_call.1} parent=1 // pred_check
      _
    $region163: #{tpu_custom_call.1} parent=1 // pred_check_branch
      %380 = sbr.rel (0) target = $region165
    $region164: #{tpu_custom_call.1} parent=1 // pred_region
      %381 = dma.done [#allocation23], 16
    $region165: #{tpu_custom_call.1} parent=1 // pred_fallthru
      _
    // Predicated region
    $region166: #{tpu_custom_call.1} parent=1 // pred_check
      _
    $region167: #{tpu_custom_call.1} parent=1 // pred_check_branch
      %383 = sbr.rel (0) target = $region169
    $region168: #{tpu_custom_call.1} parent=1 // pred_region
      %384 = dma.done [#allocation26], 2048
    $region169: #{tpu_custom_call.1} parent=1 // pred_fallthru
      _
    // Predicated region
    $region170: #{tpu_custom_call.1} parent=1 // pred_check
      _
    $region171: #{tpu_custom_call.1} parent=1 // pred_check_branch
      %386 = sbr.rel (0) target = $region173
    $region172: #{tpu_custom_call.1} parent=1 // pred_region
      %387 = dma.done [#allocation26], 16
    $region173: #{tpu_custom_call.1} parent=1 // pred_fallthru
      _
    // Predicated region
    $region174: #{tpu_custom_call.1} parent=1 // pred_check
      _
    $region175: #{tpu_custom_call.1} parent=1 // pred_check_branch
      %389 = sbr.rel (0) target = $region177
    $region176: #{tpu_custom_call.1} parent=1 // pred_region
      %390 = dma.done [#allocation29], 16
    $region177: #{tpu_custom_call.1} parent=1 // pred_fallthru
      _
    // Predicated region
    $region178: #{tpu_custom_call.1} parent=1 // pred_check
      _
    $region179: #{tpu_custom_call.1} parent=1 // pred_check_branch
      %392 = sbr.rel (0) target = $region181
    $region180: #{tpu_custom_call.1} parent=1 // pred_region
      %393 = dma.done [#allocation29], 16
    $region181: #{tpu_custom_call.1} parent=1 // pred_fallthru
      _
    // Predicated region
    $region182: #{tpu_custom_call.1} parent=1 // pred_check
      _
    $region183: #{tpu_custom_call.1} parent=1 // pred_check_branch
      %395 = sbr.rel (0) target = $region185
    $region184: #{tpu_custom_call.1} parent=1 // pred_region
      %396 = dma.done [#allocation32], 16
    $region185: #{tpu_custom_call.1} parent=1 // pred_fallthru
      _
    // Predicated region
    $region186: #{tpu_custom_call.1} parent=1 // pred_check
      _
    $region187: #{tpu_custom_call.1} parent=1 // pred_check_branch
      %398 = sbr.rel (0) target = $region189
    $region188: #{tpu_custom_call.1} parent=1 // pred_region
      %399 = dma.done [#allocation32], 16
    $region189: #{tpu_custom_call.1} parent=1 // pred_fallthru
      _
    // Predicated region
    $region190: #{tpu_custom_call.1} parent=1 // pred_check
      _
    $region191: #{tpu_custom_call.1} parent=1 // pred_check_branch
      %401 = sbr.rel (0) target = $region193
    $region192: #{tpu_custom_call.1} parent=1 // pred_region
      %402 = dma.done [#allocation35], 1024
    $region193: #{tpu_custom_call.1} parent=1 // pred_fallthru
      _
    // Predicated region
    $region194: #{tpu_custom_call.1} parent=1 // pred_check
      _
    $region195: #{tpu_custom_call.1} parent=1 // pred_check_branch
      %404 = sbr.rel (0) target = $region197
    $region196: #{tpu_custom_call.1} parent=1 // pred_region
      %405 = dma.done [#allocation35], 16
    $region197: #{tpu_custom_call.1} parent=1 // pred_fallthru
      _
    // Predicated region
    $region198: #{tpu_custom_call.1} parent=1 // pred_check
      _
    $region199: #{tpu_custom_call.1} parent=1 // pred_check_branch
      %407 = sbr.rel (0) target = $region201
    $region200: #{tpu_custom_call.1} parent=1 // pred_region
      %408 = dma.done [#allocation38], 1024
    $region201: #{tpu_custom_call.1} parent=1 // pred_fallthru
      _
    // Predicated region
    $region202: #{tpu_custom_call.1} parent=1 // pred_check
      _
    $region203: #{tpu_custom_call.1} parent=1 // pred_check_branch
      %410 = sbr.rel (0) target = $region205
    $region204: #{tpu_custom_call.1} parent=1 // pred_region
      %411 = dma.done [#allocation38], 1024
    $region205: #{tpu_custom_call.1} parent=1 // pred_fallthru
      _
    %v413 = vlaneseq
    %v414 = vand.u32 %v413, 127
    %vm415 = vcmp.lt.s32.totalorder %v414, 32
    %v416 = vsel %vm415, 1, 0
    %v417 = vcvt.s32.f32 %v416
    %v418 = vld [vmem:[#allocation9] sm:$0xf]
    %v419 = vld [vmem:[#allocation9 + $0x4] sm:$0xf]
    %v420 = vld [vmem:[%s7] sm:$0xf]
    %v421 = vld [vmem:[%s7 + $0x4] sm:$0xf]
    %v422 = vld [vmem:[%s7 + $0x8] sm:$0xf]
    %v423 = vld [vmem:[%s7 + $0xc] sm:$0xf]
    %v424 = vld [vmem:[#allocation28] sm:$0x1]
    %v425 = vld [vmem:[#allocation30] sm:$0x1]
    %v426 = vld [vmem:[#allocation31] sm:$0x1]
    %v427 = vld [vmem:[#allocation33] sm:$0x1]
    %v428 = vld [vmem:[#allocation4] sm:$0xf]
    %v429 = vld [vmem:[#allocation4 + $0x4] sm:$0xf]
    %v430 = vld [vmem:[#allocation10] sm:$0xf]
    %v431 = vld [vmem:[#allocation10 + $0x4] sm:$0xf]
    %v432 = vld [vmem:[#allocation10 + $0x8] sm:$0xf]
    %v433 = vld [vmem:[#allocation10 + $0xc] sm:$0xf]
    %v434 = vld [vmem:[#allocation10 + $0x10] sm:$0xf]
    %v435 = vld [vmem:[#allocation10 + $0x14] sm:$0xf]
    %v436 = vld [vmem:[#allocation10 + $0x18] sm:$0xf]
    %v437 = vld [vmem:[#allocation10 + $0x1c] sm:$0xf]
    %v438 = vld [vmem:[#allocation10 + $0x20] sm:$0xf]
    %v439 = vld [vmem:[#allocation10 + $0x24] sm:$0xf]
    %v440 = vld [vmem:[#allocation10 + $0x28] sm:$0xf]
    %v441 = vld [vmem:[#allocation10 + $0x2c] sm:$0xf]
    %v442 = vld [vmem:[#allocation10 + $0x30] sm:$0xf]
    %v443 = vld [vmem:[#allocation10 + $0x34] sm:$0xf]
    %v444 = vld [vmem:[#allocation10 + $0x38] sm:$0xf]
    %v445 = vld [vmem:[#allocation10 + $0x3c] sm:$0xf]
    %v446 = vld [vmem:[#allocation12] sm:$0x1]
    %v448 = vlaneseq
    %v449 = vshrl.u32 %v448, 7
    %v450 = vsub.s32 0, %v449
    %v451 = vrot.slane %v446, %v450
    %v455 = vunpack.c.l.b16 %v428
    %v456 = vunpack.c.l.b16 %v429
    %v457 = vpack.c.b16 %v456, %v455
    %v475 = vunpack.c.l.b16 %v430
    %v476 = vunpack.c.l.b16 %v431
    %v477 = vunpack.c.l.b16 %v432
    %v478 = vunpack.c.l.b16 %v433
    %v479 = vunpack.c.l.b16 %v434
    %v480 = vunpack.c.l.b16 %v435
    %v481 = vunpack.c.l.b16 %v436
    %v482 = vunpack.c.l.b16 %v437
    %v483 = vunpack.c.l.b16 %v438
    %v484 = vunpack.c.l.b16 %v439
    %v485 = vunpack.c.l.b16 %v440
    %v486 = vunpack.c.l.b16 %v441
    %v487 = vunpack.c.l.b16 %v442
    %v488 = vunpack.c.l.b16 %v443
    %v489 = vunpack.c.l.b16 %v444
    %v490 = vunpack.c.l.b16 %v445
    %v491 = vpack.c.b16 %v476, %v475
    %v492 = vpack.c.b16 %v478, %v477
    %v493 = vpack.c.b16 %v480, %v479
    %v494 = vpack.c.b16 %v482, %v481
    %v495 = vpack.c.b16 %v484, %v483
    %v496 = vpack.c.b16 %v486, %v485
    %v497 = vpack.c.b16 %v488, %v487
    %v498 = vpack.c.b16 %v490, %v489
    %507 = vmatprep.subr.bf16.mxu0 0
    %508 = vmatpush1.bf16.msra.mxu0 %v498
    %509 = vmatprep.subr.bf16.mxu0 0
    %510 = vmatpush1.bf16.msra.mxu0 %v497
    %511 = vmatprep.subr.bf16.mxu0 0
    %512 = vmatpush1.bf16.msra.mxu0 %v496
    %513 = vmatprep.subr.bf16.mxu0 0
    %514 = vmatpush1.bf16.msra.mxu0 %v495
    %515 = vmatprep.subr.bf16.mxu0 0
    %516 = vmatpush1.bf16.msra.mxu0 %v494
    %517 = vmatprep.subr.bf16.mxu0 0
    %518 = vmatpush1.bf16.msra.mxu0 %v493
    %519 = vmatprep.subr.bf16.mxu0 0
    %520 = vmatpush1.bf16.msra.mxu0 %v492
    %521 = vmatprep.subr.bf16.mxu0 0
    %522 = vmatpush1.bf16.msra.mxu0 %v491
    %523 = vmatprep.subr.bf16.mxu0 0
    %524 = vmatpush2.bf16.msra.mxu0 0
    %525 = vmatprep.subr.bf16.mxu0 0
    %526 = vmatpush2.bf16.msra.mxu0 0
    %527 = vmatprep.subr.bf16.mxu0 0
    %528 = vmatpush2.bf16.msra.mxu0 0
    %529 = vmatprep.subr.bf16.mxu0 0
    %530 = vmatpush2.bf16.msra.mxu0 0
    %531 = vmatprep.subr.bf16.mxu0 0
    %532 = vmatpush2.bf16.msra.mxu0 0
    %533 = vmatprep.subr.bf16.mxu0 0
    %534 = vmatpush2.bf16.msra.mxu0 0
    %535 = vmatprep.subr.bf16.mxu0 0
    %536 = vmatpush2.bf16.msra.mxu0 0
    %537 = vmatprep.subr.bf16.mxu0 0
    %538 = vmatpush2.bf16.msra.mxu0 0
    %539 = vmatprep.mubr.bf16.mxu0 0
    %540 = vmatmul.mubr.bf16.gmra.mxu0 %v457
    %v541 = vpop.f32.mrf.mxu0
    %v542 = vadd.f32 %v451, %v541
    %v543 = vpop.f32.mrf.mxu0
    %v544 = vpop.f32.mrf.mxu0
    %v545 = vadd.f32 %v451, %v544
    %v546 = vpop.f32.mrf.mxu0
    %547 = vdwg.mxu0
    %548 = vst [vmem:[#allocation2] sm:$0xff] %v542
    %549 = vst [vmem:[#allocation2 + $0x8] sm:$0xff] %v545
    %v550 = vld [vmem:[#allocation7] sm:$0xf]
    %v551 = vld [vmem:[#allocation7 + $0x4] sm:$0xf]
    %v552 = vld [vmem:[#allocation7 + $0x8] sm:$0xf]
    %v553 = vld [vmem:[#allocation7 + $0xc] sm:$0xf]
    %v554 = vld [vmem:[#allocation13] sm:$0xf]
    %v555 = vld [vmem:[#allocation13 + $0x4] sm:$0xf]
    %v556 = vld [vmem:[#allocation13 + $0x8] sm:$0xf]
    %v557 = vld [vmem:[#allocation13 + $0xc] sm:$0xf]
    %v558 = vld [vmem:[#allocation13 + $0x10] sm:$0xf]
    %v559 = vld [vmem:[#allocation13 + $0x14] sm:$0xf]
    %v560 = vld [vmem:[#allocation13 + $0x18] sm:$0xf]
    %v561 = vld [vmem:[#allocation13 + $0x1c] sm:$0xf]
    %v562 = vld [vmem:[#allocation13 + $0x20] sm:$0xf]
    %v563 = vld [vmem:[#allocation13 + $0x24] sm:$0xf]
    %v564 = vld [vmem:[#allocation13 + $0x28] sm:$0xf]
    %v565 = vld [vmem:[#allocation13 + $0x2c] sm:$0xf]
    %v566 = vld [vmem:[#allocation13 + $0x30] sm:$0xf]
    %v567 = vld [vmem:[#allocation13 + $0x34] sm:$0xf]
    %v568 = vld [vmem:[#allocation13 + $0x38] sm:$0xf]
    %v569 = vld [vmem:[#allocation13 + $0x3c] sm:$0xf]
    %v570 = vld [vmem:[#allocation15] sm:$0x1]
    %v572 = vlaneseq
    %v573 = vshrl.u32 %v572, 7
    %v574 = vsub.s32 0, %v573
    %v575 = vrot.slane %v570, %v574
    %v581 = vunpack.c.l.b16 %v550
    %v582 = vunpack.c.l.b16 %v551
    %v583 = vunpack.c.l.b16 %v552
    %v584 = vunpack.c.l.b16 %v553
    %v585 = vpack.c.b16 %v582, %v581
    %v586 = vpack.c.b16 %v584, %v583
    %v605 = vunpack.c.l.b16 %v554
    %v606 = vunpack.c.l.b16 %v555
    %v607 = vunpack.c.l.b16 %v556
    %v608 = vunpack.c.l.b16 %v557
    %v609 = vunpack.c.l.b16 %v558
    %v610 = vunpack.c.l.b16 %v559
    %v611 = vunpack.c.l.b16 %v560
    %v612 = vunpack.c.l.b16 %v561
    %v613 = vunpack.c.l.b16 %v562
    %v614 = vunpack.c.l.b16 %v563
    %v615 = vunpack.c.l.b16 %v564
    %v616 = vunpack.c.l.b16 %v565
    %v617 = vunpack.c.l.b16 %v566
    %v618 = vunpack.c.l.b16 %v567
    %v619 = vunpack.c.l.b16 %v568
    %v620 = vunpack.c.l.b16 %v569
    %v621 = vpack.c.b16 %v606, %v605
    %v622 = vpack.c.b16 %v608, %v607
    %v623 = vpack.c.b16 %v610, %v609
    %v624 = vpack.c.b16 %v612, %v611
    %v625 = vpack.c.b16 %v614, %v613
    %v626 = vpack.c.b16 %v616, %v615
    %v627 = vpack.c.b16 %v618, %v617
    %v628 = vpack.c.b16 %v620, %v619
    %637 = vmatprep.subr.bf16.mxu0 0
    %638 = vmatpush1.bf16.msra.mxu0 %v628
    %639 = vmatprep.subr.bf16.mxu0 0
    %640 = vmatpush1.bf16.msra.mxu0 %v627
    %641 = vmatprep.subr.bf16.mxu0 0
    %642 = vmatpush1.bf16.msra.mxu0 %v626
    %643 = vmatprep.subr.bf16.mxu0 0
    %644 = vmatpush1.bf16.msra.mxu0 %v625
    %645 = vmatprep.subr.bf16.mxu0 0
    %646 = vmatpush1.bf16.msra.mxu0 %v624
    %647 = vmatprep.subr.bf16.mxu0 0
    %648 = vmatpush1.bf16.msra.mxu0 %v623
    %649 = vmatprep.subr.bf16.mxu0 0
    %650 = vmatpush1.bf16.msra.mxu0 %v622
    %651 = vmatprep.subr.bf16.mxu0 0
    %652 = vmatpush1.bf16.msra.mxu0 %v621
    %653 = vmatprep.subr.bf16.mxu0 0
    %654 = vmatpush2.bf16.msra.mxu0 0
    %655 = vmatprep.subr.bf16.mxu0 0
    %656 = vmatpush2.bf16.msra.mxu0 0
    %657 = vmatprep.subr.bf16.mxu0 0
    %658 = vmatpush2.bf16.msra.mxu0 0
    %659 = vmatprep.subr.bf16.mxu0 0
    %660 = vmatpush2.bf16.msra.mxu0 0
    %661 = vmatprep.subr.bf16.mxu0 0
    %662 = vmatpush2.bf16.msra.mxu0 0
    %663 = vmatprep.subr.bf16.mxu0 0
    %664 = vmatpush2.bf16.msra.mxu0 0
    %665 = vmatprep.subr.bf16.mxu0 0
    %666 = vmatpush2.bf16.msra.mxu0 0
    %667 = vmatprep.subr.bf16.mxu0 0
    %668 = vmatpush2.bf16.msra.mxu0 0
    %669 = vmatprep.mubr.bf16.mxu0 0
    %670 = vmatmul.mubr.bf16.gmra.mxu0 %v585
    %v671 = vpop.f32.mrf.mxu0
    %v672 = vadd.f32 %v575, %v671
    %v673 = vpop.f32.mrf.mxu0
    %v674 = vpop.f32.mrf.mxu0
    %v675 = vadd.f32 %v575, %v674
    %v676 = vpop.f32.mrf.mxu0
    %677 = vmatprep.mubr.bf16.mxu0 0
    %678 = vmatmul.mubr.bf16.gmra.mxu0 %v586
    %v679 = vpop.f32.mrf.mxu0
    %v680 = vadd.f32 %v575, %v679
    %v681 = vpop.f32.mrf.mxu0
    %v682 = vpop.f32.mrf.mxu0
    %v683 = vadd.f32 %v575, %v682
    %v684 = vpop.f32.mrf.mxu0
    %685 = vdwg.mxu0
    %686 = vst [vmem:[#allocation3] sm:$0xff] %v672
    %687 = vst [vmem:[#allocation3 + $0x8] sm:$0xff] %v675
    %688 = vst [vmem:[#allocation3 + $0x10] sm:$0xff] %v680
    %689 = vst [vmem:[#allocation3 + $0x18] sm:$0xff] %v683
    %v690 = vld [vmem:[#allocation2] sm:$0xff]
    %v691 = vld [vmem:[#allocation2 + $0x8] sm:$0xff]
    %v692 = vld [vmem:[#allocation3] sm:$0xff]
    %v693 = vld [vmem:[#allocation3 + $0x8] sm:$0xff]
    %v694 = vld [vmem:[#allocation3 + $0x10] sm:$0xff]
    %v695 = vld [vmem:[#allocation3 + $0x18] sm:$0xff]
    %v696 = vpack.c.bf16 %v691, %v690
    %v697 = vpack.c.bf16 %v693, %v692
    %v698 = vpack.c.bf16 %v695, %v694
    %v701 = vunpack.c.l.b16 %v418
    %v702 = vunpack.c.l.b16 %v419
    %v703 = vpack.c.b16 %v702, %v701
    %vm704 = vcmask 261120
    %v706 = vsel %vm704, %v703, 0
    %708 = vmatprep.subr.bf16.mxu0 0
    %709 = vmatpush1.bf16.msra.mxu0 0
    %710 = vmatprep.subr.bf16.mxu0 0
    %711 = vmatpush1.bf16.msra.mxu0 0
    %712 = vmatprep.subr.bf16.mxu0 0
    %713 = vmatpush1.bf16.msra.mxu0 0
    %714 = vmatprep.subr.bf16.mxu0 0
    %715 = vmatpush1.bf16.msra.mxu0 0
    %716 = vmatprep.subr.bf16.mxu0 0
    %717 = vmatpush1.bf16.msra.mxu0 0
    %718 = vmatprep.subr.bf16.mxu0 0
    %719 = vmatpush1.bf16.msra.mxu0 0
    %720 = vmatprep.subr.bf16.mxu0 0
    %721 = vmatpush1.bf16.msra.mxu0 %v698
    %722 = vmatprep.subr.bf16.mxu0 0
    %723 = vmatpush1.bf16.msra.mxu0 %v697
    %724 = vmatprep.subr.bf16.mxu0 0
    %725 = vmatpush2.bf16.msra.mxu0 0
    %726 = vmatprep.subr.bf16.mxu0 0
    %727 = vmatpush2.bf16.msra.mxu0 0
    %728 = vmatprep.subr.bf16.mxu0 0
    %729 = vmatpush2.bf16.msra.mxu0 0
    %730 = vmatprep.subr.bf16.mxu0 0
    %731 = vmatpush2.bf16.msra.mxu0 0
    %732 = vmatprep.subr.bf16.mxu0 0
    %733 = vmatpush2.bf16.msra.mxu0 0
    %734 = vmatprep.subr.bf16.mxu0 0
    %735 = vmatpush2.bf16.msra.mxu0 0
    %736 = vmatprep.subr.bf16.mxu0 0
    %737 = vmatpush2.bf16.msra.mxu0 0
    %738 = vmatprep.subr.bf16.mxu0 0
    %739 = vmatpush2.bf16.msra.mxu0 0
    %740 = vmatprep.mubr.bf16.mxu0 0
    %741 = vmatmul.mubr.bf16.gmra.mxu0 %v706
    %v742 = vpop.f32.mrf.mxu0
    %v743 = vadd.f32 0.0, %v742
    %v744 = vpop.f32.mrf.mxu0
    %v745 = vpop.f32.mrf.mxu0
    %v746 = vadd.f32 0.0, %v745
    %v747 = vpop.f32.mrf.mxu0
    %748 = vdwg.mxu0
    %v749 = vpack.c.bf16 %v746, %v743
    %v750 = vld [vmem:[#allocation16] sm:$0xf]
    %v751 = vld [vmem:[#allocation16 + $0x4] sm:$0xf]
    %v752 = vld [vmem:[#allocation16 + $0x8] sm:$0xf]
    %v753 = vld [vmem:[#allocation16 + $0xc] sm:$0xf]
    %v754 = vld [vmem:[#allocation16 + $0x10] sm:$0xf]
    %v755 = vld [vmem:[#allocation16 + $0x14] sm:$0xf]
    %v756 = vld [vmem:[#allocation16 + $0x18] sm:$0xf]
    %v757 = vld [vmem:[#allocation16 + $0x1c] sm:$0xf]
    %v758 = vld [vmem:[#allocation16 + $0x20] sm:$0xf]
    %v759 = vld [vmem:[#allocation16 + $0x24] sm:$0xf]
    %v760 = vld [vmem:[#allocation16 + $0x28] sm:$0xf]
    %v761 = vld [vmem:[#allocation16 + $0x2c] sm:$0xf]
    %v762 = vld [vmem:[#allocation16 + $0x30] sm:$0xf]
    %v763 = vld [vmem:[#allocation16 + $0x34] sm:$0xf]
    %v764 = vld [vmem:[#allocation16 + $0x38] sm:$0xf]
    %v765 = vld [vmem:[#allocation16 + $0x3c] sm:$0xf]
    %v766 = vld [vmem:[#allocation16 + $0x40] sm:$0xf]
    %v767 = vld [vmem:[#allocation16 + $0x44] sm:$0xf]
    %v768 = vld [vmem:[#allocation16 + $0x48] sm:$0xf]
    %v769 = vld [vmem:[#allocation16 + $0x4c] sm:$0xf]
    %v770 = vld [vmem:[#allocation16 + $0x50] sm:$0xf]
    %v771 = vld [vmem:[#allocation16 + $0x54] sm:$0xf]
    %v772 = vld [vmem:[#allocation16 + $0x58] sm:$0xf]
    %v773 = vld [vmem:[#allocation16 + $0x5c] sm:$0xf]
    %v774 = vld [vmem:[#allocation16 + $0x60] sm:$0xf]
    %v775 = vld [vmem:[#allocation16 + $0x64] sm:$0xf]
    %v776 = vld [vmem:[#allocation16 + $0x68] sm:$0xf]
    %v777 = vld [vmem:[#allocation16 + $0x6c] sm:$0xf]
    %v778 = vld [vmem:[#allocation16 + $0x70] sm:$0xf]
    %v779 = vld [vmem:[#allocation16 + $0x74] sm:$0xf]
    %v780 = vld [vmem:[#allocation16 + $0x78] sm:$0xf]
    %v781 = vld [vmem:[#allocation16 + $0x7c] sm:$0xf]
    %v782 = vld [vmem:[#allocation18] sm:$0x1]
    %v784 = vlaneseq
    %v785 = vshrl.u32 %v784, 7
    %v786 = vsub.s32 0, %v785
    %v787 = vrot.slane %v782, %v786
    %v821 = vunpack.c.l.b16 %v750
    %v822 = vunpack.c.l.b16 %v751
    %v823 = vunpack.c.l.b16 %v752
    %v824 = vunpack.c.l.b16 %v753
    %v825 = vunpack.c.l.b16 %v754
    %v826 = vunpack.c.l.b16 %v755
    %v827 = vunpack.c.l.b16 %v756
    %v828 = vunpack.c.l.b16 %v757
    %v829 = vunpack.c.l.b16 %v758
    %v830 = vunpack.c.l.b16 %v759
    %v831 = vunpack.c.l.b16 %v760
    %v832 = vunpack.c.l.b16 %v761
    %v833 = vunpack.c.l.b16 %v762
    %v834 = vunpack.c.l.b16 %v763
    %v835 = vunpack.c.l.b16 %v764
    %v836 = vunpack.c.l.b16 %v765
    %v837 = vunpack.c.l.b16 %v766
    %v838 = vunpack.c.l.b16 %v767
    %v839 = vunpack.c.l.b16 %v768
    %v840 = vunpack.c.l.b16 %v769
    %v841 = vunpack.c.l.b16 %v770
    %v842 = vunpack.c.l.b16 %v771
    %v843 = vunpack.c.l.b16 %v772
    %v844 = vunpack.c.l.b16 %v773
    %v845 = vunpack.c.l.b16 %v774
    %v846 = vunpack.c.l.b16 %v775
    %v847 = vunpack.c.l.b16 %v776
    %v848 = vunpack.c.l.b16 %v777
    %v849 = vunpack.c.l.b16 %v778
    %v850 = vunpack.c.l.b16 %v779
    %v851 = vunpack.c.l.b16 %v780
    %v852 = vunpack.c.l.b16 %v781
    %v853 = vpack.c.b16 %v822, %v821
    %v854 = vpack.c.b16 %v824, %v823
    %v855 = vpack.c.b16 %v826, %v825
    %v856 = vpack.c.b16 %v828, %v827
    %v857 = vpack.c.b16 %v830, %v829
    %v858 = vpack.c.b16 %v832, %v831
    %v859 = vpack.c.b16 %v834, %v833
    %v860 = vpack.c.b16 %v836, %v835
    %v861 = vpack.c.b16 %v838, %v837
    %v862 = vpack.c.b16 %v840, %v839
    %v863 = vpack.c.b16 %v842, %v841
    %v864 = vpack.c.b16 %v844, %v843
    %v865 = vpack.c.b16 %v846, %v845
    %v866 = vpack.c.b16 %v848, %v847
    %v867 = vpack.c.b16 %v850, %v849
    %v868 = vpack.c.b16 %v852, %v851
    %885 = vmatprep.subr.bf16.mxu0 0
    %886 = vmatpush1.bf16.msra.mxu0 %v860
    %887 = vmatprep.subr.bf16.mxu0 0
    %888 = vmatpush1.bf16.msra.mxu0 %v859
    %889 = vmatprep.subr.bf16.mxu0 0
    %890 = vmatpush1.bf16.msra.mxu0 %v858
    %891 = vmatprep.subr.bf16.mxu0 0
    %892 = vmatpush1.bf16.msra.mxu0 %v857
    %893 = vmatprep.subr.bf16.mxu0 0
    %894 = vmatpush1.bf16.msra.mxu0 %v856
    %895 = vmatprep.subr.bf16.mxu0 0
    %896 = vmatpush1.bf16.msra.mxu0 %v855
    %897 = vmatprep.subr.bf16.mxu0 0
    %898 = vmatpush1.bf16.msra.mxu0 %v854
    %899 = vmatprep.subr.bf16.mxu0 0
    %900 = vmatpush1.bf16.msra.mxu0 %v853
    %901 = vmatprep.subr.bf16.mxu0 0
    %902 = vmatpush2.bf16.msra.mxu0 %v868
    %903 = vmatprep.subr.bf16.mxu0 0
    %904 = vmatpush2.bf16.msra.mxu0 %v867
    %905 = vmatprep.subr.bf16.mxu0 0
    %906 = vmatpush2.bf16.msra.mxu0 %v866
    %907 = vmatprep.subr.bf16.mxu0 0
    %908 = vmatpush2.bf16.msra.mxu0 %v865
    %909 = vmatprep.subr.bf16.mxu0 0
    %910 = vmatpush2.bf16.msra.mxu0 %v864
    %911 = vmatprep.subr.bf16.mxu0 0
    %912 = vmatpush2.bf16.msra.mxu0 %v863
    %913 = vmatprep.subr.bf16.mxu0 0
    %914 = vmatpush2.bf16.msra.mxu0 %v862
    %915 = vmatprep.subr.bf16.mxu0 0
    %916 = vmatpush2.bf16.msra.mxu0 %v861
    %917 = vmatprep.mubr.bf16.mxu0 %v749
    %918 = vmatmul.mubr.bf16.gmra.mxu0 %v696
    %v919 = vpop.f32.mrf.mxu0
    %v920 = vadd.f32 %v787, %v919
    %v921 = vpop.f32.mrf.mxu0
    %v922 = vpop.f32.mrf.mxu0
    %v923 = vadd.f32 %v787, %v922
    %v924 = vpop.f32.mrf.mxu0
    %925 = vdwg.mxu0
    %v930 = vunpack.c.l.b16 %v420
    %v931 = vunpack.c.l.b16 %v421
    %v932 = vunpack.c.l.b16 %v422
    %v933 = vunpack.c.l.b16 %v423
    %v934 = vpack.c.b16 %v931, %v930
    %v935 = vpack.c.b16 %v933, %v932
    %vm936 = vcmask 130048
    %v938 = vsel %vm936, %v934, 0
    %v941 = vsel %vm936, %v935, 0
    %943 = vmatprep.subr.bf16.mxu0 0
    %944 = vmatpush1.bf16.msra.mxu0 0
    %945 = vmatprep.subr.bf16.mxu0 0
    %946 = vmatpush1.bf16.msra.mxu0 0
    %947 = vmatprep.subr.bf16.mxu0 0
    %948 = vmatpush1.bf16.msra.mxu0 0
    %949 = vmatprep.subr.bf16.mxu0 0
    %950 = vmatpush1.bf16.msra.mxu0 0
    %951 = vmatprep.subr.bf16.mxu0 0
    %952 = vmatpush1.bf16.msra.mxu0 0
    %953 = vmatprep.subr.bf16.mxu0 0
    %954 = vmatpush1.bf16.msra.mxu0 0
    %955 = vmatprep.subr.bf16.mxu0 0
    %956 = vmatpush1.bf16.msra.mxu0 0
    %957 = vmatprep.subr.bf16.mxu0 0
    %958 = vmatpush1.bf16.msra.mxu0 %v696
    %959 = vmatprep.subr.bf16.mxu0 0
    %960 = vmatpush2.bf16.msra.mxu0 0
    %961 = vmatprep.subr.bf16.mxu0 0
    %962 = vmatpush2.bf16.msra.mxu0 0
    %963 = vmatprep.subr.bf16.mxu0 0
    %964 = vmatpush2.bf16.msra.mxu0 0
    %965 = vmatprep.subr.bf16.mxu0 0
    %966 = vmatpush2.bf16.msra.mxu0 0
    %967 = vmatprep.subr.bf16.mxu0 0
    %968 = vmatpush2.bf16.msra.mxu0 0
    %969 = vmatprep.subr.bf16.mxu0 0
    %970 = vmatpush2.bf16.msra.mxu0 0
    %971 = vmatprep.subr.bf16.mxu0 0
    %972 = vmatpush2.bf16.msra.mxu0 0
    %973 = vmatprep.subr.bf16.mxu0 0
    %974 = vmatpush2.bf16.msra.mxu0 0
    %975 = vmatprep.mubr.bf16.mxu0 0
    %976 = vmatmul.mubr.bf16.gmra.mxu0 %v938
    %v977 = vpop.f32.mrf.mxu0
    %v978 = vadd.f32 0.0, %v977
    %v979 = vpop.f32.mrf.mxu0
    %v980 = vpop.f32.mrf.mxu0
    %v981 = vadd.f32 0.0, %v980
    %v982 = vpop.f32.mrf.mxu0
    %983 = vmatprep.mubr.bf16.mxu0 0
    %984 = vmatmul.mubr.bf16.gmra.mxu0 %v941
    %v985 = vpop.f32.mrf.mxu0
    %v986 = vadd.f32 0.0, %v985
    %v987 = vpop.f32.mrf.mxu0
    %v988 = vpop.f32.mrf.mxu0
    %v989 = vadd.f32 0.0, %v988
    %v990 = vpop.f32.mrf.mxu0
    %991 = vdwg.mxu0
    %v992 = vpack.c.bf16 %v981, %v978
    %v993 = vpack.c.bf16 %v989, %v986
    %v994 = vld [vmem:[#allocation19] sm:$0xf]
    %v995 = vld [vmem:[#allocation19 + $0x4] sm:$0xf]
    %v996 = vld [vmem:[#allocation19 + $0x8] sm:$0xf]
    %v997 = vld [vmem:[#allocation19 + $0xc] sm:$0xf]
    %v998 = vld [vmem:[#allocation19 + $0x10] sm:$0xf]
    %v999 = vld [vmem:[#allocation19 + $0x14] sm:$0xf]
    %v1000 = vld [vmem:[#allocation19 + $0x18] sm:$0xf]
    %v1001 = vld [vmem:[#allocation19 + $0x1c] sm:$0xf]
    %v1002 = vld [vmem:[#allocation19 + $0x20] sm:$0xf]
    %v1003 = vld [vmem:[#allocation19 + $0x24] sm:$0xf]
    %v1004 = vld [vmem:[#allocation19 + $0x28] sm:$0xf]
    %v1005 = vld [vmem:[#allocation19 + $0x2c] sm:$0xf]
    %v1006 = vld [vmem:[#allocation19 + $0x30] sm:$0xf]
    %v1007 = vld [vmem:[#allocation19 + $0x34] sm:$0xf]
    %v1008 = vld [vmem:[#allocation19 + $0x38] sm:$0xf]
    %v1009 = vld [vmem:[#allocation19 + $0x3c] sm:$0xf]
    %v1010 = vld [vmem:[#allocation19 + $0x40] sm:$0xf]
    %v1011 = vld [vmem:[#allocation19 + $0x44] sm:$0xf]
    %v1012 = vld [vmem:[#allocation19 + $0x48] sm:$0xf]
    %v1013 = vld [vmem:[#allocation19 + $0x4c] sm:$0xf]
    %v1014 = vld [vmem:[#allocation19 + $0x50] sm:$0xf]
    %v1015 = vld [vmem:[#allocation19 + $0x54] sm:$0xf]
    %v1016 = vld [vmem:[#allocation19 + $0x58] sm:$0xf]
    %v1017 = vld [vmem:[#allocation19 + $0x5c] sm:$0xf]
    %v1018 = vld [vmem:[#allocation19 + $0x60] sm:$0xf]
    %v1019 = vld [vmem:[#allocation19 + $0x64] sm:$0xf]
    %v1020 = vld [vmem:[#allocation19 + $0x68] sm:$0xf]
    %v1021 = vld [vmem:[#allocation19 + $0x6c] sm:$0xf]
    %v1022 = vld [vmem:[#allocation19 + $0x70] sm:$0xf]
    %v1023 = vld [vmem:[#allocation19 + $0x74] sm:$0xf]
    %v1024 = vld [vmem:[#allocation19 + $0x78] sm:$0xf]
    %v1025 = vld [vmem:[#allocation19 + $0x7c] sm:$0xf]
    %v1026 = vld [vmem:[#allocation21] sm:$0x1]
    %v1028 = vlaneseq
    %v1029 = vshrl.u32 %v1028, 7
    %v1030 = vsub.s32 0, %v1029
    %v1031 = vrot.slane %v1026, %v1030
    %v1065 = vunpack.c.l.b16 %v994
    %v1066 = vunpack.c.l.b16 %v995
    %v1067 = vunpack.c.l.b16 %v996
    %v1068 = vunpack.c.l.b16 %v997
    %v1069 = vunpack.c.l.b16 %v998
    %v1070 = vunpack.c.l.b16 %v999
    %v1071 = vunpack.c.l.b16 %v1000
    %v1072 = vunpack.c.l.b16 %v1001
    %v1073 = vunpack.c.l.b16 %v1002
    %v1074 = vunpack.c.l.b16 %v1003
    %v1075 = vunpack.c.l.b16 %v1004
    %v1076 = vunpack.c.l.b16 %v1005
    %v1077 = vunpack.c.l.b16 %v1006
    %v1078 = vunpack.c.l.b16 %v1007
    %v1079 = vunpack.c.l.b16 %v1008
    %v1080 = vunpack.c.l.b16 %v1009
    %v1081 = vunpack.c.l.b16 %v1010
    %v1082 = vunpack.c.l.b16 %v1011
    %v1083 = vunpack.c.l.b16 %v1012
    %v1084 = vunpack.c.l.b16 %v1013
    %v1085 = vunpack.c.l.b16 %v1014
    %v1086 = vunpack.c.l.b16 %v1015
    %v1087 = vunpack.c.l.b16 %v1016
    %v1088 = vunpack.c.l.b16 %v1017
    %v1089 = vunpack.c.l.b16 %v1018
    %v1090 = vunpack.c.l.b16 %v1019
    %v1091 = vunpack.c.l.b16 %v1020
    %v1092 = vunpack.c.l.b16 %v1021
    %v1093 = vunpack.c.l.b16 %v1022
    %v1094 = vunpack.c.l.b16 %v1023
    %v1095 = vunpack.c.l.b16 %v1024
    %v1096 = vunpack.c.l.b16 %v1025
    %v1097 = vpack.c.b16 %v1066, %v1065
    %v1098 = vpack.c.b16 %v1068, %v1067
    %v1099 = vpack.c.b16 %v1070, %v1069
    %v1100 = vpack.c.b16 %v1072, %v1071
    %v1101 = vpack.c.b16 %v1074, %v1073
    %v1102 = vpack.c.b16 %v1076, %v1075
    %v1103 = vpack.c.b16 %v1078, %v1077
    %v1104 = vpack.c.b16 %v1080, %v1079
    %v1105 = vpack.c.b16 %v1082, %v1081
    %v1106 = vpack.c.b16 %v1084, %v1083
    %v1107 = vpack.c.b16 %v1086, %v1085
    %v1108 = vpack.c.b16 %v1088, %v1087
    %v1109 = vpack.c.b16 %v1090, %v1089
    %v1110 = vpack.c.b16 %v1092, %v1091
    %v1111 = vpack.c.b16 %v1094, %v1093
    %v1112 = vpack.c.b16 %v1096, %v1095
    %1129 = vmatprep.subr.bf16.mxu0 0
    %1130 = vmatpush1.bf16.msra.mxu0 %v1104
    %1131 = vmatprep.subr.bf16.mxu0 0
    %1132 = vmatpush1.bf16.msra.mxu0 %v1103
    %1133 = vmatprep.subr.bf16.mxu0 0
    %1134 = vmatpush1.bf16.msra.mxu0 %v1102
    %1135 = vmatprep.subr.bf16.mxu0 0
    %1136 = vmatpush1.bf16.msra.mxu0 %v1101
    %1137 = vmatprep.subr.bf16.mxu0 0
    %1138 = vmatpush1.bf16.msra.mxu0 %v1100
    %1139 = vmatprep.subr.bf16.mxu0 0
    %1140 = vmatpush1.bf16.msra.mxu0 %v1099
    %1141 = vmatprep.subr.bf16.mxu0 0
    %1142 = vmatpush1.bf16.msra.mxu0 %v1098
    %1143 = vmatprep.subr.bf16.mxu0 0
    %1144 = vmatpush1.bf16.msra.mxu0 %v1097
    %1145 = vmatprep.subr.bf16.mxu0 0
    %1146 = vmatpush2.bf16.msra.mxu0 %v1112
    %1147 = vmatprep.subr.bf16.mxu0 0
    %1148 = vmatpush2.bf16.msra.mxu0 %v1111
    %1149 = vmatprep.subr.bf16.mxu0 0
    %1150 = vmatpush2.bf16.msra.mxu0 %v1110
    %1151 = vmatprep.subr.bf16.mxu0 0
    %1152 = vmatpush2.bf16.msra.mxu0 %v1109
    %1153 = vmatprep.subr.bf16.mxu0 0
    %1154 = vmatpush2.bf16.msra.mxu0 %v1108
    %1155 = vmatprep.subr.bf16.mxu0 0
    %1156 = vmatpush2.bf16.msra.mxu0 %v1107
    %1157 = vmatprep.subr.bf16.mxu0 0
    %1158 = vmatpush2.bf16.msra.mxu0 %v1106
    %1159 = vmatprep.subr.bf16.mxu0 0
    %1160 = vmatpush2.bf16.msra.mxu0 %v1105
    %1161 = vmatprep.mubr.bf16.mxu0 %v992
    %1162 = vmatmul.mubr.bf16.gmra.mxu0 %v697
    %v1163 = vpop.f32.mrf.mxu0
    %v1164 = vadd.f32 %v1031, %v1163
    %v1165 = vpop.f32.mrf.mxu0
    %v1166 = vpop.f32.mrf.mxu0
    %v1167 = vadd.f32 %v1031, %v1166
    %v1168 = vpop.f32.mrf.mxu0
    %1169 = vmatprep.mubr.bf16.mxu0 %v993
    %1170 = vmatmul.mubr.bf16.gmra.mxu0 %v698
    %v1171 = vpop.f32.mrf.mxu0
    %v1172 = vadd.f32 %v1031, %v1171
    %v1173 = vpop.f32.mrf.mxu0
    %v1174 = vpop.f32.mrf.mxu0
    %v1175 = vadd.f32 %v1031, %v1174
    %v1176 = vpop.f32.mrf.mxu0
    %1177 = vdwg.mxu0
    %v1178 = vmax.f32 %v920, 0.0
    %v1179 = vmax.f32 %v923, 0.0
    %v1180 = vadd.f32 %v1178, %v690
    %v1181 = vadd.f32 %v1179, %v691
    %1182 = vadd.xlane.f32.xlu0 %v1180
    %v1183 = vpop.xlane.xlu0 %1182
    %1184 = vadd.xlane.f32.xlu0 %v1181
    %v1185 = vpop.xlane.xlu0 %1184
    %v1186 = vmul.f32 %v1183, 0.03125
    %v1187 = vmul.f32 %v1185, 0.03125
    %v1188 = vmul.f32 %v1186, %v417
    %v1189 = vmul.f32 %v1187, %v417
    %v1190 = vsub.f32 %v1180, %v1188
    %v1191 = vsub.f32 %v1181, %v1189
    %v1192 = vmul.f32 %v1190, %v1190
    %v1193 = vmul.f32 %v1191, %v1191
    %1194 = vadd.xlane.f32.xlu0 %v1192
    %v1195 = vpop.xlane.xlu0 %1194
    %1196 = vadd.xlane.f32.xlu0 %v1193
    %v1197 = vpop.xlane.xlu0 %1196
    %v1198 = vmul.f32 %v1195, 0.03125
    %v1199 = vmul.f32 %v1197, 0.03125
    %v1200 = vadd.f32 %v1198, 1e-05
    %v1201 = vadd.f32 %v1199, 1e-05
    %v1202 = vrsqrt.pop %v1200
    %v1203 = vrsqrt.pop %v1201
    %v1204 = vmul.f32 %v1190, %v1202
    %v1205 = vmul.f32 %v1191, %v1203
    %v1207 = vlaneseq
    %v1208 = vshrl.u32 %v1207, 7
    %v1209 = vsub.s32 0, %v1208
    %v1210 = vrot.slane %v424, %v1209
    %v1212 = vmul.f32 %v1204, %v1210
    %v1213 = vmul.f32 %v1205, %v1210
    %v1215 = vlaneseq
    %v1216 = vshrl.u32 %v1215, 7
    %v1217 = vsub.s32 0, %v1216
    %v1218 = vrot.slane %v425, %v1217
    %v1220 = vadd.f32 %v1212, %v1218
    %v1221 = vadd.f32 %v1213, %v1218
    %1222 = vst [vmem:[#allocation2] sm:$0xff] %v1220
    %1223 = vst [vmem:[#allocation2 + $0x8] sm:$0xff] %v1221
    %v1224 = vmax.f32 %v1164, 0.0
    %v1225 = vmax.f32 %v1167, 0.0
    %v1226 = vmax.f32 %v1172, 0.0
    %v1227 = vmax.f32 %v1175, 0.0
    %v1228 = vadd.f32 %v1224, %v692
    %v1229 = vadd.f32 %v1225, %v693
    %v1230 = vadd.f32 %v1226, %v694
    %v1231 = vadd.f32 %v1227, %v695
    %1232 = vadd.xlane.f32.xlu0 %v1228
    %v1233 = vpop.xlane.xlu0 %1232
    %1234 = vadd.xlane.f32.xlu0 %v1229
    %v1235 = vpop.xlane.xlu0 %1234
    %1236 = vadd.xlane.f32.xlu0 %v1230
    %v1237 = vpop.xlane.xlu0 %1236
    %1238 = vadd.xlane.f32.xlu0 %v1231
    %v1239 = vpop.xlane.xlu0 %1238
    %v1240 = vmul.f32 %v1233, 0.03125
    %v1241 = vmul.f32 %v1235, 0.03125
    %v1242 = vmul.f32 %v1237, 0.03125
    %v1243 = vmul.f32 %v1239, 0.03125
    %v1244 = vmul.f32 %v1240, %v417
    %v1245 = vmul.f32 %v1241, %v417
    %v1246 = vmul.f32 %v1242, %v417
    %v1247 = vmul.f32 %v1243, %v417
    %v1248 = vsub.f32 %v1228, %v1244
    %v1249 = vsub.f32 %v1229, %v1245
    %v1250 = vsub.f32 %v1230, %v1246
    %v1251 = vsub.f32 %v1231, %v1247
    %v1252 = vmul.f32 %v1248, %v1248
    %v1253 = vmul.f32 %v1249, %v1249
    %v1254 = vmul.f32 %v1250, %v1250
    %v1255 = vmul.f32 %v1251, %v1251
    %1256 = vadd.xlane.f32.xlu0 %v1252
    %v1257 = vpop.xlane.xlu0 %1256
    %1258 = vadd.xlane.f32.xlu0 %v1253
    %v1259 = vpop.xlane.xlu0 %1258
    %1260 = vadd.xlane.f32.xlu0 %v1254
    %v1261 = vpop.xlane.xlu0 %1260
    %1262 = vadd.xlane.f32.xlu0 %v1255
    %v1263 = vpop.xlane.xlu0 %1262
    %v1264 = vmul.f32 %v1257, 0.03125
    %v1265 = vmul.f32 %v1259, 0.03125
    %v1266 = vmul.f32 %v1261, 0.03125
    %v1267 = vmul.f32 %v1263, 0.03125
    %v1268 = vadd.f32 %v1264, 1e-05
    %v1269 = vadd.f32 %v1265, 1e-05
    %v1270 = vadd.f32 %v1266, 1e-05
    %v1271 = vadd.f32 %v1267, 1e-05
    %v1272 = vrsqrt.pop %v1268
    %v1273 = vrsqrt.pop %v1269
    %v1274 = vrsqrt.pop %v1270
    %v1275 = vrsqrt.pop %v1271
    %v1276 = vmul.f32 %v1248, %v1272
    %v1277 = vmul.f32 %v1249, %v1273
    %v1278 = vmul.f32 %v1250, %v1274
    %v1279 = vmul.f32 %v1251, %v1275
    %v1281 = vlaneseq
    %v1282 = vshrl.u32 %v1281, 7
    %v1283 = vsub.s32 0, %v1282
    %v1284 = vrot.slane %v426, %v1283
    %v1286 = vmul.f32 %v1276, %v1284
    %v1287 = vmul.f32 %v1277, %v1284
    %v1288 = vmul.f32 %v1278, %v1284
    %v1289 = vmul.f32 %v1279, %v1284
    %v1291 = vlaneseq
    %v1292 = vshrl.u32 %v1291, 7
    %v1293 = vsub.s32 0, %v1292
    %v1294 = vrot.slane %v427, %v1293
    %v1296 = vadd.f32 %v1286, %v1294
    %v1297 = vadd.f32 %v1287, %v1294
    %v1298 = vadd.f32 %v1288, %v1294
    %v1299 = vadd.f32 %v1289, %v1294
    %1300 = vst [vmem:[#allocation3] sm:$0xff] %v1296
    %1301 = vst [vmem:[#allocation3 + $0x8] sm:$0xff] %v1297
    %1302 = vst [vmem:[#allocation3 + $0x10] sm:$0xff] %v1298
    %1303 = vst [vmem:[#allocation3 + $0x18] sm:$0xff] %v1299
    %v1304 = vld [vmem:[#allocation2] sm:$0xff]
    %v1305 = vld [vmem:[#allocation2 + $0x8] sm:$0xff]
    %v1306 = vld [vmem:[#allocation3] sm:$0xff]
    %v1307 = vld [vmem:[#allocation3 + $0x8] sm:$0xff]
    %v1308 = vld [vmem:[#allocation3 + $0x10] sm:$0xff]
    %v1309 = vld [vmem:[#allocation3 + $0x18] sm:$0xff]
    %v1310 = vpack.c.bf16 %v1305, %v1304
    %v1311 = vpack.c.bf16 %v1307, %v1306
    %v1312 = vpack.c.bf16 %v1309, %v1308
    %1313 = vmatprep.subr.bf16.mxu0 0
    %1314 = vmatpush1.bf16.msra.mxu0 0
    %1315 = vmatprep.subr.bf16.mxu0 0
    %1316 = vmatpush1.bf16.msra.mxu0 0
    %1317 = vmatprep.subr.bf16.mxu0 0
    %1318 = vmatpush1.bf16.msra.mxu0 0
    %1319 = vmatprep.subr.bf16.mxu0 0
    %1320 = vmatpush1.bf16.msra.mxu0 0
    %1321 = vmatprep.subr.bf16.mxu0 0
    %1322 = vmatpush1.bf16.msra.mxu0 0
    %1323 = vmatprep.subr.bf16.mxu0 0
    %1324 = vmatpush1.bf16.msra.mxu0 0
    %1325 = vmatprep.subr.bf16.mxu0 0
    %1326 = vmatpush1.bf16.msra.mxu0 %v1312
    %1327 = vmatprep.subr.bf16.mxu0 0
    %1328 = vmatpush1.bf16.msra.mxu0 %v1311
    %1329 = vmatprep.subr.bf16.mxu0 0
    %1330 = vmatpush2.bf16.msra.mxu0 0
    %1331 = vmatprep.subr.bf16.mxu0 0
    %1332 = vmatpush2.bf16.msra.mxu0 0
    %1333 = vmatprep.subr.bf16.mxu0 0
    %1334 = vmatpush2.bf16.msra.mxu0 0
    %1335 = vmatprep.subr.bf16.mxu0 0
    %1336 = vmatpush2.bf16.msra.mxu0 0
    %1337 = vmatprep.subr.bf16.mxu0 0
    %1338 = vmatpush2.bf16.msra.mxu0 0
    %1339 = vmatprep.subr.bf16.mxu0 0
    %1340 = vmatpush2.bf16.msra.mxu0 0
    %1341 = vmatprep.subr.bf16.mxu0 0
    %1342 = vmatpush2.bf16.msra.mxu0 0
    %1343 = vmatprep.subr.bf16.mxu0 0
    %1344 = vmatpush2.bf16.msra.mxu0 0
    %1345 = vmatprep.mubr.bf16.mxu0 0
    %1346 = vmatmul.mubr.bf16.gmra.mxu0 %v706
    %v1347 = vpop.f32.mrf.mxu0
    %v1348 = vadd.f32 0.0, %v1347
    %v1349 = vpop.f32.mrf.mxu0
    %v1350 = vpop.f32.mrf.mxu0
    %v1351 = vadd.f32 0.0, %v1350
    %v1352 = vpop.f32.mrf.mxu0
    %1353 = vdwg.mxu0
    %v1354 = vpack.c.bf16 %v1351, %v1348
    %v1355 = vld [vmem:[#allocation22] sm:$0xf]
    %v1356 = vld [vmem:[#allocation22 + $0x4] sm:$0xf]
    %v1357 = vld [vmem:[#allocation22 + $0x8] sm:$0xf]
    %v1358 = vld [vmem:[#allocation22 + $0xc] sm:$0xf]
    %v1359 = vld [vmem:[#allocation22 + $0x10] sm:$0xf]
    %v1360 = vld [vmem:[#allocation22 + $0x14] sm:$0xf]
    %v1361 = vld [vmem:[#allocation22 + $0x18] sm:$0xf]
    %v1362 = vld [vmem:[#allocation22 + $0x1c] sm:$0xf]
    %v1363 = vld [vmem:[#allocation22 + $0x20] sm:$0xf]
    %v1364 = vld [vmem:[#allocation22 + $0x24] sm:$0xf]
    %v1365 = vld [vmem:[#allocation22 + $0x28] sm:$0xf]
    %v1366 = vld [vmem:[#allocation22 + $0x2c] sm:$0xf]
    %v1367 = vld [vmem:[#allocation22 + $0x30] sm:$0xf]
    %v1368 = vld [vmem:[#allocation22 + $0x34] sm:$0xf]
    %v1369 = vld [vmem:[#allocation22 + $0x38] sm:$0xf]
    %v1370 = vld [vmem:[#allocation22 + $0x3c] sm:$0xf]
    %v1371 = vld [vmem:[#allocation22 + $0x40] sm:$0xf]
    %v1372 = vld [vmem:[#allocation22 + $0x44] sm:$0xf]
    %v1373 = vld [vmem:[#allocation22 + $0x48] sm:$0xf]
    %v1374 = vld [vmem:[#allocation22 + $0x4c] sm:$0xf]
    %v1375 = vld [vmem:[#allocation22 + $0x50] sm:$0xf]
    %v1376 = vld [vmem:[#allocation22 + $0x54] sm:$0xf]
    %v1377 = vld [vmem:[#allocation22 + $0x58] sm:$0xf]
    %v1378 = vld [vmem:[#allocation22 + $0x5c] sm:$0xf]
    %v1379 = vld [vmem:[#allocation22 + $0x60] sm:$0xf]
    %v1380 = vld [vmem:[#allocation22 + $0x64] sm:$0xf]
    %v1381 = vld [vmem:[#allocation22 + $0x68] sm:$0xf]
    %v1382 = vld [vmem:[#allocation22 + $0x6c] sm:$0xf]
    %v1383 = vld [vmem:[#allocation22 + $0x70] sm:$0xf]
    %v1384 = vld [vmem:[#allocation22 + $0x74] sm:$0xf]
    %v1385 = vld [vmem:[#allocation22 + $0x78] sm:$0xf]
    %v1386 = vld [vmem:[#allocation22 + $0x7c] sm:$0xf]
    %v1387 = vld [vmem:[#allocation24] sm:$0x1]
    %v1389 = vlaneseq
    %v1390 = vshrl.u32 %v1389, 7
    %v1391 = vsub.s32 0, %v1390
    %v1392 = vrot.slane %v1387, %v1391
    %v1426 = vunpack.c.l.b16 %v1355
    %v1427 = vunpack.c.l.b16 %v1356
    %v1428 = vunpack.c.l.b16 %v1357
    %v1429 = vunpack.c.l.b16 %v1358
    %v1430 = vunpack.c.l.b16 %v1359
    %v1431 = vunpack.c.l.b16 %v1360
    %v1432 = vunpack.c.l.b16 %v1361
    %v1433 = vunpack.c.l.b16 %v1362
    %v1434 = vunpack.c.l.b16 %v1363
    %v1435 = vunpack.c.l.b16 %v1364
    %v1436 = vunpack.c.l.b16 %v1365
    %v1437 = vunpack.c.l.b16 %v1366
    %v1438 = vunpack.c.l.b16 %v1367
    %v1439 = vunpack.c.l.b16 %v1368
    %v1440 = vunpack.c.l.b16 %v1369
    %v1441 = vunpack.c.l.b16 %v1370
    %v1442 = vunpack.c.l.b16 %v1371
    %v1443 = vunpack.c.l.b16 %v1372
    %v1444 = vunpack.c.l.b16 %v1373
    %v1445 = vunpack.c.l.b16 %v1374
    %v1446 = vunpack.c.l.b16 %v1375
    %v1447 = vunpack.c.l.b16 %v1376
    %v1448 = vunpack.c.l.b16 %v1377
    %v1449 = vunpack.c.l.b16 %v1378
    %v1450 = vunpack.c.l.b16 %v1379
    %v1451 = vunpack.c.l.b16 %v1380
    %v1452 = vunpack.c.l.b16 %v1381
    %v1453 = vunpack.c.l.b16 %v1382
    %v1454 = vunpack.c.l.b16 %v1383
    %v1455 = vunpack.c.l.b16 %v1384
    %v1456 = vunpack.c.l.b16 %v1385
    %v1457 = vunpack.c.l.b16 %v1386
    %v1458 = vpack.c.b16 %v1427, %v1426
    %v1459 = vpack.c.b16 %v1429, %v1428
    %v1460 = vpack.c.b16 %v1431, %v1430
    %v1461 = vpack.c.b16 %v1433, %v1432
    %v1462 = vpack.c.b16 %v1435, %v1434
    %v1463 = vpack.c.b16 %v1437, %v1436
    %v1464 = vpack.c.b16 %v1439, %v1438
    %v1465 = vpack.c.b16 %v1441, %v1440
    %v1466 = vpack.c.b16 %v1443, %v1442
    %v1467 = vpack.c.b16 %v1445, %v1444
    %v1468 = vpack.c.b16 %v1447, %v1446
    %v1469 = vpack.c.b16 %v1449, %v1448
    %v1470 = vpack.c.b16 %v1451, %v1450
    %v1471 = vpack.c.b16 %v1453, %v1452
    %v1472 = vpack.c.b16 %v1455, %v1454
    %v1473 = vpack.c.b16 %v1457, %v1456
    %1490 = vmatprep.subr.bf16.mxu0 0
    %1491 = vmatpush1.bf16.msra.mxu0 %v1465
    %1492 = vmatprep.subr.bf16.mxu0 0
    %1493 = vmatpush1.bf16.msra.mxu0 %v1464
    %1494 = vmatprep.subr.bf16.mxu0 0
    %1495 = vmatpush1.bf16.msra.mxu0 %v1463
    %1496 = vmatprep.subr.bf16.mxu0 0
    %1497 = vmatpush1.bf16.msra.mxu0 %v1462
    %1498 = vmatprep.subr.bf16.mxu0 0
    %1499 = vmatpush1.bf16.msra.mxu0 %v1461
    %1500 = vmatprep.subr.bf16.mxu0 0
    %1501 = vmatpush1.bf16.msra.mxu0 %v1460
    %1502 = vmatprep.subr.bf16.mxu0 0
    %1503 = vmatpush1.bf16.msra.mxu0 %v1459
    %1504 = vmatprep.subr.bf16.mxu0 0
    %1505 = vmatpush1.bf16.msra.mxu0 %v1458
    %1506 = vmatprep.subr.bf16.mxu0 0
    %1507 = vmatpush2.bf16.msra.mxu0 %v1473
    %1508 = vmatprep.subr.bf16.mxu0 0
    %1509 = vmatpush2.bf16.msra.mxu0 %v1472
    %1510 = vmatprep.subr.bf16.mxu0 0
    %1511 = vmatpush2.bf16.msra.mxu0 %v1471
    %1512 = vmatprep.subr.bf16.mxu0 0
    %1513 = vmatpush2.bf16.msra.mxu0 %v1470
    %1514 = vmatprep.subr.bf16.mxu0 0
    %1515 = vmatpush2.bf16.msra.mxu0 %v1469
    %1516 = vmatprep.subr.bf16.mxu0 0
    %1517 = vmatpush2.bf16.msra.mxu0 %v1468
    %1518 = vmatprep.subr.bf16.mxu0 0
    %1519 = vmatpush2.bf16.msra.mxu0 %v1467
    %1520 = vmatprep.subr.bf16.mxu0 0
    %1521 = vmatpush2.bf16.msra.mxu0 %v1466
    %1522 = vmatprep.mubr.bf16.mxu0 %v1354
    %1523 = vmatmul.mubr.bf16.gmra.mxu0 %v1310
    %v1524 = vpop.f32.mrf.mxu0
    %v1525 = vadd.f32 %v1392, %v1524
    %v1526 = vpop.f32.mrf.mxu0
    %v1527 = vpop.f32.mrf.mxu0
    %v1528 = vadd.f32 %v1392, %v1527
    %v1529 = vpop.f32.mrf.mxu0
    %1530 = vdwg.mxu0
    %1531 = vmatprep.subr.bf16.mxu0 0
    %1532 = vmatpush1.bf16.msra.mxu0 0
    %1533 = vmatprep.subr.bf16.mxu0 0
    %1534 = vmatpush1.bf16.msra.mxu0 0
    %1535 = vmatprep.subr.bf16.mxu0 0
    %1536 = vmatpush1.bf16.msra.mxu0 0
    %1537 = vmatprep.subr.bf16.mxu0 0
    %1538 = vmatpush1.bf16.msra.mxu0 0
    %1539 = vmatprep.subr.bf16.mxu0 0
    %1540 = vmatpush1.bf16.msra.mxu0 0
    %1541 = vmatprep.subr.bf16.mxu0 0
    %1542 = vmatpush1.bf16.msra.mxu0 0
    %1543 = vmatprep.subr.bf16.mxu0 0
    %1544 = vmatpush1.bf16.msra.mxu0 0
    %1545 = vmatprep.subr.bf16.mxu0 0
    %1546 = vmatpush1.bf16.msra.mxu0 %v1310
    %1547 = vmatprep.subr.bf16.mxu0 0
    %1548 = vmatpush2.bf16.msra.mxu0 0
    %1549 = vmatprep.subr.bf16.mxu0 0
    %1550 = vmatpush2.bf16.msra.mxu0 0
    %1551 = vmatprep.subr.bf16.mxu0 0
    %1552 = vmatpush2.bf16.msra.mxu0 0
    %1553 = vmatprep.subr.bf16.mxu0 0
    %1554 = vmatpush2.bf16.msra.mxu0 0
    %1555 = vmatprep.subr.bf16.mxu0 0
    %1556 = vmatpush2.bf16.msra.mxu0 0
    %1557 = vmatprep.subr.bf16.mxu0 0
    %1558 = vmatpush2.bf16.msra.mxu0 0
    %1559 = vmatprep.subr.bf16.mxu0 0
    %1560 = vmatpush2.bf16.msra.mxu0 0
    %1561 = vmatprep.subr.bf16.mxu0 0
    %1562 = vmatpush2.bf16.msra.mxu0 0
    %1563 = vmatprep.mubr.bf16.mxu0 0
    %1564 = vmatmul.mubr.bf16.gmra.mxu0 %v938
    %v1565 = vpop.f32.mrf.mxu0
    %v1566 = vadd.f32 0.0, %v1565
    %v1567 = vpop.f32.mrf.mxu0
    %v1568 = vpop.f32.mrf.mxu0
    %v1569 = vadd.f32 0.0, %v1568
    %v1570 = vpop.f32.mrf.mxu0
    %1571 = vmatprep.mubr.bf16.mxu0 0
    %1572 = vmatmul.mubr.bf16.gmra.mxu0 %v941
    %v1573 = vpop.f32.mrf.mxu0
    %v1574 = vadd.f32 0.0, %v1573
    %v1575 = vpop.f32.mrf.mxu0
    %v1576 = vpop.f32.mrf.mxu0
    %v1577 = vadd.f32 0.0, %v1576
    %v1578 = vpop.f32.mrf.mxu0
    %1579 = vdwg.mxu0
    %v1580 = vpack.c.bf16 %v1569, %v1566
    %v1581 = vpack.c.bf16 %v1577, %v1574
    %v1582 = vld [vmem:[#allocation25] sm:$0xf]
    %v1583 = vld [vmem:[#allocation25 + $0x4] sm:$0xf]
    %v1584 = vld [vmem:[#allocation25 + $0x8] sm:$0xf]
    %v1585 = vld [vmem:[#allocation25 + $0xc] sm:$0xf]
    %v1586 = vld [vmem:[#allocation25 + $0x10] sm:$0xf]
    %v1587 = vld [vmem:[#allocation25 + $0x14] sm:$0xf]
    %v1588 = vld [vmem:[#allocation25 + $0x18] sm:$0xf]
    %v1589 = vld [vmem:[#allocation25 + $0x1c] sm:$0xf]
    %v1590 = vld [vmem:[#allocation25 + $0x20] sm:$0xf]
    %v1591 = vld [vmem:[#allocation25 + $0x24] sm:$0xf]
    %v1592 = vld [vmem:[#allocation25 + $0x28] sm:$0xf]
    %v1593 = vld [vmem:[#allocation25 + $0x2c] sm:$0xf]
    %v1594 = vld [vmem:[#allocation25 + $0x30] sm:$0xf]
    %v1595 = vld [vmem:[#allocation25 + $0x34] sm:$0xf]
    %v1596 = vld [vmem:[#allocation25 + $0x38] sm:$0xf]
    %v1597 = vld [vmem:[#allocation25 + $0x3c] sm:$0xf]
    %v1598 = vld [vmem:[#allocation25 + $0x40] sm:$0xf]
    %v1599 = vld [vmem:[#allocation25 + $0x44] sm:$0xf]
    %v1600 = vld [vmem:[#allocation25 + $0x48] sm:$0xf]
    %v1601 = vld [vmem:[#allocation25 + $0x4c] sm:$0xf]
    %v1602 = vld [vmem:[#allocation25 + $0x50] sm:$0xf]
    %v1603 = vld [vmem:[#allocation25 + $0x54] sm:$0xf]
    %v1604 = vld [vmem:[#allocation25 + $0x58] sm:$0xf]
    %v1605 = vld [vmem:[#allocation25 + $0x5c] sm:$0xf]
    %v1606 = vld [vmem:[#allocation25 + $0x60] sm:$0xf]
    %v1607 = vld [vmem:[#allocation25 + $0x64] sm:$0xf]
    %v1608 = vld [vmem:[#allocation25 + $0x68] sm:$0xf]
    %v1609 = vld [vmem:[#allocation25 + $0x6c] sm:$0xf]
    %v1610 = vld [vmem:[#allocation25 + $0x70] sm:$0xf]
    %v1611 = vld [vmem:[#allocation25 + $0x74] sm:$0xf]
    %v1612 = vld [vmem:[#allocation25 + $0x78] sm:$0xf]
    %v1613 = vld [vmem:[#allocation25 + $0x7c] sm:$0xf]
    %v1614 = vld [vmem:[#allocation27] sm:$0x1]
    %v1616 = vlaneseq
    %v1617 = vshrl.u32 %v1616, 7
    %v1618 = vsub.s32 0, %v1617
    %v1619 = vrot.slane %v1614, %v1618
    %v1653 = vunpack.c.l.b16 %v1582
    %v1654 = vunpack.c.l.b16 %v1583
    %v1655 = vunpack.c.l.b16 %v1584
    %v1656 = vunpack.c.l.b16 %v1585
    %v1657 = vunpack.c.l.b16 %v1586
    %v1658 = vunpack.c.l.b16 %v1587
    %v1659 = vunpack.c.l.b16 %v1588
    %v1660 = vunpack.c.l.b16 %v1589
    %v1661 = vunpack.c.l.b16 %v1590
    %v1662 = vunpack.c.l.b16 %v1591
    %v1663 = vunpack.c.l.b16 %v1592
    %v1664 = vunpack.c.l.b16 %v1593
    %v1665 = vunpack.c.l.b16 %v1594
    %v1666 = vunpack.c.l.b16 %v1595
    %v1667 = vunpack.c.l.b16 %v1596
    %v1668 = vunpack.c.l.b16 %v1597
    %v1669 = vunpack.c.l.b16 %v1598
    %v1670 = vunpack.c.l.b16 %v1599
    %v1671 = vunpack.c.l.b16 %v1600
    %v1672 = vunpack.c.l.b16 %v1601
    %v1673 = vunpack.c.l.b16 %v1602
    %v1674 = vunpack.c.l.b16 %v1603
    %v1675 = vunpack.c.l.b16 %v1604
    %v1676 = vunpack.c.l.b16 %v1605
    %v1677 = vunpack.c.l.b16 %v1606
    %v1678 = vunpack.c.l.b16 %v1607
    %v1679 = vunpack.c.l.b16 %v1608
    %v1680 = vunpack.c.l.b16 %v1609
    %v1681 = vunpack.c.l.b16 %v1610
    %v1682 = vunpack.c.l.b16 %v1611
    %v1683 = vunpack.c.l.b16 %v1612
    %v1684 = vunpack.c.l.b16 %v1613
    %v1685 = vpack.c.b16 %v1654, %v1653
    %v1686 = vpack.c.b16 %v1656, %v1655
    %v1687 = vpack.c.b16 %v1658, %v1657
    %v1688 = vpack.c.b16 %v1660, %v1659
    %v1689 = vpack.c.b16 %v1662, %v1661
    %v1690 = vpack.c.b16 %v1664, %v1663
    %v1691 = vpack.c.b16 %v1666, %v1665
    %v1692 = vpack.c.b16 %v1668, %v1667
    %v1693 = vpack.c.b16 %v1670, %v1669
    %v1694 = vpack.c.b16 %v1672, %v1671
    %v1695 = vpack.c.b16 %v1674, %v1673
    %v1696 = vpack.c.b16 %v1676, %v1675
    %v1697 = vpack.c.b16 %v1678, %v1677
    %v1698 = vpack.c.b16 %v1680, %v1679
    %v1699 = vpack.c.b16 %v1682, %v1681
    %v1700 = vpack.c.b16 %v1684, %v1683
    %1717 = vmatprep.subr.bf16.mxu0 0
    %1718 = vmatpush1.bf16.msra.mxu0 %v1692
    %1719 = vmatprep.subr.bf16.mxu0 0
    %1720 = vmatpush1.bf16.msra.mxu0 %v1691
    %1721 = vmatprep.subr.bf16.mxu0 0
    %1722 = vmatpush1.bf16.msra.mxu0 %v1690
    %1723 = vmatprep.subr.bf16.mxu0 0
    %1724 = vmatpush1.bf16.msra.mxu0 %v1689
    %1725 = vmatprep.subr.bf16.mxu0 0
    %1726 = vmatpush1.bf16.msra.mxu0 %v1688
    %1727 = vmatprep.subr.bf16.mxu0 0
    %1728 = vmatpush1.bf16.msra.mxu0 %v1687
    %1729 = vmatprep.subr.bf16.mxu0 0
    %1730 = vmatpush1.bf16.msra.mxu0 %v1686
    %1731 = vmatprep.subr.bf16.mxu0 0
    %1732 = vmatpush1.bf16.msra.mxu0 %v1685
    %1733 = vmatprep.subr.bf16.mxu0 0
    %1734 = vmatpush2.bf16.msra.mxu0 %v1700
    %1735 = vmatprep.subr.bf16.mxu0 0
    %1736 = vmatpush2.bf16.msra.mxu0 %v1699
    %1737 = vmatprep.subr.bf16.mxu0 0
    %1738 = vmatpush2.bf16.msra.mxu0 %v1698
    %1739 = vmatprep.subr.bf16.mxu0 0
    %1740 = vmatpush2.bf16.msra.mxu0 %v1697
    %1741 = vmatprep.subr.bf16.mxu0 0
    %1742 = vmatpush2.bf16.msra.mxu0 %v1696
    %1743 = vmatprep.subr.bf16.mxu0 0
    %1744 = vmatpush2.bf16.msra.mxu0 %v1695
    %1745 = vmatprep.subr.bf16.mxu0 0
    %1746 = vmatpush2.bf16.msra.mxu0 %v1694
    %1747 = vmatprep.subr.bf16.mxu0 0
    %1748 = vmatpush2.bf16.msra.mxu0 %v1693
    %1749 = vmatprep.mubr.bf16.mxu0 %v1580
    %1750 = vmatmul.mubr.bf16.gmra.mxu0 %v1311
    %v1751 = vpop.f32.mrf.mxu0
    %v1752 = vadd.f32 %v1619, %v1751
    %v1753 = vpop.f32.mrf.mxu0
    %v1754 = vpop.f32.mrf.mxu0
    %v1755 = vadd.f32 %v1619, %v1754
    %v1756 = vpop.f32.mrf.mxu0
    %1757 = vmatprep.mubr.bf16.mxu0 %v1581
    %1758 = vmatmul.mubr.bf16.gmra.mxu0 %v1312
    %v1759 = vpop.f32.mrf.mxu0
    %v1760 = vadd.f32 %v1619, %v1759
    %v1761 = vpop.f32.mrf.mxu0
    %v1762 = vpop.f32.mrf.mxu0
    %v1763 = vadd.f32 %v1619, %v1762
    %v1764 = vpop.f32.mrf.mxu0
    %1765 = vdwg.mxu0
    %v1766 = vmax.f32 %v1525, 0.0
    %v1767 = vmax.f32 %v1528, 0.0
    %v1768 = vadd.f32 %v1766, %v1304
    %v1769 = vadd.f32 %v1767, %v1305
    %1770 = vadd.xlane.f32.xlu0 %v1768
    %v1771 = vpop.xlane.xlu0 %1770
    %1772 = vadd.xlane.f32.xlu0 %v1769
    %v1773 = vpop.xlane.xlu0 %1772
    %v1774 = vmul.f32 %v1771, 0.03125
    %v1775 = vmul.f32 %v1773, 0.03125
    %v1776 = vmul.f32 %v1774, %v417
    %v1777 = vmul.f32 %v1775, %v417
    %v1778 = vsub.f32 %v1768, %v1776
    %v1779 = vsub.f32 %v1769, %v1777
    %v1780 = vmul.f32 %v1778, %v1778
    %v1781 = vmul.f32 %v1779, %v1779
    %1782 = vadd.xlane.f32.xlu0 %v1780
    %v1783 = vpop.xlane.xlu0 %1782
    %1784 = vadd.xlane.f32.xlu0 %v1781
    %v1785 = vpop.xlane.xlu0 %1784
    %v1786 = vmul.f32 %v1783, 0.03125
    %v1787 = vmul.f32 %v1785, 0.03125
    %v1788 = vadd.f32 %v1786, 1e-05
    %v1789 = vadd.f32 %v1787, 1e-05
    %v1790 = vrsqrt.pop %v1788
    %v1791 = vrsqrt.pop %v1789
    %v1792 = vmul.f32 %v1778, %v1790
    %v1793 = vmul.f32 %v1779, %v1791
    %v1794 = vmul.f32 %v1792, %v1210
    %v1795 = vmul.f32 %v1793, %v1210
    %v1796 = vadd.f32 %v1794, %v1218
    %v1797 = vadd.f32 %v1795, %v1218
    %1798 = vst [vmem:[#allocation2] sm:$0xff] %v1796
    %1799 = vst [vmem:[#allocation2 + $0x8] sm:$0xff] %v1797
    %v1800 = vmax.f32 %v1752, 0.0
    %v1801 = vmax.f32 %v1755, 0.0
    %v1802 = vmax.f32 %v1760, 0.0
    %v1803 = vmax.f32 %v1763, 0.0
    %v1804 = vadd.f32 %v1800, %v1306
    %v1805 = vadd.f32 %v1801, %v1307
    %v1806 = vadd.f32 %v1802, %v1308
    %v1807 = vadd.f32 %v1803, %v1309
    %1808 = vadd.xlane.f32.xlu0 %v1804
    %v1809 = vpop.xlane.xlu0 %1808
    %1810 = vadd.xlane.f32.xlu0 %v1805
    %v1811 = vpop.xlane.xlu0 %1810
    %1812 = vadd.xlane.f32.xlu0 %v1806
    %v1813 = vpop.xlane.xlu0 %1812
    %1814 = vadd.xlane.f32.xlu0 %v1807
    %v1815 = vpop.xlane.xlu0 %1814
    %v1816 = vmul.f32 %v1809, 0.03125
    %v1817 = vmul.f32 %v1811, 0.03125
    %v1818 = vmul.f32 %v1813, 0.03125
    %v1819 = vmul.f32 %v1815, 0.03125
    %v1820 = vmul.f32 %v1816, %v417
    %v1821 = vmul.f32 %v1817, %v417
    %v1822 = vmul.f32 %v1818, %v417
    %v1823 = vmul.f32 %v1819, %v417
    %v1824 = vsub.f32 %v1804, %v1820
    %v1825 = vsub.f32 %v1805, %v1821
    %v1826 = vsub.f32 %v1806, %v1822
    %v1827 = vsub.f32 %v1807, %v1823
    %v1828 = vmul.f32 %v1824, %v1824
    %v1829 = vmul.f32 %v1825, %v1825
    %v1830 = vmul.f32 %v1826, %v1826
    %v1831 = vmul.f32 %v1827, %v1827
    %1832 = vadd.xlane.f32.xlu0 %v1828
    %v1833 = vpop.xlane.xlu0 %1832
    %1834 = vadd.xlane.f32.xlu0 %v1829
    %v1835 = vpop.xlane.xlu0 %1834
    %1836 = vadd.xlane.f32.xlu0 %v1830
    %v1837 = vpop.xlane.xlu0 %1836
    %1838 = vadd.xlane.f32.xlu0 %v1831
    %v1839 = vpop.xlane.xlu0 %1838
    %v1840 = vmul.f32 %v1833, 0.03125
    %v1841 = vmul.f32 %v1835, 0.03125
    %v1842 = vmul.f32 %v1837, 0.03125
    %v1843 = vmul.f32 %v1839, 0.03125
    %v1844 = vadd.f32 %v1840, 1e-05
    %v1845 = vadd.f32 %v1841, 1e-05
    %v1846 = vadd.f32 %v1842, 1e-05
    %v1847 = vadd.f32 %v1843, 1e-05
    %v1848 = vrsqrt.pop %v1844
    %v1849 = vrsqrt.pop %v1845
    %v1850 = vrsqrt.pop %v1846
    %v1851 = vrsqrt.pop %v1847
    %v1852 = vmul.f32 %v1824, %v1848
    %v1853 = vmul.f32 %v1825, %v1849
    %v1854 = vmul.f32 %v1826, %v1850
    %v1855 = vmul.f32 %v1827, %v1851
    %v1856 = vmul.f32 %v1852, %v1284
    %v1857 = vmul.f32 %v1853, %v1284
    %v1858 = vmul.f32 %v1854, %v1284
    %v1859 = vmul.f32 %v1855, %v1284
    %v1860 = vadd.f32 %v1856, %v1294
    %v1861 = vadd.f32 %v1857, %v1294
    %v1862 = vadd.f32 %v1858, %v1294
    %v1863 = vadd.f32 %v1859, %v1294
    %1864 = vst [vmem:[#allocation3] sm:$0xff] %v1860
    %1865 = vst [vmem:[#allocation3 + $0x8] sm:$0xff] %v1861
    %1866 = vst [vmem:[#allocation3 + $0x10] sm:$0xff] %v1862
    %1867 = vst [vmem:[#allocation3 + $0x18] sm:$0xff] %v1863
    %v1868 = vld [vmem:[#allocation2] sm:$0xff]
    %v1869 = vld [vmem:[#allocation2 + $0x8] sm:$0xff]
    %v1870 = vpack.c.bf16 %v1869, %v1868
    %v1871 = vld [vmem:[#allocation34] sm:$0xf]
    %v1872 = vld [vmem:[#allocation34 + $0x4] sm:$0xf]
    %v1873 = vld [vmem:[#allocation34 + $0x8] sm:$0xf]
    %v1874 = vld [vmem:[#allocation34 + $0xc] sm:$0xf]
    %v1875 = vld [vmem:[#allocation34 + $0x10] sm:$0xf]
    %v1876 = vld [vmem:[#allocation34 + $0x14] sm:$0xf]
    %v1877 = vld [vmem:[#allocation34 + $0x18] sm:$0xf]
    %v1878 = vld [vmem:[#allocation34 + $0x1c] sm:$0xf]
    %v1879 = vld [vmem:[#allocation34 + $0x20] sm:$0xf]
    %v1880 = vld [vmem:[#allocation34 + $0x24] sm:$0xf]
    %v1881 = vld [vmem:[#allocation34 + $0x28] sm:$0xf]
    %v1882 = vld [vmem:[#allocation34 + $0x2c] sm:$0xf]
    %v1883 = vld [vmem:[#allocation34 + $0x30] sm:$0xf]
    %v1884 = vld [vmem:[#allocation34 + $0x34] sm:$0xf]
    %v1885 = vld [vmem:[#allocation34 + $0x38] sm:$0xf]
    %v1886 = vld [vmem:[#allocation34 + $0x3c] sm:$0xf]
    %v1887 = vld [vmem:[#allocation36] sm:$0x1]
    %v1889 = vlaneseq
    %v1890 = vshrl.u32 %v1889, 7
    %v1891 = vsub.s32 0, %v1890
    %v1892 = vrot.slane %v1887, %v1891
    %v1910 = vunpack.c.l.b16 %v1871
    %v1911 = vunpack.c.l.b16 %v1872
    %v1912 = vunpack.c.l.b16 %v1873
    %v1913 = vunpack.c.l.b16 %v1874
    %v1914 = vunpack.c.l.b16 %v1875
    %v1915 = vunpack.c.l.b16 %v1876
    %v1916 = vunpack.c.l.b16 %v1877
    %v1917 = vunpack.c.l.b16 %v1878
    %v1918 = vunpack.c.l.b16 %v1879
    %v1919 = vunpack.c.l.b16 %v1880
    %v1920 = vunpack.c.l.b16 %v1881
    %v1921 = vunpack.c.l.b16 %v1882
    %v1922 = vunpack.c.l.b16 %v1883
    %v1923 = vunpack.c.l.b16 %v1884
    %v1924 = vunpack.c.l.b16 %v1885
    %v1925 = vunpack.c.l.b16 %v1886
    %v1926 = vpack.c.b16 %v1911, %v1910
    %v1927 = vpack.c.b16 %v1913, %v1912
    %v1928 = vpack.c.b16 %v1915, %v1914
    %v1929 = vpack.c.b16 %v1917, %v1916
    %v1930 = vpack.c.b16 %v1919, %v1918
    %v1931 = vpack.c.b16 %v1921, %v1920
    %v1932 = vpack.c.b16 %v1923, %v1922
    %v1933 = vpack.c.b16 %v1925, %v1924
    %1942 = vmatprep.subr.bf16.mxu0 0
    %1943 = vmatpush1.bf16.msra.mxu0 %v1933
    %1944 = vmatprep.subr.bf16.mxu0 0
    %1945 = vmatpush1.bf16.msra.mxu0 %v1932
    %1946 = vmatprep.subr.bf16.mxu0 0
    %1947 = vmatpush1.bf16.msra.mxu0 %v1931
    %1948 = vmatprep.subr.bf16.mxu0 0
    %1949 = vmatpush1.bf16.msra.mxu0 %v1930
    %1950 = vmatprep.subr.bf16.mxu0 0
    %1951 = vmatpush1.bf16.msra.mxu0 %v1929
    %1952 = vmatprep.subr.bf16.mxu0 0
    %1953 = vmatpush1.bf16.msra.mxu0 %v1928
    %1954 = vmatprep.subr.bf16.mxu0 0
    %1955 = vmatpush1.bf16.msra.mxu0 %v1927
    %1956 = vmatprep.subr.bf16.mxu0 0
    %1957 = vmatpush1.bf16.msra.mxu0 %v1926
    %1958 = vmatprep.subr.bf16.mxu0 0
    %1959 = vmatpush2.bf16.msra.mxu0 0
    %1960 = vmatprep.subr.bf16.mxu0 0
    %1961 = vmatpush2.bf16.msra.mxu0 0
    %1962 = vmatprep.subr.bf16.mxu0 0
    %1963 = vmatpush2.bf16.msra.mxu0 0
    %1964 = vmatprep.subr.bf16.mxu0 0
    %1965 = vmatpush2.bf16.msra.mxu0 0
    %1966 = vmatprep.subr.bf16.mxu0 0
    %1967 = vmatpush2.bf16.msra.mxu0 0
    %1968 = vmatprep.subr.bf16.mxu0 0
    %1969 = vmatpush2.bf16.msra.mxu0 0
    %1970 = vmatprep.subr.bf16.mxu0 0
    %1971 = vmatpush2.bf16.msra.mxu0 0
    %1972 = vmatprep.subr.bf16.mxu0 0
    %1973 = vmatpush2.bf16.msra.mxu0 0
    %1974 = vmatprep.mubr.bf16.mxu0 0
    %1975 = vmatmul.mubr.bf16.gmra.mxu0 %v1870
    %v1976 = vpop.f32.mrf.mxu0
    %v1977 = vadd.f32 %v1892, %v1976
    %v1978 = vpop.f32.mrf.mxu0
    %v1979 = vpop.f32.mrf.mxu0
    %v1980 = vadd.f32 %v1892, %v1979
    %v1981 = vpop.f32.mrf.mxu0
    %1982 = vdwg.mxu0
    %v1983 = vmax.f32 %v1977, 0.0
    %v1984 = vmax.f32 %v1980, 0.0
    %v1985 = vpack.c.bf16 %v1984, %v1983
    %v1986 = vld [vmem:[%s45] sm:$0xf]
    %v1987 = vld [vmem:[%s45 + $0x4] sm:$0xf]
    %v1988 = vld [vmem:[%s45 + $0x8] sm:$0xf]
    %v1989 = vld [vmem:[%s45 + $0xc] sm:$0xf]
    %v1990 = vld [vmem:[%s45 + $0x10] sm:$0xf]
    %v1991 = vld [vmem:[%s45 + $0x14] sm:$0xf]
    %v1992 = vld [vmem:[%s45 + $0x18] sm:$0xf]
    %v1993 = vld [vmem:[%s45 + $0x1c] sm:$0xf]
    %v1994 = vld [vmem:[%s45 + $0x20] sm:$0xf]
    %v1995 = vld [vmem:[%s45 + $0x24] sm:$0xf]
    %v1996 = vld [vmem:[%s45 + $0x28] sm:$0xf]
    %v1997 = vld [vmem:[%s45 + $0x2c] sm:$0xf]
    %v1998 = vld [vmem:[%s45 + $0x30] sm:$0xf]
    %v1999 = vld [vmem:[%s45 + $0x34] sm:$0xf]
    %v2000 = vld [vmem:[%s45 + $0x38] sm:$0xf]
    %v2001 = vld [vmem:[%s45 + $0x3c] sm:$0xf]
    %v2002 = vld [vmem:[%s47] sm:$0x1]
    %v2004 = vlaneseq
    %v2005 = vshrl.u32 %v2004, 7
    %v2006 = vsub.s32 0, %v2005
    %v2007 = vrot.slane %v2002, %v2006
    %v2025 = vunpack.c.l.b16 %v1986
    %v2026 = vunpack.c.l.b16 %v1987
    %v2027 = vunpack.c.l.b16 %v1988
    %v2028 = vunpack.c.l.b16 %v1989
    %v2029 = vunpack.c.l.b16 %v1990
    %v2030 = vunpack.c.l.b16 %v1991
    %v2031 = vunpack.c.l.b16 %v1992
    %v2032 = vunpack.c.l.b16 %v1993
    %v2033 = vunpack.c.l.b16 %v1994
    %v2034 = vunpack.c.l.b16 %v1995
    %v2035 = vunpack.c.l.b16 %v1996
    %v2036 = vunpack.c.l.b16 %v1997
    %v2037 = vunpack.c.l.b16 %v1998
    %v2038 = vunpack.c.l.b16 %v1999
    %v2039 = vunpack.c.l.b16 %v2000
    %v2040 = vunpack.c.l.b16 %v2001
    %v2041 = vpack.c.b16 %v2026, %v2025
    %v2042 = vpack.c.b16 %v2028, %v2027
    %v2043 = vpack.c.b16 %v2030, %v2029
    %v2044 = vpack.c.b16 %v2032, %v2031
    %v2045 = vpack.c.b16 %v2034, %v2033
    %v2046 = vpack.c.b16 %v2036, %v2035
    %v2047 = vpack.c.b16 %v2038, %v2037
    %v2048 = vpack.c.b16 %v2040, %v2039
    %2057 = vmatprep.subr.bf16.mxu0 0
    %2058 = vmatpush1.bf16.msra.mxu0 %v2048
    %2059 = vmatprep.subr.bf16.mxu0 0
    %2060 = vmatpush1.bf16.msra.mxu0 %v2047
    %2061 = vmatprep.subr.bf16.mxu0 0
    %2062 = vmatpush1.bf16.msra.mxu0 %v2046
    %2063 = vmatprep.subr.bf16.mxu0 0
    %2064 = vmatpush1.bf16.msra.mxu0 %v2045
    %2065 = vmatprep.subr.bf16.mxu0 0
    %2066 = vmatpush1.bf16.msra.mxu0 %v2044
    %2067 = vmatprep.subr.bf16.mxu0 0
    %2068 = vmatpush1.bf16.msra.mxu0 %v2043
    %2069 = vmatprep.subr.bf16.mxu0 0
    %2070 = vmatpush1.bf16.msra.mxu0 %v2042
    %2071 = vmatprep.subr.bf16.mxu0 0
    %2072 = vmatpush1.bf16.msra.mxu0 %v2041
    %2073 = vmatprep.subr.bf16.mxu0 0
    %2074 = vmatpush2.bf16.msra.mxu0 0
    %2075 = vmatprep.subr.bf16.mxu0 0
    %2076 = vmatpush2.bf16.msra.mxu0 0
    %2077 = vmatprep.subr.bf16.mxu0 0
    %2078 = vmatpush2.bf16.msra.mxu0 0
    %2079 = vmatprep.subr.bf16.mxu0 0
    %2080 = vmatpush2.bf16.msra.mxu0 0
    %2081 = vmatprep.subr.bf16.mxu0 0
    %2082 = vmatpush2.bf16.msra.mxu0 0
    %2083 = vmatprep.subr.bf16.mxu0 0
    %2084 = vmatpush2.bf16.msra.mxu0 0
    %2085 = vmatprep.subr.bf16.mxu0 0
    %2086 = vmatpush2.bf16.msra.mxu0 0
    %2087 = vmatprep.subr.bf16.mxu0 0
    %2088 = vmatpush2.bf16.msra.mxu0 0
    %2089 = vmatprep.mubr.bf16.mxu0 0
    %2090 = vmatmul.mubr.bf16.gmra.mxu0 %v1985
    %v2091 = vpop.f32.mrf.mxu0
    %v2092 = vadd.f32 %v2007, %v2091
    %v2093 = vpop.f32.mrf.mxu0
    %v2094 = vpop.f32.mrf.mxu0
    %v2095 = vadd.f32 %v2007, %v2094
    %v2096 = vpop.f32.mrf.mxu0
    %2097 = vdwg.mxu0
    %vm2098 = vcmp.lt.s32.totalorder %v414, 8
    %v2099 = vsel %vm2098, %v2092, -1e+30
    %v2100 = vsel %vm2098, %v2095, -1e+30
    %2101 = vmax.xlane.f32.xlu0 %v2099
    %v2102 = vpop.xlane.xlu0 %2101
    %2103 = vmax.xlane.f32.xlu0 %v2100
    %v2104 = vpop.xlane.xlu0 %2103
    %v2105 = vsub.f32 %v2099, %v2102
    %v2106 = vsub.f32 %v2100, %v2104
    %v2107 = vmul.f32 %v2105, 1.442695
    %v2108 = vpow.pop %v2107
    %v2109 = vmul.f32 %v2106, 1.442695
    %v2110 = vpow.pop %v2109
    %2111 = vadd.xlane.f32.xlu0 %v2108
    %v2112 = vpop.xlane.xlu0 %2111
    %2113 = vadd.xlane.f32.xlu0 %v2110
    %v2114 = vpop.xlane.xlu0 %2113
    %v2115 = vlog2.pop %v2112
    %v2116 = vmul.f32 %v2115, 0.6931472
    %v2117 = vlog2.pop %v2114
    %v2118 = vmul.f32 %v2117, 0.6931472
    %v2119 = vsub.f32 %v2092, %v2102
    %v2120 = vsub.f32 %v2095, %v2104
    %v2121 = vsub.f32 %v2119, %v2116
    %v2122 = vsub.f32 %v2120, %v2118
    %v2123 = vsel %vm2098, %v2121, 0.0
    %v2124 = vsel %vm2098, %v2122, 0.0
    %2125 = vst [vmem:[#allocation40] sm:$0xff] %v2123
    %2126 = vst [vmem:[#allocation40 + $0x8] sm:$0xff] %v2124
    %v2127 = vld [vmem:[#allocation3] sm:$0xff]
    %v2128 = vld [vmem:[#allocation3 + $0x8] sm:$0xff]
    %v2129 = vld [vmem:[#allocation3 + $0x10] sm:$0xff]
    %v2130 = vld [vmem:[#allocation3 + $0x18] sm:$0xff]
    %v2131 = vpack.c.bf16 %v2128, %v2127
    %v2132 = vpack.c.bf16 %v2130, %v2129
    %v2133 = vld [vmem:[#allocation37] sm:$0xf]
    %v2134 = vld [vmem:[#allocation37 + $0x4] sm:$0xf]
    %v2135 = vld [vmem:[#allocation37 + $0x8] sm:$0xf]
    %v2136 = vld [vmem:[#allocation37 + $0xc] sm:$0xf]
    %v2137 = vld [vmem:[#allocation37 + $0x10] sm:$0xf]
    %v2138 = vld [vmem:[#allocation37 + $0x14] sm:$0xf]
    %v2139 = vld [vmem:[#allocation37 + $0x18] sm:$0xf]
    %v2140 = vld [vmem:[#allocation37 + $0x1c] sm:$0xf]
    %v2141 = vld [vmem:[#allocation37 + $0x20] sm:$0xf]
    %v2142 = vld [vmem:[#allocation37 + $0x24] sm:$0xf]
    %v2143 = vld [vmem:[#allocation37 + $0x28] sm:$0xf]
    %v2144 = vld [vmem:[#allocation37 + $0x2c] sm:$0xf]
    %v2145 = vld [vmem:[#allocation37 + $0x30] sm:$0xf]
    %v2146 = vld [vmem:[#allocation37 + $0x34] sm:$0xf]
    %v2147 = vld [vmem:[#allocation37 + $0x38] sm:$0xf]
    %v2148 = vld [vmem:[#allocation37 + $0x3c] sm:$0xf]
    %v2149 = vld [vmem:[%s51] sm:$0x1]
    %v2151 = vlaneseq
    %v2152 = vshrl.u32 %v2151, 7
    %v2153 = vsub.s32 0, %v2152
    %v2154 = vrot.slane %v2149, %v2153
    %v2172 = vunpack.c.l.b16 %v2133
    %v2173 = vunpack.c.l.b16 %v2134
    %v2174 = vunpack.c.l.b16 %v2135
    %v2175 = vunpack.c.l.b16 %v2136
    %v2176 = vunpack.c.l.b16 %v2137
    %v2177 = vunpack.c.l.b16 %v2138
    %v2178 = vunpack.c.l.b16 %v2139
    %v2179 = vunpack.c.l.b16 %v2140
    %v2180 = vunpack.c.l.b16 %v2141
    %v2181 = vunpack.c.l.b16 %v2142
    %v2182 = vunpack.c.l.b16 %v2143
    %v2183 = vunpack.c.l.b16 %v2144
    %v2184 = vunpack.c.l.b16 %v2145
    %v2185 = vunpack.c.l.b16 %v2146
    %v2186 = vunpack.c.l.b16 %v2147
    %v2187 = vunpack.c.l.b16 %v2148
    %v2188 = vpack.c.b16 %v2173, %v2172
    %v2189 = vpack.c.b16 %v2175, %v2174
    %v2190 = vpack.c.b16 %v2177, %v2176
    %v2191 = vpack.c.b16 %v2179, %v2178
    %v2192 = vpack.c.b16 %v2181, %v2180
    %v2193 = vpack.c.b16 %v2183, %v2182
    %v2194 = vpack.c.b16 %v2185, %v2184
    %v2195 = vpack.c.b16 %v2187, %v2186
    %2204 = vmatprep.subr.bf16.mxu0 0
    %2205 = vmatpush1.bf16.msra.mxu0 %v2195
    %2206 = vmatprep.subr.bf16.mxu0 0
    %2207 = vmatpush1.bf16.msra.mxu0 %v2194
    %2208 = vmatprep.subr.bf16.mxu0 0
    %2209 = vmatpush1.bf16.msra.mxu0 %v2193
    %2210 = vmatprep.subr.bf16.mxu0 0
    %2211 = vmatpush1.bf16.msra.mxu0 %v2192
    %2212 = vmatprep.subr.bf16.mxu0 0
    %2213 = vmatpush1.bf16.msra.mxu0 %v2191
    %2214 = vmatprep.subr.bf16.mxu0 0
    %2215 = vmatpush1.bf16.msra.mxu0 %v2190
    %2216 = vmatprep.subr.bf16.mxu0 0
    %2217 = vmatpush1.bf16.msra.mxu0 %v2189
    %2218 = vmatprep.subr.bf16.mxu0 0
    %2219 = vmatpush1.bf16.msra.mxu0 %v2188
    %2220 = vmatprep.subr.bf16.mxu0 0
    %2221 = vmatpush2.bf16.msra.mxu0 0
    %2222 = vmatprep.subr.bf16.mxu0 0
    %2223 = vmatpush2.bf16.msra.mxu0 0
    %2224 = vmatprep.subr.bf16.mxu0 0
    %2225 = vmatpush2.bf16.msra.mxu0 0
    %2226 = vmatprep.subr.bf16.mxu0 0
    %2227 = vmatpush2.bf16.msra.mxu0 0
    %2228 = vmatprep.subr.bf16.mxu0 0
    %2229 = vmatpush2.bf16.msra.mxu0 0
    %2230 = vmatprep.subr.bf16.mxu0 0
    %2231 = vmatpush2.bf16.msra.mxu0 0
    %2232 = vmatprep.subr.bf16.mxu0 0
    %2233 = vmatpush2.bf16.msra.mxu0 0
    %2234 = vmatprep.subr.bf16.mxu0 0
    %2235 = vmatpush2.bf16.msra.mxu0 0
    %2236 = vmatprep.mubr.bf16.mxu0 0
    %2237 = vmatmul.mubr.bf16.gmra.mxu0 %v2131
    %v2238 = vpop.f32.mrf.mxu0
    %v2239 = vadd.f32 %v2154, %v2238
    %v2240 = vpop.f32.mrf.mxu0
    %v2241 = vpop.f32.mrf.mxu0
    %v2242 = vadd.f32 %v2154, %v2241
    %v2243 = vpop.f32.mrf.mxu0
    %2244 = vmatprep.mubr.bf16.mxu0 0
    %2245 = vmatmul.mubr.bf16.gmra.mxu0 %v2132
    %v2246 = vpop.f32.mrf.mxu0
    %v2247 = vadd.f32 %v2154, %v2246
    %v2248 = vpop.f32.mrf.mxu0
    %v2249 = vpop.f32.mrf.mxu0
    %v2250 = vadd.f32 %v2154, %v2249
    %v2251 = vpop.f32.mrf.mxu0
    %2252 = vdwg.mxu0
    %v2253 = vmax.f32 %v2239, 0.0
    %v2254 = vmax.f32 %v2242, 0.0
    %v2255 = vmax.f32 %v2247, 0.0
    %v2256 = vmax.f32 %v2250, 0.0
    %v2257 = vpack.c.bf16 %v2254, %v2253
    %v2258 = vpack.c.bf16 %v2256, %v2255
    %v2259 = vld [vmem:[#allocation39] sm:$0xf]
    %v2260 = vld [vmem:[#allocation39 + $0x4] sm:$0xf]
    %v2261 = vld [vmem:[#allocation39 + $0x8] sm:$0xf]
    %v2262 = vld [vmem:[#allocation39 + $0xc] sm:$0xf]
    %v2263 = vld [vmem:[#allocation39 + $0x10] sm:$0xf]
    %v2264 = vld [vmem:[#allocation39 + $0x14] sm:$0xf]
    %v2265 = vld [vmem:[#allocation39 + $0x18] sm:$0xf]
    %v2266 = vld [vmem:[#allocation39 + $0x1c] sm:$0xf]
    %v2267 = vld [vmem:[#allocation39 + $0x20] sm:$0xf]
    %v2268 = vld [vmem:[#allocation39 + $0x24] sm:$0xf]
    %v2269 = vld [vmem:[#allocation39 + $0x28] sm:$0xf]
    %v2270 = vld [vmem:[#allocation39 + $0x2c] sm:$0xf]
    %v2271 = vld [vmem:[#allocation39 + $0x30] sm:$0xf]
    %v2272 = vld [vmem:[#allocation39 + $0x34] sm:$0xf]
    %v2273 = vld [vmem:[#allocation39 + $0x38] sm:$0xf]
    %v2274 = vld [vmem:[#allocation39 + $0x3c] sm:$0xf]
    %v2275 = vld [vmem:[%s55] sm:$0x1]
    %v2277 = vlaneseq
    %v2278 = vshrl.u32 %v2277, 7
    %v2279 = vsub.s32 0, %v2278
    %v2280 = vrot.slane %v2275, %v2279
    %v2298 = vunpack.c.l.b16 %v2259
    %v2299 = vunpack.c.l.b16 %v2260
    %v2300 = vunpack.c.l.b16 %v2261
    %v2301 = vunpack.c.l.b16 %v2262
    %v2302 = vunpack.c.l.b16 %v2263
    %v2303 = vunpack.c.l.b16 %v2264
    %v2304 = vunpack.c.l.b16 %v2265
    %v2305 = vunpack.c.l.b16 %v2266
    %v2306 = vunpack.c.l.b16 %v2267
    %v2307 = vunpack.c.l.b16 %v2268
    %v2308 = vunpack.c.l.b16 %v2269
    %v2309 = vunpack.c.l.b16 %v2270
    %v2310 = vunpack.c.l.b16 %v2271
    %v2311 = vunpack.c.l.b16 %v2272
    %v2312 = vunpack.c.l.b16 %v2273
    %v2313 = vunpack.c.l.b16 %v2274
    %v2314 = vpack.c.b16 %v2299, %v2298
    %v2315 = vpack.c.b16 %v2301, %v2300
    %v2316 = vpack.c.b16 %v2303, %v2302
    %v2317 = vpack.c.b16 %v2305, %v2304
    %v2318 = vpack.c.b16 %v2307, %v2306
    %v2319 = vpack.c.b16 %v2309, %v2308
    %v2320 = vpack.c.b16 %v2311, %v2310
    %v2321 = vpack.c.b16 %v2313, %v2312
    %2330 = vmatprep.subr.bf16.mxu0 0
    %2331 = vmatpush1.bf16.msra.mxu0 %v2321
    %2332 = vmatprep.subr.bf16.mxu0 0
    %2333 = vmatpush1.bf16.msra.mxu0 %v2320
    %2334 = vmatprep.subr.bf16.mxu0 0
    %2335 = vmatpush1.bf16.msra.mxu0 %v2319
    %2336 = vmatprep.subr.bf16.mxu0 0
    %2337 = vmatpush1.bf16.msra.mxu0 %v2318
    %2338 = vmatprep.subr.bf16.mxu0 0
    %2339 = vmatpush1.bf16.msra.mxu0 %v2317
    %2340 = vmatprep.subr.bf16.mxu0 0
    %2341 = vmatpush1.bf16.msra.mxu0 %v2316
    %2342 = vmatprep.subr.bf16.mxu0 0
    %2343 = vmatpush1.bf16.msra.mxu0 %v2315
    %2344 = vmatprep.subr.bf16.mxu0 0
    %2345 = vmatpush1.bf16.msra.mxu0 %v2314
    %2346 = vmatprep.subr.bf16.mxu0 0
    %2347 = vmatpush2.bf16.msra.mxu0 0
    %2348 = vmatprep.subr.bf16.mxu0 0
    %2349 = vmatpush2.bf16.msra.mxu0 0
    %2350 = vmatprep.subr.bf16.mxu0 0
    %2351 = vmatpush2.bf16.msra.mxu0 0
    %2352 = vmatprep.subr.bf16.mxu0 0
    %2353 = vmatpush2.bf16.msra.mxu0 0
    %2354 = vmatprep.subr.bf16.mxu0 0
    %2355 = vmatpush2.bf16.msra.mxu0 0
    %2356 = vmatprep.subr.bf16.mxu0 0
    %2357 = vmatpush2.bf16.msra.mxu0 0
    %2358 = vmatprep.subr.bf16.mxu0 0
    %2359 = vmatpush2.bf16.msra.mxu0 0
    %2360 = vmatprep.subr.bf16.mxu0 0
    %2361 = vmatpush2.bf16.msra.mxu0 0
    %2362 = vmatprep.mubr.bf16.mxu0 0
    %2363 = vmatmul.mubr.bf16.gmra.mxu0 %v2257
    %v2364 = vpop.f32.mrf.mxu0
    %v2365 = vadd.f32 %v2280, %v2364
    %v2366 = vpop.f32.mrf.mxu0
    %v2367 = vpop.f32.mrf.mxu0
    %v2368 = vadd.f32 %v2280, %v2367
    %v2369 = vpop.f32.mrf.mxu0
    %2370 = vmatprep.mubr.bf16.mxu0 0
    %2371 = vmatmul.mubr.bf16.gmra.mxu0 %v2258
    %v2372 = vpop.f32.mrf.mxu0
    %v2373 = vadd.f32 %v2280, %v2372
    %v2374 = vpop.f32.mrf.mxu0
    %v2375 = vpop.f32.mrf.mxu0
    %v2376 = vadd.f32 %v2280, %v2375
    %v2377 = vpop.f32.mrf.mxu0
    %2378 = vdwg.mxu0
    %2379 = vst [vmem:[#allocation41] sm:$0xff] %v2365
    %2380 = vst [vmem:[#allocation41 + $0x8] sm:$0xff] %v2368
    %2381 = vst [vmem:[#allocation41 + $0x10] sm:$0xff] %v2373
    %2382 = vst [vmem:[#allocation41 + $0x18] sm:$0xff] %v2376
    // Predicated region
    $region206: #{tpu_custom_call.1} parent=1 // pred_check
      _
    $region207: #{tpu_custom_call.1} parent=1 // pred_check_branch
      %2384 = sbr.rel (0) target = $region209
    $region208: #{tpu_custom_call.1} parent=1 // pred_region
      %s2386 = ssub.s32 256, 256
      %2387 = vsyncadd [#allocation6], %s2386
      %s2388 = sshll.u32 [#allocation40], 4
      %s2389 = int_to_ptr.vmem [resolvable:$true] %s2388
      %2394 = dma.vmem_to_hbm [thread:$0]  %s2389, 256, %s57, [#allocation6], 128, 128, 8
    $region209: #{tpu_custom_call.1} parent=1 // pred_fallthru
      _
    // Predicated region
    $region210: #{tpu_custom_call.1} parent=1 // pred_check
      _
    $region211: #{tpu_custom_call.1} parent=1 // pred_check_branch
      %2396 = sbr.rel (0) target = $region213
    $region212: #{tpu_custom_call.1} parent=1 // pred_region
      %s2398 = ssub.s32 512, 512
      %2399 = vsyncadd [#allocation42], %s2398
      %s2400 = sshll.u32 [#allocation41], 4
      %s2401 = int_to_ptr.vmem [resolvable:$true] %s2400
      %2406 = dma.vmem_to_hbm [thread:$0]  %s2401, 512, %s59, [#allocation42], 128, 128, 8
    $region213: #{tpu_custom_call.1} parent=1 // pred_fallthru
      _
    // Predicated region
    $region214: #{tpu_custom_call.1} parent=1 // pred_check
      _
    $region215: #{tpu_custom_call.1} parent=1 // pred_check_branch
      %2408 = sbr.rel (0) target = $region217
    $region216: #{tpu_custom_call.1} parent=1 // pred_region
      %2409 = dma.done [#allocation6], 256
    $region217: #{tpu_custom_call.1} parent=1 // pred_fallthru
      _
    // Predicated region
    $region218: #{tpu_custom_call.1} parent=1 // pred_check
      _
    $region219: #{tpu_custom_call.1} parent=1 // pred_check_branch
      %2411 = sbr.rel (0) target = $region221
    $region220: #{tpu_custom_call.1} parent=1 // pred_region
      %2412 = dma.done [#allocation42], 512
    $region221: #{tpu_custom_call.1} parent=1 // pred_fallthru
      _
    %2413 = vsyncpa [#allocation5], 1
    %2414 = vsyncpa [#allocation8], 1
    %2415 = vsyncpa [#allocation11], 1
    %2416 = vsyncpa [#allocation14], 1
    %2417 = vsyncpa [#allocation17], 1
    %2418 = vsyncpa [#allocation20], 1
    %2419 = vsyncpa [#allocation23], 1
    %2420 = vsyncpa [#allocation26], 1
    %2421 = vsyncpa [#allocation29], 1
    %2422 = vsyncpa [#allocation32], 1
    %2423 = vsyncpa [#allocation35], 1
    %2424 = vsyncpa [#allocation38], 1
    %2425 = vsyncpa [#allocation6], 1
    %2426 = vsyncpa [#allocation42], 1

// kernel: tpu_custom_call.1
$region0: #{tpu_custom_call.1}
  #allocation0 [shape = 'u32[]', space=smem, size = 0x4, offset = 0x4, fixed_abs, tag = 'smem constant byte address 0x4 - core index']
  #allocation1 [shape = 'u32[144,128]{1,0:T(1,128)}', space=vmem, size = 0x12000, scoped, tag = 'internal scratch']
  #allocation2 [shape = 'f32[16,128]{1,0:T(8,128)}', space=vmem, size = 0x2000, scoped, tag = 'scratch operand']
  #allocation3 [shape = 'f32[32,128]{1,0:T(8,128)}', space=vmem, size = 0x4000, scoped, tag = 'scratch operand']
  %s0 = inlined_call_operand.smem [shape: u32[30], index: -1, kind: input, shape index: {}]
  %s1 = sld [smem:[%s0]]
  %s2 = scalar_lea.smem %s0, 1
  %s3 = sld [smem:[%s2]]
  %s4 = scalar_lea.smem %s0, 2
  %s5 = sld [smem:[%s4]]
  %s6 = scalar_lea.smem %s0, 3
  %s7 = sld [smem:[%s6]]
  %s8 = scalar_lea.smem %s0, 4
  %s9 = sld [smem:[%s8]]
  %s10 = scalar_lea.smem %s0, 5
  %s11 = sld [smem:[%s10]]
  %s12 = scalar_lea.smem %s0, 6
  %s13 = sld [smem:[%s12]]
  %s14 = scalar_lea.smem %s0, 7
  %s15 = sld [smem:[%s14]]
  %s16 = scalar_lea.smem %s0, 8
  %s17 = sld [smem:[%s16]]
  %s18 = scalar_lea.smem %s0, 9
  %s19 = sld [smem:[%s18]]
  %s20 = scalar_lea.smem %s0, 10
  %s21 = sld [smem:[%s20]]
  %s22 = scalar_lea.smem %s0, 11
  %s23 = sld [smem:[%s22]]
  %s24 = scalar_lea.smem %s0, 12
  %s25 = sld [smem:[%s24]]
  %s26 = scalar_lea.smem %s0, 13
  %s27 = sld [smem:[%s26]]
  %s28 = scalar_lea.smem %s0, 14
  %s29 = sld [smem:[%s28]]
  %s30 = scalar_lea.smem %s0, 15
  %s31 = sld [smem:[%s30]]
  %s32 = scalar_lea.smem %s0, 16
  %s33 = sld [smem:[%s32]]
  %s34 = scalar_lea.smem %s0, 17
  %s35 = sld [smem:[%s34]]
  %s36 = scalar_lea.smem %s0, 18
  %s37 = sld [smem:[%s36]]
  %s38 = scalar_lea.smem %s0, 19
  %s39 = sld [smem:[%s38]]
  %s40 = scalar_lea.smem %s0, 20
  %s41 = sld [smem:[%s40]]
  %s42 = scalar_lea.smem %s0, 21
  %s43 = sld [smem:[%s42]]
  %s44 = scalar_lea.smem %s0, 22
  %s45 = sld [smem:[%s44]]
  %s46 = scalar_lea.smem %s0, 23
  %s47 = sld [smem:[%s46]]
  %s48 = scalar_lea.smem %s0, 24
  %s49 = sld [smem:[%s48]]
  %s50 = scalar_lea.smem %s0, 25
  %s51 = sld [smem:[%s50]]
  %s52 = scalar_lea.smem %s0, 26
  %s53 = sld [smem:[%s52]]
  %s54 = scalar_lea.smem %s0, 27
  %s55 = sld [smem:[%s54]]
  %s56 = scalar_lea.smem %s0, 28
  %s57 = sld [smem:[%s56]]
  %s58 = scalar_lea.smem %s0, 29
  %s59 = sld [smem:[%s58]]
  %60 = xla_tuple %s57, %s59
  %s61 = sld [smem:[#allocation0]]
  $region222: #{tpu_custom_call.1} parent=0
    _
  %s63 = ssub.s32 1, %s61
  %s64 = scalar_select 0, %s63, %s61
  $region1: #{tpu_custom_call.1} parent=0
    #allocation4 [shape = 'u8[4096]{0}', space=vmem, size = 0x1000, scoped, tag = 'input window, operand 0, single buffered']
    #allocation5 [shape = 's32[1]{0}', space=sflag, size = 0x4, scoped, tag = 'scoped memory for tpu_custom_call.1']
    #allocation6 [shape = 's32[1]{0}', space=sflag, size = 0x4, scoped, tag = 'scoped memory for tpu_custom_call.1']
    #allocation7 [shape = 'u8[8192]{0}', space=vmem, size = 0x2000, scoped, tag = 'input window, operand 1, single buffered']
    #allocation8 [shape = 's32[1]{0}', space=sflag, size = 0x4, scoped, tag = 'scoped memory for tpu_custom_call.1']
    #allocation9 [shape = 'u8[4096]{0}', space=vmem, size = 0x1000, scoped, tag = 'input window, operand 2, single buffered']
    #allocation10 [shape = 'u8[32768]{0}', space=vmem, size = 0x8000, scoped, tag = 'input window, operand 4, single buffered']
    #allocation11 [shape = 's32[1]{0}', space=sflag, size = 0x4, scoped, tag = 'scoped memory for tpu_custom_call.1']
    #allocation12 [shape = 'u8[512]{0}', space=vmem, size = 0x400, scoped, tag = 'input window, operand 5, single buffered']
    #allocation13 [shape = 'u8[32768]{0}', space=vmem, size = 0x8000, scoped, tag = 'input window, operand 6, single buffered']
    #allocation14 [shape = 's32[1]{0}', space=sflag, size = 0x4, scoped, tag = 'scoped memory for tpu_custom_call.1']
    #allocation15 [shape = 'u8[512]{0}', space=vmem, size = 0x400, scoped, tag = 'input window, operand 7, single buffered']
    #allocation16 [shape = 'u8[65536]{0}', space=vmem, size = 0x10000, scoped, tag = 'input window, operand 8, single buffered']
    #allocation17 [shape = 's32[1]{0}', space=sflag, size = 0x4, scoped, tag = 'scoped memory for tpu_custom_call.1']
    #allocation18 [shape = 'u8[512]{0}', space=vmem, size = 0x400, scoped, tag = 'input window, operand 9, single buffered']
    #allocation19 [shape = 'u8[65536]{0}', space=vmem, size = 0x10000, scoped, tag = 'input window, operand 10, single buffered']
    #allocation20 [shape = 's32[1]{0}', space=sflag, size = 0x4, scoped, tag = 'scoped memory for tpu_custom_call.1']
    #allocation21 [shape = 'u8[512]{0}', space=vmem, size = 0x400, scoped, tag = 'input window, operand 11, single buffered']
    #allocation22 [shape = 'u8[65536]{0}', space=vmem, size = 0x10000, scoped, tag = 'input window, operand 12, single buffered']
    #allocation23 [shape = 's32[1]{0}', space=sflag, size = 0x4, scoped, tag = 'scoped memory for tpu_custom_call.1']
    #allocation24 [shape = 'u8[512]{0}', space=vmem, size = 0x400, scoped, tag = 'input window, operand 13, single buffered']
    #allocation25 [shape = 'u8[65536]{0}', space=vmem, size = 0x10000, scoped, tag = 'input window, operand 14, single buffered']
    #allocation26 [shape = 's32[1]{0}', space=sflag, size = 0x4, scoped, tag = 'scoped memory for tpu_custom_call.1']
    #allocation27 [shape = 'u8[512]{0}', space=vmem, size = 0x400, scoped, tag = 'input window, operand 15, single buffered']
    #allocation28 [shape = 'u8[512]{0}', space=vmem, size = 0x400, scoped, tag = 'input window, operand 16, single buffered']
    #allocation29 [shape = 's32[1]{0}', space=sflag, size = 0x4, scoped, tag = 'scoped memory for tpu_custom_call.1']
    #allocation30 [shape = 'u8[512]{0}', space=vmem, size = 0x400, scoped, tag = 'input window, operand 17, single buffered']
    #allocation31 [shape = 'u8[512]{0}', space=vmem, size = 0x400, scoped, tag = 'input window, operand 18, single buffered']
    #allocation32 [shape = 's32[1]{0}', space=sflag, size = 0x4, scoped, tag = 'scoped memory for tpu_custom_call.1']
    #allocation33 [shape = 'u8[512]{0}', space=vmem, size = 0x400, scoped, tag = 'input window, operand 19, single buffered']
    #allocation34 [shape = 'u8[32768]{0}', space=vmem, size = 0x8000, scoped, tag = 'input window, operand 20, single buffered']
    #allocation35 [shape = 's32[1]{0}', space=sflag, size = 0x4, scoped, tag = 'scoped memory for tpu_custom_call.1']
    #allocation36 [shape = 'u8[512]{0}', space=vmem, size = 0x400, scoped, tag = 'input window, operand 21, single buffered']
    #allocation37 [shape = 'u8[32768]{0}', space=vmem, size = 0x8000, scoped, tag = 'input window, operand 24, single buffered']
    #allocation38 [shape = 's32[1]{0}', space=sflag, size = 0x4, scoped, tag = 'scoped memory for tpu_custom_call.1']
    #allocation39 [shape = 'u8[32768]{0}', space=vmem, size = 0x8000, scoped, tag = 'input window, operand 26, single buffered']
    #allocation40 [shape = 'u8[8192]{0}', space=vmem, size = 0x2000, scoped, tag = 'output window, operand 0, single buffered']
    #allocation41 [shape = 'u8[16384]{0}', space=vmem, size = 0x4000, scoped, tag = 'output window, operand 1, single buffered']
    #allocation42 [shape = 's32[1]{0}', space=sflag, size = 0x4, scoped, tag = 'scoped memory for tpu_custom_call.1']
    %65 = vsyncpa [#allocation5], 0
    %66 = vsyncpa [#allocation8], 0
    %67 = vsyncpa [#allocation11], 0
    %68 = vsyncpa [#allocation14], 0
    %69 = vsyncpa [#allocation17], 0
    %70 = vsyncpa [#allocation20], 0
    %71 = vsyncpa [#allocation23], 0
    %72 = vsyncpa [#allocation26], 0
    %73 = vsyncpa [#allocation29], 0
    %74 = vsyncpa [#allocation32], 0
    %75 = vsyncpa [#allocation35], 0
    %76 = vsyncpa [#allocation38], 0
    %77 = vsyncpa [#allocation6], 0
    %78 = vsyncpa [#allocation42], 0
    // Predicated region
    $region2: #{tpu_custom_call.1} parent=1 // pred_check
      _
    $region3: #{tpu_custom_call.1} parent=1 // pred_check_branch
      %80 = sbr.rel (0) target = $region5
    $region4: #{tpu_custom_call.1} parent=1 // pred_region
      %s82 = ssub.s32 128, 128
      %83 = vsyncadd [#allocation5], %s82
      %s84 = sshll.u32 [#allocation4], 4
      %s85 = int_to_ptr.vmem [resolvable:$true] %s84
      %90 = dma.hbm_to_vmem [thread:$0]  %s1, 128, %s85, [#allocation5], 64, 64, 4
    $region5: #{tpu_custom_call.1} parent=1 // pred_fallthru
      _
    // Predicated region
    $region6: #{tpu_custom_call.1} parent=1 // pred_check
      _
    $region7: #{tpu_custom_call.1} parent=1 // pred_check_branch
      %92 = sbr.rel (0) target = $region9
    $region8: #{tpu_custom_call.1} parent=1 // pred_region
      %s94 = ssub.s32 256, 256
      %95 = vsyncadd [#allocation8], %s94
      %s96 = sshll.u32 [#allocation7], 4
      %s97 = int_to_ptr.vmem [resolvable:$true] %s96
      %102 = dma.hbm_to_vmem [thread:$0]  %s3, 256, %s97, [#allocation8], 64, 64, 4
    $region9: #{tpu_custom_call.1} parent=1 // pred_fallthru
      _
    // Predicated region
    $region10: #{tpu_custom_call.1} parent=1 // pred_check
      _
    $region11: #{tpu_custom_call.1} parent=1 // pred_check_branch
      %104 = sbr.rel (0) target = $region13
    $region12: #{tpu_custom_call.1} parent=1 // pred_region
      %s106 = ssub.s32 128, 128
      %107 = vsyncadd [#allocation8], %s106
      %s108 = sshll.u32 [#allocation9], 4
      %s109 = int_to_ptr.vmem [resolvable:$true] %s108
      %114 = dma.hbm_to_vmem [thread:$0]  %s5, 128, %s109, [#allocation8], 64, 64, 4
    $region13: #{tpu_custom_call.1} parent=1 // pred_fallthru
      _
    // Predicated region
    $region14: #{tpu_custom_call.1} parent=1 // pred_check
      _
    $region15: #{tpu_custom_call.1} parent=1 // pred_check_branch
      %116 = sbr.rel (0) target = $region17
    $region16: #{tpu_custom_call.1} parent=1 // pred_region
      _
    $region17: #{tpu_custom_call.1} parent=1 // pred_fallthru
      _
    // Predicated region
    $region18: #{tpu_custom_call.1} parent=1 // pred_check
      _
    $region19: #{tpu_custom_call.1} parent=1 // pred_check_branch
      %118 = sbr.rel (0) target = $region21
    $region20: #{tpu_custom_call.1} parent=1 // pred_region
      %s120 = ssub.s32 1024, 1024
      %121 = vsyncadd [#allocation11], %s120
      %s122 = sshll.u32 [#allocation10], 4
      %s123 = int_to_ptr.vmem [resolvable:$true] %s122
      %128 = dma.hbm_to_vmem [thread:$0]  %s9, 1024, %s123, [#allocation11], 64, 64, 4
    $region21: #{tpu_custom_call.1} parent=1 // pred_fallthru
      _
    // Predicated region
    $region22: #{tpu_custom_call.1} parent=1 // pred_check
      _
    $region23: #{tpu_custom_call.1} parent=1 // pred_check_branch
      %130 = sbr.rel (0) target = $region25
    $region24: #{tpu_custom_call.1} parent=1 // pred_region
      %s132 = ssub.s32 16, 16
      %133 = vsyncadd [#allocation11], %s132
      %s135 = sshll.u32 [#allocation12], 4
      %s136 = int_to_ptr.vmem [resolvable:$true] %s135
      %138 = dma.hbm_to_vmem [thread:$0]  %s11, 16, %s136, [#allocation11]
    $region25: #{tpu_custom_call.1} parent=1 // pred_fallthru
      _
    // Predicated region
    $region26: #{tpu_custom_call.1} parent=1 // pred_check
      _
    $region27: #{tpu_custom_call.1} parent=1 // pred_check_branch
      %140 = sbr.rel (0) target = $region29
    $region28: #{tpu_custom_call.1} parent=1 // pred_region
      %s142 = ssub.s32 1024, 1024
      %143 = vsyncadd [#allocation14], %s142
      %s144 = sshll.u32 [#allocation13], 4
      %s145 = int_to_ptr.vmem [resolvable:$true] %s144
      %150 = dma.hbm_to_vmem [thread:$0]  %s13, 1024, %s145, [#allocation14], 64, 64, 4
    $region29: #{tpu_custom_call.1} parent=1 // pred_fallthru
      _
    // Predicated region
    $region30: #{tpu_custom_call.1} parent=1 // pred_check
      _
    $region31: #{tpu_custom_call.1} parent=1 // pred_check_branch
      %152 = sbr.rel (0) target = $region33
    $region32: #{tpu_custom_call.1} parent=1 // pred_region
      %s154 = ssub.s32 16, 16
      %155 = vsyncadd [#allocation14], %s154
      %s157 = sshll.u32 [#allocation15], 4
      %s158 = int_to_ptr.vmem [resolvable:$true] %s157
      %160 = dma.hbm_to_vmem [thread:$0]  %s15, 16, %s158, [#allocation14]
    $region33: #{tpu_custom_call.1} parent=1 // pred_fallthru
      _
    // Predicated region
    $region34: #{tpu_custom_call.1} parent=1 // pred_check
      _
    $region35: #{tpu_custom_call.1} parent=1 // pred_check_branch
      %162 = sbr.rel (0) target = $region37
    $region36: #{tpu_custom_call.1} parent=1 // pred_region
      %s164 = ssub.s32 2048, 2048
      %165 = vsyncadd [#allocation17], %s164
      %s166 = sshll.u32 [#allocation16], 4
      %s167 = int_to_ptr.vmem [resolvable:$true] %s166
      %172 = dma.hbm_to_vmem [thread:$0]  %s17, 2048, %s167, [#allocation17], 64, 64, 4
    $region37: #{tpu_custom_call.1} parent=1 // pred_fallthru
      _
    // Predicated region
    $region38: #{tpu_custom_call.1} parent=1 // pred_check
      _
    $region39: #{tpu_custom_call.1} parent=1 // pred_check_branch
      %174 = sbr.rel (0) target = $region41
    $region40: #{tpu_custom_call.1} parent=1 // pred_region
      %s176 = ssub.s32 16, 16
      %177 = vsyncadd [#allocation17], %s176
      %s179 = sshll.u32 [#allocation18], 4
      %s180 = int_to_ptr.vmem [resolvable:$true] %s179
      %182 = dma.hbm_to_vmem [thread:$0]  %s19, 16, %s180, [#allocation17]
    $region41: #{tpu_custom_call.1} parent=1 // pred_fallthru
      _
    // Predicated region
    $region42: #{tpu_custom_call.1} parent=1 // pred_check
      _
    $region43: #{tpu_custom_call.1} parent=1 // pred_check_branch
      %184 = sbr.rel (0) target = $region45
    $region44: #{tpu_custom_call.1} parent=1 // pred_region
      %s186 = ssub.s32 2048, 2048
      %187 = vsyncadd [#allocation20], %s186
      %s188 = sshll.u32 [#allocation19], 4
      %s189 = int_to_ptr.vmem [resolvable:$true] %s188
      %194 = dma.hbm_to_vmem [thread:$0]  %s21, 2048, %s189, [#allocation20], 64, 64, 4
    $region45: #{tpu_custom_call.1} parent=1 // pred_fallthru
      _
    // Predicated region
    $region46: #{tpu_custom_call.1} parent=1 // pred_check
      _
    $region47: #{tpu_custom_call.1} parent=1 // pred_check_branch
      %196 = sbr.rel (0) target = $region49
    $region48: #{tpu_custom_call.1} parent=1 // pred_region
      %s198 = ssub.s32 16, 16
      %199 = vsyncadd [#allocation20], %s198
      %s201 = sshll.u32 [#allocation21], 4
      %s202 = int_to_ptr.vmem [resolvable:$true] %s201
      %204 = dma.hbm_to_vmem [thread:$0]  %s23, 16, %s202, [#allocation20]
    $region49: #{tpu_custom_call.1} parent=1 // pred_fallthru
      _
    // Predicated region
    $region50: #{tpu_custom_call.1} parent=1 // pred_check
      _
    $region51: #{tpu_custom_call.1} parent=1 // pred_check_branch
      %206 = sbr.rel (0) target = $region53
    $region52: #{tpu_custom_call.1} parent=1 // pred_region
      %s208 = ssub.s32 2048, 2048
      %209 = vsyncadd [#allocation23], %s208
      %s210 = sshll.u32 [#allocation22], 4
      %s211 = int_to_ptr.vmem [resolvable:$true] %s210
      %216 = dma.hbm_to_vmem [thread:$0]  %s25, 2048, %s211, [#allocation23], 64, 64, 4
    $region53: #{tpu_custom_call.1} parent=1 // pred_fallthru
      _
    // Predicated region
    $region54: #{tpu_custom_call.1} parent=1 // pred_check
      _
    $region55: #{tpu_custom_call.1} parent=1 // pred_check_branch
      %218 = sbr.rel (0) target = $region57
    $region56: #{tpu_custom_call.1} parent=1 // pred_region
      %s220 = ssub.s32 16, 16
      %221 = vsyncadd [#allocation23], %s220
      %s223 = sshll.u32 [#allocation24], 4
      %s224 = int_to_ptr.vmem [resolvable:$true] %s223
      %226 = dma.hbm_to_vmem [thread:$0]  %s27, 16, %s224, [#allocation23]
    $region57: #{tpu_custom_call.1} parent=1 // pred_fallthru
      _
    // Predicated region
    $region58: #{tpu_custom_call.1} parent=1 // pred_check
      _
    $region59: #{tpu_custom_call.1} parent=1 // pred_check_branch
      %228 = sbr.rel (0) target = $region61
    $region60: #{tpu_custom_call.1} parent=1 // pred_region
      %s230 = ssub.s32 2048, 2048
      %231 = vsyncadd [#allocation26], %s230
      %s232 = sshll.u32 [#allocation25], 4
      %s233 = int_to_ptr.vmem [resolvable:$true] %s232
      %238 = dma.hbm_to_vmem [thread:$0]  %s29, 2048, %s233, [#allocation26], 64, 64, 4
    $region61: #{tpu_custom_call.1} parent=1 // pred_fallthru
      _
    // Predicated region
    $region62: #{tpu_custom_call.1} parent=1 // pred_check
      _
    $region63: #{tpu_custom_call.1} parent=1 // pred_check_branch
      %240 = sbr.rel (0) target = $region65
    $region64: #{tpu_custom_call.1} parent=1 // pred_region
      %s242 = ssub.s32 16, 16
      %243 = vsyncadd [#allocation26], %s242
      %s245 = sshll.u32 [#allocation27], 4
      %s246 = int_to_ptr.vmem [resolvable:$true] %s245
      %248 = dma.hbm_to_vmem [thread:$0]  %s31, 16, %s246, [#allocation26]
    $region65: #{tpu_custom_call.1} parent=1 // pred_fallthru
      _
    // Predicated region
    $region66: #{tpu_custom_call.1} parent=1 // pred_check
      _
    $region67: #{tpu_custom_call.1} parent=1 // pred_check_branch
      %250 = sbr.rel (0) target = $region69
    $region68: #{tpu_custom_call.1} parent=1 // pred_region
      %s252 = ssub.s32 16, 16
      %253 = vsyncadd [#allocation29], %s252
      %s255 = sshll.u32 [#allocation28], 4
      %s256 = int_to_ptr.vmem [resolvable:$true] %s255
      %258 = dma.hbm_to_vmem [thread:$0]  %s33, 16, %s256, [#allocation29]
    $region69: #{tpu_custom_call.1} parent=1 // pred_fallthru
      _
    // Predicated region
    $region70: #{tpu_custom_call.1} parent=1 // pred_check
      _
    $region71: #{tpu_custom_call.1} parent=1 // pred_check_branch
      %260 = sbr.rel (0) target = $region73
    $region72: #{tpu_custom_call.1} parent=1 // pred_region
      %s262 = ssub.s32 16, 16
      %263 = vsyncadd [#allocation29], %s262
      %s265 = sshll.u32 [#allocation30], 4
      %s266 = int_to_ptr.vmem [resolvable:$true] %s265
      %268 = dma.hbm_to_vmem [thread:$0]  %s35, 16, %s266, [#allocation29]
    $region73: #{tpu_custom_call.1} parent=1 // pred_fallthru
      _
    // Predicated region
    $region74: #{tpu_custom_call.1} parent=1 // pred_check
      _
    $region75: #{tpu_custom_call.1} parent=1 // pred_check_branch
      %270 = sbr.rel (0) target = $region77
    $region76: #{tpu_custom_call.1} parent=1 // pred_region
      %s272 = ssub.s32 16, 16
      %273 = vsyncadd [#allocation32], %s272
      %s275 = sshll.u32 [#allocation31], 4
      %s276 = int_to_ptr.vmem [resolvable:$true] %s275
      %278 = dma.hbm_to_vmem [thread:$0]  %s37, 16, %s276, [#allocation32]
    $region77: #{tpu_custom_call.1} parent=1 // pred_fallthru
      _
    // Predicated region
    $region78: #{tpu_custom_call.1} parent=1 // pred_check
      _
    $region79: #{tpu_custom_call.1} parent=1 // pred_check_branch
      %280 = sbr.rel (0) target = $region81
    $region80: #{tpu_custom_call.1} parent=1 // pred_region
      %s282 = ssub.s32 16, 16
      %283 = vsyncadd [#allocation32], %s282
      %s285 = sshll.u32 [#allocation33], 4
      %s286 = int_to_ptr.vmem [resolvable:$true] %s285
      %288 = dma.hbm_to_vmem [thread:$0]  %s39, 16, %s286, [#allocation32]
    $region81: #{tpu_custom_call.1} parent=1 // pred_fallthru
      _
    // Predicated region
    $region82: #{tpu_custom_call.1} parent=1 // pred_check
      _
    $region83: #{tpu_custom_call.1} parent=1 // pred_check_branch
      %290 = sbr.rel (0) target = $region85
    $region84: #{tpu_custom_call.1} parent=1 // pred_region
      %s292 = ssub.s32 1024, 1024
      %293 = vsyncadd [#allocation35], %s292
      %s294 = sshll.u32 [#allocation34], 4
      %s295 = int_to_ptr.vmem [resolvable:$true] %s294
      %300 = dma.hbm_to_vmem [thread:$0]  %s41, 1024, %s295, [#allocation35], 64, 64, 4
    $region85: #{tpu_custom_call.1} parent=1 // pred_fallthru
      _
    // Predicated region
    $region86: #{tpu_custom_call.1} parent=1 // pred_check
      _
    $region87: #{tpu_custom_call.1} parent=1 // pred_check_branch
      %302 = sbr.rel (0) target = $region89
    $region88: #{tpu_custom_call.1} parent=1 // pred_region
      %s304 = ssub.s32 16, 16
      %305 = vsyncadd [#allocation35], %s304
      %s307 = sshll.u32 [#allocation36], 4
      %s308 = int_to_ptr.vmem [resolvable:$true] %s307
      %310 = dma.hbm_to_vmem [thread:$0]  %s43, 16, %s308, [#allocation35]
    $region89: #{tpu_custom_call.1} parent=1 // pred_fallthru
      _
    // Predicated region
    $region90: #{tpu_custom_call.1} parent=1 // pred_check
      _
    $region91: #{tpu_custom_call.1} parent=1 // pred_check_branch
      %312 = sbr.rel (0) target = $region93
    $region92: #{tpu_custom_call.1} parent=1 // pred_region
      _
    $region93: #{tpu_custom_call.1} parent=1 // pred_fallthru
      _
    // Predicated region
    $region94: #{tpu_custom_call.1} parent=1 // pred_check
      _
    $region95: #{tpu_custom_call.1} parent=1 // pred_check_branch
      %314 = sbr.rel (0) target = $region97
    $region96: #{tpu_custom_call.1} parent=1 // pred_region
      _
    $region97: #{tpu_custom_call.1} parent=1 // pred_fallthru
      _
    // Predicated region
    $region98: #{tpu_custom_call.1} parent=1 // pred_check
      _
    $region99: #{tpu_custom_call.1} parent=1 // pred_check_branch
      %316 = sbr.rel (0) target = $region101
    $region100: #{tpu_custom_call.1} parent=1 // pred_region
      %s318 = ssub.s32 1024, 1024
      %319 = vsyncadd [#allocation38], %s318
      %s320 = sshll.u32 [#allocation37], 4
      %s321 = int_to_ptr.vmem [resolvable:$true] %s320
      %326 = dma.hbm_to_vmem [thread:$0]  %s49, 1024, %s321, [#allocation38], 64, 64, 4
    $region101: #{tpu_custom_call.1} parent=1 // pred_fallthru
      _
    // Predicated region
    $region102: #{tpu_custom_call.1} parent=1 // pred_check
      _
    $region103: #{tpu_custom_call.1} parent=1 // pred_check_branch
      %328 = sbr.rel (0) target = $region105
    $region104: #{tpu_custom_call.1} parent=1 // pred_region
      _
    $region105: #{tpu_custom_call.1} parent=1 // pred_fallthru
      _
    // Predicated region
    $region106: #{tpu_custom_call.1} parent=1 // pred_check
      _
    $region107: #{tpu_custom_call.1} parent=1 // pred_check_branch
      %330 = sbr.rel (0) target = $region109
    $region108: #{tpu_custom_call.1} parent=1 // pred_region
      %s332 = ssub.s32 1024, 1024
      %333 = vsyncadd [#allocation38], %s332
      %s334 = sshll.u32 [#allocation39], 4
      %s335 = int_to_ptr.vmem [resolvable:$true] %s334
      %340 = dma.hbm_to_vmem [thread:$0]  %s53, 1024, %s335, [#allocation38], 64, 64, 4
    $region109: #{tpu_custom_call.1} parent=1 // pred_fallthru
      _
    // Predicated region
    $region110: #{tpu_custom_call.1} parent=1 // pred_check
      _
    $region111: #{tpu_custom_call.1} parent=1 // pred_check_branch
      %342 = sbr.rel (0) target = $region113
    $region112: #{tpu_custom_call.1} parent=1 // pred_region
      _
    $region113: #{tpu_custom_call.1} parent=1 // pred_fallthru
      _
    // Predicated region
    $region114: #{tpu_custom_call.1} parent=1 // pred_check
      _
    $region115: #{tpu_custom_call.1} parent=1 // pred_check_branch
      %344 = sbr.rel (0) target = $region117
    $region116: #{tpu_custom_call.1} parent=1 // pred_region
      %345 = dma.done [#allocation5], 128
    $region117: #{tpu_custom_call.1} parent=1 // pred_fallthru
      _
    // Predicated region
    $region118: #{tpu_custom_call.1} parent=1 // pred_check
      _
    $region119: #{tpu_custom_call.1} parent=1 // pred_check_branch
      %347 = sbr.rel (0) target = $region121
    $region120: #{tpu_custom_call.1} parent=1 // pred_region
      %348 = dma.done [#allocation8], 256
    $region121: #{tpu_custom_call.1} parent=1 // pred_fallthru
      _
    // Predicated region
    $region122: #{tpu_custom_call.1} parent=1 // pred_check
      _
    $region123: #{tpu_custom_call.1} parent=1 // pred_check_branch
      %350 = sbr.rel (0) target = $region125
    $region124: #{tpu_custom_call.1} parent=1 // pred_region
      %351 = dma.done [#allocation8], 128
    $region125: #{tpu_custom_call.1} parent=1 // pred_fallthru
      _
    // Predicated region
    $region126: #{tpu_custom_call.1} parent=1 // pred_check
      _
    $region127: #{tpu_custom_call.1} parent=1 // pred_check_branch
      %353 = sbr.rel (0) target = $region129
    $region128: #{tpu_custom_call.1} parent=1 // pred_region
      %354 = dma.done [#allocation11], 1024
    $region129: #{tpu_custom_call.1} parent=1 // pred_fallthru
      _
    // Predicated region
    $region130: #{tpu_custom_call.1} parent=1 // pred_check
      _
    $region131: #{tpu_custom_call.1} parent=1 // pred_check_branch
      %356 = sbr.rel (0) target = $region133
    $region132: #{tpu_custom_call.1} parent=1 // pred_region
      %357 = dma.done [#allocation11], 16
    $region133: #{tpu_custom_call.1} parent=1 // pred_fallthru
      _
    // Predicated region
    $region134: #{tpu_custom_call.1} parent=1 // pred_check
      _
    $region135: #{tpu_custom_call.1} parent=1 // pred_check_branch
      %359 = sbr.rel (0) target = $region137
    $region136: #{tpu_custom_call.1} parent=1 // pred_region
      %360 = dma.done [#allocation14], 1024
    $region137: #{tpu_custom_call.1} parent=1 // pred_fallthru
      _
    // Predicated region
    $region138: #{tpu_custom_call.1} parent=1 // pred_check
      _
    $region139: #{tpu_custom_call.1} parent=1 // pred_check_branch
      %362 = sbr.rel (0) target = $region141
    $region140: #{tpu_custom_call.1} parent=1 // pred_region
      %363 = dma.done [#allocation14], 16
    $region141: #{tpu_custom_call.1} parent=1 // pred_fallthru
      _
    // Predicated region
    $region142: #{tpu_custom_call.1} parent=1 // pred_check
      _
    $region143: #{tpu_custom_call.1} parent=1 // pred_check_branch
      %365 = sbr.rel (0) target = $region145
    $region144: #{tpu_custom_call.1} parent=1 // pred_region
      %366 = dma.done [#allocation17], 2048
    $region145: #{tpu_custom_call.1} parent=1 // pred_fallthru
      _
    // Predicated region
    $region146: #{tpu_custom_call.1} parent=1 // pred_check
      _
    $region147: #{tpu_custom_call.1} parent=1 // pred_check_branch
      %368 = sbr.rel (0) target = $region149
    $region148: #{tpu_custom_call.1} parent=1 // pred_region
      %369 = dma.done [#allocation17], 16
    $region149: #{tpu_custom_call.1} parent=1 // pred_fallthru
      _
    // Predicated region
    $region150: #{tpu_custom_call.1} parent=1 // pred_check
      _
    $region151: #{tpu_custom_call.1} parent=1 // pred_check_branch
      %371 = sbr.rel (0) target = $region153
    $region152: #{tpu_custom_call.1} parent=1 // pred_region
      %372 = dma.done [#allocation20], 2048
    $region153: #{tpu_custom_call.1} parent=1 // pred_fallthru
      _
    // Predicated region
    $region154: #{tpu_custom_call.1} parent=1 // pred_check
      _
    $region155: #{tpu_custom_call.1} parent=1 // pred_check_branch
      %374 = sbr.rel (0) target = $region157
    $region156: #{tpu_custom_call.1} parent=1 // pred_region
      %375 = dma.done [#allocation20], 16
    $region157: #{tpu_custom_call.1} parent=1 // pred_fallthru
      _
    // Predicated region
    $region158: #{tpu_custom_call.1} parent=1 // pred_check
      _
    $region159: #{tpu_custom_call.1} parent=1 // pred_check_branch
      %377 = sbr.rel (0) target = $region161
    $region160: #{tpu_custom_call.1} parent=1 // pred_region
      %378 = dma.done [#allocation23], 2048
    $region161: #{tpu_custom_call.1} parent=1 // pred_fallthru
      _
    // Predicated region
    $region162: #{tpu_custom_call.1} parent=1 // pred_check
      _
    $region163: #{tpu_custom_call.1} parent=1 // pred_check_branch
      %380 = sbr.rel (0) target = $region165
    $region164: #{tpu_custom_call.1} parent=1 // pred_region
      %381 = dma.done [#allocation23], 16
    $region165: #{tpu_custom_call.1} parent=1 // pred_fallthru
      _
    // Predicated region
    $region166: #{tpu_custom_call.1} parent=1 // pred_check
      _
    $region167: #{tpu_custom_call.1} parent=1 // pred_check_branch
      %383 = sbr.rel (0) target = $region169
    $region168: #{tpu_custom_call.1} parent=1 // pred_region
      %384 = dma.done [#allocation26], 2048
    $region169: #{tpu_custom_call.1} parent=1 // pred_fallthru
      _
    // Predicated region
    $region170: #{tpu_custom_call.1} parent=1 // pred_check
      _
    $region171: #{tpu_custom_call.1} parent=1 // pred_check_branch
      %386 = sbr.rel (0) target = $region173
    $region172: #{tpu_custom_call.1} parent=1 // pred_region
      %387 = dma.done [#allocation26], 16
    $region173: #{tpu_custom_call.1} parent=1 // pred_fallthru
      _
    // Predicated region
    $region174: #{tpu_custom_call.1} parent=1 // pred_check
      _
    $region175: #{tpu_custom_call.1} parent=1 // pred_check_branch
      %389 = sbr.rel (0) target = $region177
    $region176: #{tpu_custom_call.1} parent=1 // pred_region
      %390 = dma.done [#allocation29], 16
    $region177: #{tpu_custom_call.1} parent=1 // pred_fallthru
      _
    // Predicated region
    $region178: #{tpu_custom_call.1} parent=1 // pred_check
      _
    $region179: #{tpu_custom_call.1} parent=1 // pred_check_branch
      %392 = sbr.rel (0) target = $region181
    $region180: #{tpu_custom_call.1} parent=1 // pred_region
      %393 = dma.done [#allocation29], 16
    $region181: #{tpu_custom_call.1} parent=1 // pred_fallthru
      _
    // Predicated region
    $region182: #{tpu_custom_call.1} parent=1 // pred_check
      _
    $region183: #{tpu_custom_call.1} parent=1 // pred_check_branch
      %395 = sbr.rel (0) target = $region185
    $region184: #{tpu_custom_call.1} parent=1 // pred_region
      %396 = dma.done [#allocation32], 16
    $region185: #{tpu_custom_call.1} parent=1 // pred_fallthru
      _
    // Predicated region
    $region186: #{tpu_custom_call.1} parent=1 // pred_check
      _
    $region187: #{tpu_custom_call.1} parent=1 // pred_check_branch
      %398 = sbr.rel (0) target = $region189
    $region188: #{tpu_custom_call.1} parent=1 // pred_region
      %399 = dma.done [#allocation32], 16
    $region189: #{tpu_custom_call.1} parent=1 // pred_fallthru
      _
    // Predicated region
    $region190: #{tpu_custom_call.1} parent=1 // pred_check
      _
    $region191: #{tpu_custom_call.1} parent=1 // pred_check_branch
      %401 = sbr.rel (0) target = $region193
    $region192: #{tpu_custom_call.1} parent=1 // pred_region
      %402 = dma.done [#allocation35], 1024
    $region193: #{tpu_custom_call.1} parent=1 // pred_fallthru
      _
    // Predicated region
    $region194: #{tpu_custom_call.1} parent=1 // pred_check
      _
    $region195: #{tpu_custom_call.1} parent=1 // pred_check_branch
      %404 = sbr.rel (0) target = $region197
    $region196: #{tpu_custom_call.1} parent=1 // pred_region
      %405 = dma.done [#allocation35], 16
    $region197: #{tpu_custom_call.1} parent=1 // pred_fallthru
      _
    // Predicated region
    $region198: #{tpu_custom_call.1} parent=1 // pred_check
      _
    $region199: #{tpu_custom_call.1} parent=1 // pred_check_branch
      %407 = sbr.rel (0) target = $region201
    $region200: #{tpu_custom_call.1} parent=1 // pred_region
      %408 = dma.done [#allocation38], 1024
    $region201: #{tpu_custom_call.1} parent=1 // pred_fallthru
      _
    // Predicated region
    $region202: #{tpu_custom_call.1} parent=1 // pred_check
      _
    $region203: #{tpu_custom_call.1} parent=1 // pred_check_branch
      %410 = sbr.rel (0) target = $region205
    $region204: #{tpu_custom_call.1} parent=1 // pred_region
      %411 = dma.done [#allocation38], 1024
    $region205: #{tpu_custom_call.1} parent=1 // pred_fallthru
      _
    %v413 = vlaneseq
    %v414 = vand.u32 %v413, 127
    %vm415 = vcmp.lt.s32.totalorder %v414, 32
    %v416 = vsel %vm415, 1, 0
    %v417 = vcvt.s32.f32 %v416
    %v418 = vld [vmem:[#allocation9] sm:$0xf]
    %v419 = vld [vmem:[#allocation9 + $0x4] sm:$0xf]
    %v420 = vld [vmem:[%s7] sm:$0xf]
    %v421 = vld [vmem:[%s7 + $0x4] sm:$0xf]
    %v422 = vld [vmem:[%s7 + $0x8] sm:$0xf]
    %v423 = vld [vmem:[%s7 + $0xc] sm:$0xf]
    %v424 = vld [vmem:[#allocation28] sm:$0x1]
    %v425 = vld [vmem:[#allocation30] sm:$0x1]
    %v426 = vld [vmem:[#allocation31] sm:$0x1]
    %v427 = vld [vmem:[#allocation33] sm:$0x1]
    %v428 = vld [vmem:[#allocation4] sm:$0xf]
    %v429 = vld [vmem:[#allocation4 + $0x4] sm:$0xf]
    %v430 = vld [vmem:[#allocation10] sm:$0xf]
    %v431 = vld [vmem:[#allocation10 + $0x4] sm:$0xf]
    %v432 = vld [vmem:[#allocation10 + $0x8] sm:$0xf]
    %v433 = vld [vmem:[#allocation10 + $0xc] sm:$0xf]
    %v434 = vld [vmem:[#allocation10 + $0x10] sm:$0xf]
    %v435 = vld [vmem:[#allocation10 + $0x14] sm:$0xf]
    %v436 = vld [vmem:[#allocation10 + $0x18] sm:$0xf]
    %v437 = vld [vmem:[#allocation10 + $0x1c] sm:$0xf]
    %v438 = vld [vmem:[#allocation10 + $0x20] sm:$0xf]
    %v439 = vld [vmem:[#allocation10 + $0x24] sm:$0xf]
    %v440 = vld [vmem:[#allocation10 + $0x28] sm:$0xf]
    %v441 = vld [vmem:[#allocation10 + $0x2c] sm:$0xf]
    %v442 = vld [vmem:[#allocation10 + $0x30] sm:$0xf]
    %v443 = vld [vmem:[#allocation10 + $0x34] sm:$0xf]
    %v444 = vld [vmem:[#allocation10 + $0x38] sm:$0xf]
    %v445 = vld [vmem:[#allocation10 + $0x3c] sm:$0xf]
    %v446 = vld [vmem:[#allocation12] sm:$0x1]
    %v448 = vlaneseq
    %v449 = vshrl.u32 %v448, 7
    %v450 = vsub.s32 0, %v449
    %v451 = vrot.slane %v446, %v450
    %v455 = vunpack.c.l.b16 %v428
    %v456 = vunpack.c.l.b16 %v429
    %v457 = vpack.c.b16 %v456, %v455
    %v475 = vunpack.c.l.b16 %v430
    %v476 = vunpack.c.l.b16 %v431
    %v477 = vunpack.c.l.b16 %v432
    %v478 = vunpack.c.l.b16 %v433
    %v479 = vunpack.c.l.b16 %v434
    %v480 = vunpack.c.l.b16 %v435
    %v481 = vunpack.c.l.b16 %v436
    %v482 = vunpack.c.l.b16 %v437
    %v483 = vunpack.c.l.b16 %v438
    %v484 = vunpack.c.l.b16 %v439
    %v485 = vunpack.c.l.b16 %v440
    %v486 = vunpack.c.l.b16 %v441
    %v487 = vunpack.c.l.b16 %v442
    %v488 = vunpack.c.l.b16 %v443
    %v489 = vunpack.c.l.b16 %v444
    %v490 = vunpack.c.l.b16 %v445
    %v491 = vpack.c.b16 %v476, %v475
    %v492 = vpack.c.b16 %v478, %v477
    %v493 = vpack.c.b16 %v480, %v479
    %v494 = vpack.c.b16 %v482, %v481
    %v495 = vpack.c.b16 %v484, %v483
    %v496 = vpack.c.b16 %v486, %v485
    %v497 = vpack.c.b16 %v488, %v487
    %v498 = vpack.c.b16 %v490, %v489
    %507 = vmatprep.subr.bf16.mxu0 0
    %508 = vmatpush1.bf16.msra.mxu0 %v498
    %509 = vmatprep.subr.bf16.mxu0 0
    %510 = vmatpush1.bf16.msra.mxu0 %v497
    %511 = vmatprep.subr.bf16.mxu0 0
    %512 = vmatpush1.bf16.msra.mxu0 %v496
    %513 = vmatprep.subr.bf16.mxu0 0
    %514 = vmatpush1.bf16.msra.mxu0 %v495
    %515 = vmatprep.subr.bf16.mxu0 0
    %516 = vmatpush1.bf16.msra.mxu0 %v494
    %517 = vmatprep.subr.bf16.mxu0 0
    %518 = vmatpush1.bf16.msra.mxu0 %v493
    %519 = vmatprep.subr.bf16.mxu0 0
    %520 = vmatpush1.bf16.msra.mxu0 %v492
    %521 = vmatprep.subr.bf16.mxu0 0
    %522 = vmatpush1.bf16.msra.mxu0 %v491
    %523 = vmatprep.subr.bf16.mxu0 0
    %524 = vmatpush2.bf16.msra.mxu0 0
    %525 = vmatprep.subr.bf16.mxu0 0
    %526 = vmatpush2.bf16.msra.mxu0 0
    %527 = vmatprep.subr.bf16.mxu0 0
    %528 = vmatpush2.bf16.msra.mxu0 0
    %529 = vmatprep.subr.bf16.mxu0 0
    %530 = vmatpush2.bf16.msra.mxu0 0
    %531 = vmatprep.subr.bf16.mxu0 0
    %532 = vmatpush2.bf16.msra.mxu0 0
    %533 = vmatprep.subr.bf16.mxu0 0
    %534 = vmatpush2.bf16.msra.mxu0 0
    %535 = vmatprep.subr.bf16.mxu0 0
    %536 = vmatpush2.bf16.msra.mxu0 0
    %537 = vmatprep.subr.bf16.mxu0 0
    %538 = vmatpush2.bf16.msra.mxu0 0
    %539 = vmatprep.mubr.bf16.mxu0 0
    %540 = vmatmul.mubr.bf16.gmra.mxu0 %v457
    %v541 = vpop.f32.mrf.mxu0
    %v542 = vadd.f32 %v451, %v541
    %v543 = vpop.f32.mrf.mxu0
    %v544 = vpop.f32.mrf.mxu0
    %v545 = vadd.f32 %v451, %v544
    %v546 = vpop.f32.mrf.mxu0
    %547 = vdwg.mxu0
    %548 = vst [vmem:[#allocation2] sm:$0xff] %v542
    %549 = vst [vmem:[#allocation2 + $0x8] sm:$0xff] %v545
    %v550 = vld [vmem:[#allocation7] sm:$0xf]
    %v551 = vld [vmem:[#allocation7 + $0x4] sm:$0xf]
    %v552 = vld [vmem:[#allocation7 + $0x8] sm:$0xf]
    %v553 = vld [vmem:[#allocation7 + $0xc] sm:$0xf]
    %v554 = vld [vmem:[#allocation13] sm:$0xf]
    %v555 = vld [vmem:[#allocation13 + $0x4] sm:$0xf]
    %v556 = vld [vmem:[#allocation13 + $0x8] sm:$0xf]
    %v557 = vld [vmem:[#allocation13 + $0xc] sm:$0xf]
    %v558 = vld [vmem:[#allocation13 + $0x10] sm:$0xf]
    %v559 = vld [vmem:[#allocation13 + $0x14] sm:$0xf]
    %v560 = vld [vmem:[#allocation13 + $0x18] sm:$0xf]
    %v561 = vld [vmem:[#allocation13 + $0x1c] sm:$0xf]
    %v562 = vld [vmem:[#allocation13 + $0x20] sm:$0xf]
    %v563 = vld [vmem:[#allocation13 + $0x24] sm:$0xf]
    %v564 = vld [vmem:[#allocation13 + $0x28] sm:$0xf]
    %v565 = vld [vmem:[#allocation13 + $0x2c] sm:$0xf]
    %v566 = vld [vmem:[#allocation13 + $0x30] sm:$0xf]
    %v567 = vld [vmem:[#allocation13 + $0x34] sm:$0xf]
    %v568 = vld [vmem:[#allocation13 + $0x38] sm:$0xf]
    %v569 = vld [vmem:[#allocation13 + $0x3c] sm:$0xf]
    %v570 = vld [vmem:[#allocation15] sm:$0x1]
    %v572 = vlaneseq
    %v573 = vshrl.u32 %v572, 7
    %v574 = vsub.s32 0, %v573
    %v575 = vrot.slane %v570, %v574
    %v581 = vunpack.c.l.b16 %v550
    %v582 = vunpack.c.l.b16 %v551
    %v583 = vunpack.c.l.b16 %v552
    %v584 = vunpack.c.l.b16 %v553
    %v585 = vpack.c.b16 %v582, %v581
    %v586 = vpack.c.b16 %v584, %v583
    %v605 = vunpack.c.l.b16 %v554
    %v606 = vunpack.c.l.b16 %v555
    %v607 = vunpack.c.l.b16 %v556
    %v608 = vunpack.c.l.b16 %v557
    %v609 = vunpack.c.l.b16 %v558
    %v610 = vunpack.c.l.b16 %v559
    %v611 = vunpack.c.l.b16 %v560
    %v612 = vunpack.c.l.b16 %v561
    %v613 = vunpack.c.l.b16 %v562
    %v614 = vunpack.c.l.b16 %v563
    %v615 = vunpack.c.l.b16 %v564
    %v616 = vunpack.c.l.b16 %v565
    %v617 = vunpack.c.l.b16 %v566
    %v618 = vunpack.c.l.b16 %v567
    %v619 = vunpack.c.l.b16 %v568
    %v620 = vunpack.c.l.b16 %v569
    %v621 = vpack.c.b16 %v606, %v605
    %v622 = vpack.c.b16 %v608, %v607
    %v623 = vpack.c.b16 %v610, %v609
    %v624 = vpack.c.b16 %v612, %v611
    %v625 = vpack.c.b16 %v614, %v613
    %v626 = vpack.c.b16 %v616, %v615
    %v627 = vpack.c.b16 %v618, %v617
    %v628 = vpack.c.b16 %v620, %v619
    %637 = vmatprep.subr.bf16.mxu0 0
    %638 = vmatpush1.bf16.msra.mxu0 %v628
    %639 = vmatprep.subr.bf16.mxu0 0
    %640 = vmatpush1.bf16.msra.mxu0 %v627
    %641 = vmatprep.subr.bf16.mxu0 0
    %642 = vmatpush1.bf16.msra.mxu0 %v626
    %643 = vmatprep.subr.bf16.mxu0 0
    %644 = vmatpush1.bf16.msra.mxu0 %v625
    %645 = vmatprep.subr.bf16.mxu0 0
    %646 = vmatpush1.bf16.msra.mxu0 %v624
    %647 = vmatprep.subr.bf16.mxu0 0
    %648 = vmatpush1.bf16.msra.mxu0 %v623
    %649 = vmatprep.subr.bf16.mxu0 0
    %650 = vmatpush1.bf16.msra.mxu0 %v622
    %651 = vmatprep.subr.bf16.mxu0 0
    %652 = vmatpush1.bf16.msra.mxu0 %v621
    %653 = vmatprep.subr.bf16.mxu0 0
    %654 = vmatpush2.bf16.msra.mxu0 0
    %655 = vmatprep.subr.bf16.mxu0 0
    %656 = vmatpush2.bf16.msra.mxu0 0
    %657 = vmatprep.subr.bf16.mxu0 0
    %658 = vmatpush2.bf16.msra.mxu0 0
    %659 = vmatprep.subr.bf16.mxu0 0
    %660 = vmatpush2.bf16.msra.mxu0 0
    %661 = vmatprep.subr.bf16.mxu0 0
    %662 = vmatpush2.bf16.msra.mxu0 0
    %663 = vmatprep.subr.bf16.mxu0 0
    %664 = vmatpush2.bf16.msra.mxu0 0
    %665 = vmatprep.subr.bf16.mxu0 0
    %666 = vmatpush2.bf16.msra.mxu0 0
    %667 = vmatprep.subr.bf16.mxu0 0
    %668 = vmatpush2.bf16.msra.mxu0 0
    %669 = vmatprep.mubr.bf16.mxu0 0
    %670 = vmatmul.mubr.bf16.gmra.mxu0 %v585
    %v671 = vpop.f32.mrf.mxu0
    %v672 = vadd.f32 %v575, %v671
    %v673 = vpop.f32.mrf.mxu0
    %v674 = vpop.f32.mrf.mxu0
    %v675 = vadd.f32 %v575, %v674
    %v676 = vpop.f32.mrf.mxu0
    %677 = vmatprep.mubr.bf16.mxu0 0
    %678 = vmatmul.mubr.bf16.gmra.mxu0 %v586
    %v679 = vpop.f32.mrf.mxu0
    %v680 = vadd.f32 %v575, %v679
    %v681 = vpop.f32.mrf.mxu0
    %v682 = vpop.f32.mrf.mxu0
    %v683 = vadd.f32 %v575, %v682
    %v684 = vpop.f32.mrf.mxu0
    %685 = vdwg.mxu0
    %686 = vst [vmem:[#allocation3] sm:$0xff] %v672
    %687 = vst [vmem:[#allocation3 + $0x8] sm:$0xff] %v675
    %688 = vst [vmem:[#allocation3 + $0x10] sm:$0xff] %v680
    %689 = vst [vmem:[#allocation3 + $0x18] sm:$0xff] %v683
    %v690 = vld [vmem:[#allocation2] sm:$0xff]
    %v691 = vld [vmem:[#allocation2 + $0x8] sm:$0xff]
    %v692 = vld [vmem:[#allocation3] sm:$0xff]
    %v693 = vld [vmem:[#allocation3 + $0x8] sm:$0xff]
    %v694 = vld [vmem:[#allocation3 + $0x10] sm:$0xff]
    %v695 = vld [vmem:[#allocation3 + $0x18] sm:$0xff]
    %v696 = vpack.c.bf16 %v691, %v690
    %v697 = vpack.c.bf16 %v693, %v692
    %v698 = vpack.c.bf16 %v695, %v694
    %v701 = vunpack.c.l.b16 %v418
    %v702 = vunpack.c.l.b16 %v419
    %v703 = vpack.c.b16 %v702, %v701
    %vm704 = vcmask 261120
    %v706 = vsel %vm704, %v703, 0
    %708 = vmatprep.subr.bf16.mxu0 0
    %709 = vmatpush1.bf16.msra.mxu0 0
    %710 = vmatprep.subr.bf16.mxu0 0
    %711 = vmatpush1.bf16.msra.mxu0 0
    %712 = vmatprep.subr.bf16.mxu0 0
    %713 = vmatpush1.bf16.msra.mxu0 0
    %714 = vmatprep.subr.bf16.mxu0 0
    %715 = vmatpush1.bf16.msra.mxu0 0
    %716 = vmatprep.subr.bf16.mxu0 0
    %717 = vmatpush1.bf16.msra.mxu0 0
    %718 = vmatprep.subr.bf16.mxu0 0
    %719 = vmatpush1.bf16.msra.mxu0 0
    %720 = vmatprep.subr.bf16.mxu0 0
    %721 = vmatpush1.bf16.msra.mxu0 %v698
    %722 = vmatprep.subr.bf16.mxu0 0
    %723 = vmatpush1.bf16.msra.mxu0 %v697
    %724 = vmatprep.subr.bf16.mxu0 0
    %725 = vmatpush2.bf16.msra.mxu0 0
    %726 = vmatprep.subr.bf16.mxu0 0
    %727 = vmatpush2.bf16.msra.mxu0 0
    %728 = vmatprep.subr.bf16.mxu0 0
    %729 = vmatpush2.bf16.msra.mxu0 0
    %730 = vmatprep.subr.bf16.mxu0 0
    %731 = vmatpush2.bf16.msra.mxu0 0
    %732 = vmatprep.subr.bf16.mxu0 0
    %733 = vmatpush2.bf16.msra.mxu0 0
    %734 = vmatprep.subr.bf16.mxu0 0
    %735 = vmatpush2.bf16.msra.mxu0 0
    %736 = vmatprep.subr.bf16.mxu0 0
    %737 = vmatpush2.bf16.msra.mxu0 0
    %738 = vmatprep.subr.bf16.mxu0 0
    %739 = vmatpush2.bf16.msra.mxu0 0
    %740 = vmatprep.mubr.bf16.mxu0 0
    %741 = vmatmul.mubr.bf16.gmra.mxu0 %v706
    %v742 = vpop.f32.mrf.mxu0
    %v743 = vadd.f32 0.0, %v742
    %v744 = vpop.f32.mrf.mxu0
    %v745 = vpop.f32.mrf.mxu0
    %v746 = vadd.f32 0.0, %v745
    %v747 = vpop.f32.mrf.mxu0
    %748 = vdwg.mxu0
    %v749 = vpack.c.bf16 %v746, %v743
    %v750 = vld [vmem:[#allocation16] sm:$0xf]
    %v751 = vld [vmem:[#allocation16 + $0x4] sm:$0xf]
    %v752 = vld [vmem:[#allocation16 + $0x8] sm:$0xf]
    %v753 = vld [vmem:[#allocation16 + $0xc] sm:$0xf]
    %v754 = vld [vmem:[#allocation16 + $0x10] sm:$0xf]
    %v755 = vld [vmem:[#allocation16 + $0x14] sm:$0xf]
    %v756 = vld [vmem:[#allocation16 + $0x18] sm:$0xf]
    %v757 = vld [vmem:[#allocation16 + $0x1c] sm:$0xf]
    %v758 = vld [vmem:[#allocation16 + $0x20] sm:$0xf]
    %v759 = vld [vmem:[#allocation16 + $0x24] sm:$0xf]
    %v760 = vld [vmem:[#allocation16 + $0x28] sm:$0xf]
    %v761 = vld [vmem:[#allocation16 + $0x2c] sm:$0xf]
    %v762 = vld [vmem:[#allocation16 + $0x30] sm:$0xf]
    %v763 = vld [vmem:[#allocation16 + $0x34] sm:$0xf]
    %v764 = vld [vmem:[#allocation16 + $0x38] sm:$0xf]
    %v765 = vld [vmem:[#allocation16 + $0x3c] sm:$0xf]
    %v766 = vld [vmem:[#allocation16 + $0x40] sm:$0xf]
    %v767 = vld [vmem:[#allocation16 + $0x44] sm:$0xf]
    %v768 = vld [vmem:[#allocation16 + $0x48] sm:$0xf]
    %v769 = vld [vmem:[#allocation16 + $0x4c] sm:$0xf]
    %v770 = vld [vmem:[#allocation16 + $0x50] sm:$0xf]
    %v771 = vld [vmem:[#allocation16 + $0x54] sm:$0xf]
    %v772 = vld [vmem:[#allocation16 + $0x58] sm:$0xf]
    %v773 = vld [vmem:[#allocation16 + $0x5c] sm:$0xf]
    %v774 = vld [vmem:[#allocation16 + $0x60] sm:$0xf]
    %v775 = vld [vmem:[#allocation16 + $0x64] sm:$0xf]
    %v776 = vld [vmem:[#allocation16 + $0x68] sm:$0xf]
    %v777 = vld [vmem:[#allocation16 + $0x6c] sm:$0xf]
    %v778 = vld [vmem:[#allocation16 + $0x70] sm:$0xf]
    %v779 = vld [vmem:[#allocation16 + $0x74] sm:$0xf]
    %v780 = vld [vmem:[#allocation16 + $0x78] sm:$0xf]
    %v781 = vld [vmem:[#allocation16 + $0x7c] sm:$0xf]
    %v782 = vld [vmem:[#allocation18] sm:$0x1]
    %v784 = vlaneseq
    %v785 = vshrl.u32 %v784, 7
    %v786 = vsub.s32 0, %v785
    %v787 = vrot.slane %v782, %v786
    %v821 = vunpack.c.l.b16 %v750
    %v822 = vunpack.c.l.b16 %v751
    %v823 = vunpack.c.l.b16 %v752
    %v824 = vunpack.c.l.b16 %v753
    %v825 = vunpack.c.l.b16 %v754
    %v826 = vunpack.c.l.b16 %v755
    %v827 = vunpack.c.l.b16 %v756
    %v828 = vunpack.c.l.b16 %v757
    %v829 = vunpack.c.l.b16 %v758
    %v830 = vunpack.c.l.b16 %v759
    %v831 = vunpack.c.l.b16 %v760
    %v832 = vunpack.c.l.b16 %v761
    %v833 = vunpack.c.l.b16 %v762
    %v834 = vunpack.c.l.b16 %v763
    %v835 = vunpack.c.l.b16 %v764
    %v836 = vunpack.c.l.b16 %v765
    %v837 = vunpack.c.l.b16 %v766
    %v838 = vunpack.c.l.b16 %v767
    %v839 = vunpack.c.l.b16 %v768
    %v840 = vunpack.c.l.b16 %v769
    %v841 = vunpack.c.l.b16 %v770
    %v842 = vunpack.c.l.b16 %v771
    %v843 = vunpack.c.l.b16 %v772
    %v844 = vunpack.c.l.b16 %v773
    %v845 = vunpack.c.l.b16 %v774
    %v846 = vunpack.c.l.b16 %v775
    %v847 = vunpack.c.l.b16 %v776
    %v848 = vunpack.c.l.b16 %v777
    %v849 = vunpack.c.l.b16 %v778
    %v850 = vunpack.c.l.b16 %v779
    %v851 = vunpack.c.l.b16 %v780
    %v852 = vunpack.c.l.b16 %v781
    %v853 = vpack.c.b16 %v822, %v821
    %v854 = vpack.c.b16 %v824, %v823
    %v855 = vpack.c.b16 %v826, %v825
    %v856 = vpack.c.b16 %v828, %v827
    %v857 = vpack.c.b16 %v830, %v829
    %v858 = vpack.c.b16 %v832, %v831
    %v859 = vpack.c.b16 %v834, %v833
    %v860 = vpack.c.b16 %v836, %v835
    %v861 = vpack.c.b16 %v838, %v837
    %v862 = vpack.c.b16 %v840, %v839
    %v863 = vpack.c.b16 %v842, %v841
    %v864 = vpack.c.b16 %v844, %v843
    %v865 = vpack.c.b16 %v846, %v845
    %v866 = vpack.c.b16 %v848, %v847
    %v867 = vpack.c.b16 %v850, %v849
    %v868 = vpack.c.b16 %v852, %v851
    %885 = vmatprep.subr.bf16.mxu0 0
    %886 = vmatpush1.bf16.msra.mxu0 %v860
    %887 = vmatprep.subr.bf16.mxu0 0
    %888 = vmatpush1.bf16.msra.mxu0 %v859
    %889 = vmatprep.subr.bf16.mxu0 0
    %890 = vmatpush1.bf16.msra.mxu0 %v858
    %891 = vmatprep.subr.bf16.mxu0 0
    %892 = vmatpush1.bf16.msra.mxu0 %v857
    %893 = vmatprep.subr.bf16.mxu0 0
    %894 = vmatpush1.bf16.msra.mxu0 %v856
    %895 = vmatprep.subr.bf16.mxu0 0
    %896 = vmatpush1.bf16.msra.mxu0 %v855
    %897 = vmatprep.subr.bf16.mxu0 0
    %898 = vmatpush1.bf16.msra.mxu0 %v854
    %899 = vmatprep.subr.bf16.mxu0 0
    %900 = vmatpush1.bf16.msra.mxu0 %v853
    %901 = vmatprep.subr.bf16.mxu0 0
    %902 = vmatpush2.bf16.msra.mxu0 %v868
    %903 = vmatprep.subr.bf16.mxu0 0
    %904 = vmatpush2.bf16.msra.mxu0 %v867
    %905 = vmatprep.subr.bf16.mxu0 0
    %906 = vmatpush2.bf16.msra.mxu0 %v866
    %907 = vmatprep.subr.bf16.mxu0 0
    %908 = vmatpush2.bf16.msra.mxu0 %v865
    %909 = vmatprep.subr.bf16.mxu0 0
    %910 = vmatpush2.bf16.msra.mxu0 %v864
    %911 = vmatprep.subr.bf16.mxu0 0
    %912 = vmatpush2.bf16.msra.mxu0 %v863
    %913 = vmatprep.subr.bf16.mxu0 0
    %914 = vmatpush2.bf16.msra.mxu0 %v862
    %915 = vmatprep.subr.bf16.mxu0 0
    %916 = vmatpush2.bf16.msra.mxu0 %v861
    %917 = vmatprep.mubr.bf16.mxu0 %v749
    %918 = vmatmul.mubr.bf16.gmra.mxu0 %v696
    %v919 = vpop.f32.mrf.mxu0
    %v920 = vadd.f32 %v787, %v919
    %v921 = vpop.f32.mrf.mxu0
    %v922 = vpop.f32.mrf.mxu0
    %v923 = vadd.f32 %v787, %v922
    %v924 = vpop.f32.mrf.mxu0
    %925 = vdwg.mxu0
    %v930 = vunpack.c.l.b16 %v420
    %v931 = vunpack.c.l.b16 %v421
    %v932 = vunpack.c.l.b16 %v422
    %v933 = vunpack.c.l.b16 %v423
    %v934 = vpack.c.b16 %v931, %v930
    %v935 = vpack.c.b16 %v933, %v932
    %vm936 = vcmask 130048
    %v938 = vsel %vm936, %v934, 0
    %v941 = vsel %vm936, %v935, 0
    %943 = vmatprep.subr.bf16.mxu0 0
    %944 = vmatpush1.bf16.msra.mxu0 0
    %945 = vmatprep.subr.bf16.mxu0 0
    %946 = vmatpush1.bf16.msra.mxu0 0
    %947 = vmatprep.subr.bf16.mxu0 0
    %948 = vmatpush1.bf16.msra.mxu0 0
    %949 = vmatprep.subr.bf16.mxu0 0
    %950 = vmatpush1.bf16.msra.mxu0 0
    %951 = vmatprep.subr.bf16.mxu0 0
    %952 = vmatpush1.bf16.msra.mxu0 0
    %953 = vmatprep.subr.bf16.mxu0 0
    %954 = vmatpush1.bf16.msra.mxu0 0
    %955 = vmatprep.subr.bf16.mxu0 0
    %956 = vmatpush1.bf16.msra.mxu0 0
    %957 = vmatprep.subr.bf16.mxu0 0
    %958 = vmatpush1.bf16.msra.mxu0 %v696
    %959 = vmatprep.subr.bf16.mxu0 0
    %960 = vmatpush2.bf16.msra.mxu0 0
    %961 = vmatprep.subr.bf16.mxu0 0
    %962 = vmatpush2.bf16.msra.mxu0 0
    %963 = vmatprep.subr.bf16.mxu0 0
    %964 = vmatpush2.bf16.msra.mxu0 0
    %965 = vmatprep.subr.bf16.mxu0 0
    %966 = vmatpush2.bf16.msra.mxu0 0
    %967 = vmatprep.subr.bf16.mxu0 0
    %968 = vmatpush2.bf16.msra.mxu0 0
    %969 = vmatprep.subr.bf16.mxu0 0
    %970 = vmatpush2.bf16.msra.mxu0 0
    %971 = vmatprep.subr.bf16.mxu0 0
    %972 = vmatpush2.bf16.msra.mxu0 0
    %973 = vmatprep.subr.bf16.mxu0 0
    %974 = vmatpush2.bf16.msra.mxu0 0
    %975 = vmatprep.mubr.bf16.mxu0 0
    %976 = vmatmul.mubr.bf16.gmra.mxu0 %v938
    %v977 = vpop.f32.mrf.mxu0
    %v978 = vadd.f32 0.0, %v977
    %v979 = vpop.f32.mrf.mxu0
    %v980 = vpop.f32.mrf.mxu0
    %v981 = vadd.f32 0.0, %v980
    %v982 = vpop.f32.mrf.mxu0
    %983 = vmatprep.mubr.bf16.mxu0 0
    %984 = vmatmul.mubr.bf16.gmra.mxu0 %v941
    %v985 = vpop.f32.mrf.mxu0
    %v986 = vadd.f32 0.0, %v985
    %v987 = vpop.f32.mrf.mxu0
    %v988 = vpop.f32.mrf.mxu0
    %v989 = vadd.f32 0.0, %v988
    %v990 = vpop.f32.mrf.mxu0
    %991 = vdwg.mxu0
    %v992 = vpack.c.bf16 %v981, %v978
    %v993 = vpack.c.bf16 %v989, %v986
    %v994 = vld [vmem:[#allocation19] sm:$0xf]
    %v995 = vld [vmem:[#allocation19 + $0x4] sm:$0xf]
    %v996 = vld [vmem:[#allocation19 + $0x8] sm:$0xf]
    %v997 = vld [vmem:[#allocation19 + $0xc] sm:$0xf]
    %v998 = vld [vmem:[#allocation19 + $0x10] sm:$0xf]
    %v999 = vld [vmem:[#allocation19 + $0x14] sm:$0xf]
    %v1000 = vld [vmem:[#allocation19 + $0x18] sm:$0xf]
    %v1001 = vld [vmem:[#allocation19 + $0x1c] sm:$0xf]
    %v1002 = vld [vmem:[#allocation19 + $0x20] sm:$0xf]
    %v1003 = vld [vmem:[#allocation19 + $0x24] sm:$0xf]
    %v1004 = vld [vmem:[#allocation19 + $0x28] sm:$0xf]
    %v1005 = vld [vmem:[#allocation19 + $0x2c] sm:$0xf]
    %v1006 = vld [vmem:[#allocation19 + $0x30] sm:$0xf]
    %v1007 = vld [vmem:[#allocation19 + $0x34] sm:$0xf]
    %v1008 = vld [vmem:[#allocation19 + $0x38] sm:$0xf]
    %v1009 = vld [vmem:[#allocation19 + $0x3c] sm:$0xf]
    %v1010 = vld [vmem:[#allocation19 + $0x40] sm:$0xf]
    %v1011 = vld [vmem:[#allocation19 + $0x44] sm:$0xf]
    %v1012 = vld [vmem:[#allocation19 + $0x48] sm:$0xf]
    %v1013 = vld [vmem:[#allocation19 + $0x4c] sm:$0xf]
    %v1014 = vld [vmem:[#allocation19 + $0x50] sm:$0xf]
    %v1015 = vld [vmem:[#allocation19 + $0x54] sm:$0xf]
    %v1016 = vld [vmem:[#allocation19 + $0x58] sm:$0xf]
    %v1017 = vld [vmem:[#allocation19 + $0x5c] sm:$0xf]
    %v1018 = vld [vmem:[#allocation19 + $0x60] sm:$0xf]
    %v1019 = vld [vmem:[#allocation19 + $0x64] sm:$0xf]
    %v1020 = vld [vmem:[#allocation19 + $0x68] sm:$0xf]
    %v1021 = vld [vmem:[#allocation19 + $0x6c] sm:$0xf]
    %v1022 = vld [vmem:[#allocation19 + $0x70] sm:$0xf]
    %v1023 = vld [vmem:[#allocation19 + $0x74] sm:$0xf]
    %v1024 = vld [vmem:[#allocation19 + $0x78] sm:$0xf]
    %v1025 = vld [vmem:[#allocation19 + $0x7c] sm:$0xf]
    %v1026 = vld [vmem:[#allocation21] sm:$0x1]
    %v1028 = vlaneseq
    %v1029 = vshrl.u32 %v1028, 7
    %v1030 = vsub.s32 0, %v1029
    %v1031 = vrot.slane %v1026, %v1030
    %v1065 = vunpack.c.l.b16 %v994
    %v1066 = vunpack.c.l.b16 %v995
    %v1067 = vunpack.c.l.b16 %v996
    %v1068 = vunpack.c.l.b16 %v997
    %v1069 = vunpack.c.l.b16 %v998
    %v1070 = vunpack.c.l.b16 %v999
    %v1071 = vunpack.c.l.b16 %v1000
    %v1072 = vunpack.c.l.b16 %v1001
    %v1073 = vunpack.c.l.b16 %v1002
    %v1074 = vunpack.c.l.b16 %v1003
    %v1075 = vunpack.c.l.b16 %v1004
    %v1076 = vunpack.c.l.b16 %v1005
    %v1077 = vunpack.c.l.b16 %v1006
    %v1078 = vunpack.c.l.b16 %v1007
    %v1079 = vunpack.c.l.b16 %v1008
    %v1080 = vunpack.c.l.b16 %v1009
    %v1081 = vunpack.c.l.b16 %v1010
    %v1082 = vunpack.c.l.b16 %v1011
    %v1083 = vunpack.c.l.b16 %v1012
    %v1084 = vunpack.c.l.b16 %v1013
    %v1085 = vunpack.c.l.b16 %v1014
    %v1086 = vunpack.c.l.b16 %v1015
    %v1087 = vunpack.c.l.b16 %v1016
    %v1088 = vunpack.c.l.b16 %v1017
    %v1089 = vunpack.c.l.b16 %v1018
    %v1090 = vunpack.c.l.b16 %v1019
    %v1091 = vunpack.c.l.b16 %v1020
    %v1092 = vunpack.c.l.b16 %v1021
    %v1093 = vunpack.c.l.b16 %v1022
    %v1094 = vunpack.c.l.b16 %v1023
    %v1095 = vunpack.c.l.b16 %v1024
    %v1096 = vunpack.c.l.b16 %v1025
    %v1097 = vpack.c.b16 %v1066, %v1065
    %v1098 = vpack.c.b16 %v1068, %v1067
    %v1099 = vpack.c.b16 %v1070, %v1069
    %v1100 = vpack.c.b16 %v1072, %v1071
    %v1101 = vpack.c.b16 %v1074, %v1073
    %v1102 = vpack.c.b16 %v1076, %v1075
    %v1103 = vpack.c.b16 %v1078, %v1077
    %v1104 = vpack.c.b16 %v1080, %v1079
    %v1105 = vpack.c.b16 %v1082, %v1081
    %v1106 = vpack.c.b16 %v1084, %v1083
    %v1107 = vpack.c.b16 %v1086, %v1085
    %v1108 = vpack.c.b16 %v1088, %v1087
    %v1109 = vpack.c.b16 %v1090, %v1089
    %v1110 = vpack.c.b16 %v1092, %v1091
    %v1111 = vpack.c.b16 %v1094, %v1093
    %v1112 = vpack.c.b16 %v1096, %v1095
    %1129 = vmatprep.subr.bf16.mxu0 0
    %1130 = vmatpush1.bf16.msra.mxu0 %v1104
    %1131 = vmatprep.subr.bf16.mxu0 0
    %1132 = vmatpush1.bf16.msra.mxu0 %v1103
    %1133 = vmatprep.subr.bf16.mxu0 0
    %1134 = vmatpush1.bf16.msra.mxu0 %v1102
    %1135 = vmatprep.subr.bf16.mxu0 0
    %1136 = vmatpush1.bf16.msra.mxu0 %v1101
    %1137 = vmatprep.subr.bf16.mxu0 0
    %1138 = vmatpush1.bf16.msra.mxu0 %v1100
    %1139 = vmatprep.subr.bf16.mxu0 0
    %1140 = vmatpush1.bf16.msra.mxu0 %v1099
    %1141 = vmatprep.subr.bf16.mxu0 0
    %1142 = vmatpush1.bf16.msra.mxu0 %v1098
    %1143 = vmatprep.subr.bf16.mxu0 0
    %1144 = vmatpush1.bf16.msra.mxu0 %v1097
    %1145 = vmatprep.subr.bf16.mxu0 0
    %1146 = vmatpush2.bf16.msra.mxu0 %v1112
    %1147 = vmatprep.subr.bf16.mxu0 0
    %1148 = vmatpush2.bf16.msra.mxu0 %v1111
    %1149 = vmatprep.subr.bf16.mxu0 0
    %1150 = vmatpush2.bf16.msra.mxu0 %v1110
    %1151 = vmatprep.subr.bf16.mxu0 0
    %1152 = vmatpush2.bf16.msra.mxu0 %v1109
    %1153 = vmatprep.subr.bf16.mxu0 0
    %1154 = vmatpush2.bf16.msra.mxu0 %v1108
    %1155 = vmatprep.subr.bf16.mxu0 0
    %1156 = vmatpush2.bf16.msra.mxu0 %v1107
    %1157 = vmatprep.subr.bf16.mxu0 0
    %1158 = vmatpush2.bf16.msra.mxu0 %v1106
    %1159 = vmatprep.subr.bf16.mxu0 0
    %1160 = vmatpush2.bf16.msra.mxu0 %v1105
    %1161 = vmatprep.mubr.bf16.mxu0 %v992
    %1162 = vmatmul.mubr.bf16.gmra.mxu0 %v697
    %v1163 = vpop.f32.mrf.mxu0
    %v1164 = vadd.f32 %v1031, %v1163
    %v1165 = vpop.f32.mrf.mxu0
    %v1166 = vpop.f32.mrf.mxu0
    %v1167 = vadd.f32 %v1031, %v1166
    %v1168 = vpop.f32.mrf.mxu0
    %1169 = vmatprep.mubr.bf16.mxu0 %v993
    %1170 = vmatmul.mubr.bf16.gmra.mxu0 %v698
    %v1171 = vpop.f32.mrf.mxu0
    %v1172 = vadd.f32 %v1031, %v1171
    %v1173 = vpop.f32.mrf.mxu0
    %v1174 = vpop.f32.mrf.mxu0
    %v1175 = vadd.f32 %v1031, %v1174
    %v1176 = vpop.f32.mrf.mxu0
    %1177 = vdwg.mxu0
    %v1178 = vmax.f32 %v920, 0.0
    %v1179 = vmax.f32 %v923, 0.0
    %v1180 = vadd.f32 %v1178, %v690
    %v1181 = vadd.f32 %v1179, %v691
    %1182 = vadd.xlane.f32.xlu0 %v1180
    %v1183 = vpop.xlane.xlu0 %1182
    %1184 = vadd.xlane.f32.xlu0 %v1181
    %v1185 = vpop.xlane.xlu0 %1184
    %v1186 = vmul.f32 %v1183, 0.03125
    %v1187 = vmul.f32 %v1185, 0.03125
    %v1188 = vmul.f32 %v1186, %v417
    %v1189 = vmul.f32 %v1187, %v417
    %v1190 = vsub.f32 %v1180, %v1188
    %v1191 = vsub.f32 %v1181, %v1189
    %v1192 = vmul.f32 %v1190, %v1190
    %v1193 = vmul.f32 %v1191, %v1191
    %1194 = vadd.xlane.f32.xlu0 %v1192
    %v1195 = vpop.xlane.xlu0 %1194
    %1196 = vadd.xlane.f32.xlu0 %v1193
    %v1197 = vpop.xlane.xlu0 %1196
    %v1198 = vmul.f32 %v1195, 0.03125
    %v1199 = vmul.f32 %v1197, 0.03125
    %v1200 = vadd.f32 %v1198, 1e-05
    %v1201 = vadd.f32 %v1199, 1e-05
    %v1202 = vrsqrt.pop %v1200
    %v1203 = vrsqrt.pop %v1201
    %v1204 = vmul.f32 %v1190, %v1202
    %v1205 = vmul.f32 %v1191, %v1203
    %v1207 = vlaneseq
    %v1208 = vshrl.u32 %v1207, 7
    %v1209 = vsub.s32 0, %v1208
    %v1210 = vrot.slane %v424, %v1209
    %v1212 = vmul.f32 %v1204, %v1210
    %v1213 = vmul.f32 %v1205, %v1210
    %v1215 = vlaneseq
    %v1216 = vshrl.u32 %v1215, 7
    %v1217 = vsub.s32 0, %v1216
    %v1218 = vrot.slane %v425, %v1217
    %v1220 = vadd.f32 %v1212, %v1218
    %v1221 = vadd.f32 %v1213, %v1218
    %1222 = vst [vmem:[#allocation2] sm:$0xff] %v1220
    %1223 = vst [vmem:[#allocation2 + $0x8] sm:$0xff] %v1221
    %v1224 = vmax.f32 %v1164, 0.0
    %v1225 = vmax.f32 %v1167, 0.0
    %v1226 = vmax.f32 %v1172, 0.0
    %v1227 = vmax.f32 %v1175, 0.0
    %v1228 = vadd.f32 %v1224, %v692
    %v1229 = vadd.f32 %v1225, %v693
    %v1230 = vadd.f32 %v1226, %v694
    %v1231 = vadd.f32 %v1227, %v695
    %1232 = vadd.xlane.f32.xlu0 %v1228
    %v1233 = vpop.xlane.xlu0 %1232
    %1234 = vadd.xlane.f32.xlu0 %v1229
    %v1235 = vpop.xlane.xlu0 %1234
    %1236 = vadd.xlane.f32.xlu0 %v1230
    %v1237 = vpop.xlane.xlu0 %1236
    %1238 = vadd.xlane.f32.xlu0 %v1231
    %v1239 = vpop.xlane.xlu0 %1238
    %v1240 = vmul.f32 %v1233, 0.03125
    %v1241 = vmul.f32 %v1235, 0.03125
    %v1242 = vmul.f32 %v1237, 0.03125
    %v1243 = vmul.f32 %v1239, 0.03125
    %v1244 = vmul.f32 %v1240, %v417
    %v1245 = vmul.f32 %v1241, %v417
    %v1246 = vmul.f32 %v1242, %v417
    %v1247 = vmul.f32 %v1243, %v417
    %v1248 = vsub.f32 %v1228, %v1244
    %v1249 = vsub.f32 %v1229, %v1245
    %v1250 = vsub.f32 %v1230, %v1246
    %v1251 = vsub.f32 %v1231, %v1247
    %v1252 = vmul.f32 %v1248, %v1248
    %v1253 = vmul.f32 %v1249, %v1249
    %v1254 = vmul.f32 %v1250, %v1250
    %v1255 = vmul.f32 %v1251, %v1251
    %1256 = vadd.xlane.f32.xlu0 %v1252
    %v1257 = vpop.xlane.xlu0 %1256
    %1258 = vadd.xlane.f32.xlu0 %v1253
    %v1259 = vpop.xlane.xlu0 %1258
    %1260 = vadd.xlane.f32.xlu0 %v1254
    %v1261 = vpop.xlane.xlu0 %1260
    %1262 = vadd.xlane.f32.xlu0 %v1255
    %v1263 = vpop.xlane.xlu0 %1262
    %v1264 = vmul.f32 %v1257, 0.03125
    %v1265 = vmul.f32 %v1259, 0.03125
    %v1266 = vmul.f32 %v1261, 0.03125
    %v1267 = vmul.f32 %v1263, 0.03125
    %v1268 = vadd.f32 %v1264, 1e-05
    %v1269 = vadd.f32 %v1265, 1e-05
    %v1270 = vadd.f32 %v1266, 1e-05
    %v1271 = vadd.f32 %v1267, 1e-05
    %v1272 = vrsqrt.pop %v1268
    %v1273 = vrsqrt.pop %v1269
    %v1274 = vrsqrt.pop %v1270
    %v1275 = vrsqrt.pop %v1271
    %v1276 = vmul.f32 %v1248, %v1272
    %v1277 = vmul.f32 %v1249, %v1273
    %v1278 = vmul.f32 %v1250, %v1274
    %v1279 = vmul.f32 %v1251, %v1275
    %v1281 = vlaneseq
    %v1282 = vshrl.u32 %v1281, 7
    %v1283 = vsub.s32 0, %v1282
    %v1284 = vrot.slane %v426, %v1283
    %v1286 = vmul.f32 %v1276, %v1284
    %v1287 = vmul.f32 %v1277, %v1284
    %v1288 = vmul.f32 %v1278, %v1284
    %v1289 = vmul.f32 %v1279, %v1284
    %v1291 = vlaneseq
    %v1292 = vshrl.u32 %v1291, 7
    %v1293 = vsub.s32 0, %v1292
    %v1294 = vrot.slane %v427, %v1293
    %v1296 = vadd.f32 %v1286, %v1294
    %v1297 = vadd.f32 %v1287, %v1294
    %v1298 = vadd.f32 %v1288, %v1294
    %v1299 = vadd.f32 %v1289, %v1294
    %1300 = vst [vmem:[#allocation3] sm:$0xff] %v1296
    %1301 = vst [vmem:[#allocation3 + $0x8] sm:$0xff] %v1297
    %1302 = vst [vmem:[#allocation3 + $0x10] sm:$0xff] %v1298
    %1303 = vst [vmem:[#allocation3 + $0x18] sm:$0xff] %v1299
    %v1304 = vld [vmem:[#allocation2] sm:$0xff]
    %v1305 = vld [vmem:[#allocation2 + $0x8] sm:$0xff]
    %v1306 = vld [vmem:[#allocation3] sm:$0xff]
    %v1307 = vld [vmem:[#allocation3 + $0x8] sm:$0xff]
    %v1308 = vld [vmem:[#allocation3 + $0x10] sm:$0xff]
    %v1309 = vld [vmem:[#allocation3 + $0x18] sm:$0xff]
    %v1310 = vpack.c.bf16 %v1305, %v1304
    %v1311 = vpack.c.bf16 %v1307, %v1306
    %v1312 = vpack.c.bf16 %v1309, %v1308
    %1313 = vmatprep.subr.bf16.mxu0 0
    %1314 = vmatpush1.bf16.msra.mxu0 0
    %1315 = vmatprep.subr.bf16.mxu0 0
    %1316 = vmatpush1.bf16.msra.mxu0 0
    %1317 = vmatprep.subr.bf16.mxu0 0
    %1318 = vmatpush1.bf16.msra.mxu0 0
    %1319 = vmatprep.subr.bf16.mxu0 0
    %1320 = vmatpush1.bf16.msra.mxu0 0
    %1321 = vmatprep.subr.bf16.mxu0 0
    %1322 = vmatpush1.bf16.msra.mxu0 0
    %1323 = vmatprep.subr.bf16.mxu0 0
    %1324 = vmatpush1.bf16.msra.mxu0 0
    %1325 = vmatprep.subr.bf16.mxu0 0
    %1326 = vmatpush1.bf16.msra.mxu0 %v1312
    %1327 = vmatprep.subr.bf16.mxu0 0
    %1328 = vmatpush1.bf16.msra.mxu0 %v1311
    %1329 = vmatprep.subr.bf16.mxu0 0
    %1330 = vmatpush2.bf16.msra.mxu0 0
    %1331 = vmatprep.subr.bf16.mxu0 0
    %1332 = vmatpush2.bf16.msra.mxu0 0
    %1333 = vmatprep.subr.bf16.mxu0 0
    %1334 = vmatpush2.bf16.msra.mxu0 0
    %1335 = vmatprep.subr.bf16.mxu0 0
    %1336 = vmatpush2.bf16.msra.mxu0 0
    %1337 = vmatprep.subr.bf16.mxu0 0
    %1338 = vmatpush2.bf16.msra.mxu0 0
    %1339 = vmatprep.subr.bf16.mxu0 0
    %1340 = vmatpush2.bf16.msra.mxu0 0
    %1341 = vmatprep.subr.bf16.mxu0 0
    %1342 = vmatpush2.bf16.msra.mxu0 0
    %1343 = vmatprep.subr.bf16.mxu0 0
    %1344 = vmatpush2.bf16.msra.mxu0 0
    %1345 = vmatprep.mubr.bf16.mxu0 0
    %1346 = vmatmul.mubr.bf16.gmra.mxu0 %v706
    %v1347 = vpop.f32.mrf.mxu0
    %v1348 = vadd.f32 0.0, %v1347
    %v1349 = vpop.f32.mrf.mxu0
    %v1350 = vpop.f32.mrf.mxu0
    %v1351 = vadd.f32 0.0, %v1350
    %v1352 = vpop.f32.mrf.mxu0
    %1353 = vdwg.mxu0
    %v1354 = vpack.c.bf16 %v1351, %v1348
    %v1355 = vld [vmem:[#allocation22] sm:$0xf]
    %v1356 = vld [vmem:[#allocation22 + $0x4] sm:$0xf]
    %v1357 = vld [vmem:[#allocation22 + $0x8] sm:$0xf]
    %v1358 = vld [vmem:[#allocation22 + $0xc] sm:$0xf]
    %v1359 = vld [vmem:[#allocation22 + $0x10] sm:$0xf]
    %v1360 = vld [vmem:[#allocation22 + $0x14] sm:$0xf]
    %v1361 = vld [vmem:[#allocation22 + $0x18] sm:$0xf]
    %v1362 = vld [vmem:[#allocation22 + $0x1c] sm:$0xf]
    %v1363 = vld [vmem:[#allocation22 + $0x20] sm:$0xf]
    %v1364 = vld [vmem:[#allocation22 + $0x24] sm:$0xf]
    %v1365 = vld [vmem:[#allocation22 + $0x28] sm:$0xf]
    %v1366 = vld [vmem:[#allocation22 + $0x2c] sm:$0xf]
    %v1367 = vld [vmem:[#allocation22 + $0x30] sm:$0xf]
    %v1368 = vld [vmem:[#allocation22 + $0x34] sm:$0xf]
    %v1369 = vld [vmem:[#allocation22 + $0x38] sm:$0xf]
    %v1370 = vld [vmem:[#allocation22 + $0x3c] sm:$0xf]
    %v1371 = vld [vmem:[#allocation22 + $0x40] sm:$0xf]
    %v1372 = vld [vmem:[#allocation22 + $0x44] sm:$0xf]
    %v1373 = vld [vmem:[#allocation22 + $0x48] sm:$0xf]
    %v1374 = vld [vmem:[#allocation22 + $0x4c] sm:$0xf]
    %v1375 = vld [vmem:[#allocation22 + $0x50] sm:$0xf]
    %v1376 = vld [vmem:[#allocation22 + $0x54] sm:$0xf]
    %v1377 = vld [vmem:[#allocation22 + $0x58] sm:$0xf]
    %v1378 = vld [vmem:[#allocation22 + $0x5c] sm:$0xf]
    %v1379 = vld [vmem:[#allocation22 + $0x60] sm:$0xf]
    %v1380 = vld [vmem:[#allocation22 + $0x64] sm:$0xf]
    %v1381 = vld [vmem:[#allocation22 + $0x68] sm:$0xf]
    %v1382 = vld [vmem:[#allocation22 + $0x6c] sm:$0xf]
    %v1383 = vld [vmem:[#allocation22 + $0x70] sm:$0xf]
    %v1384 = vld [vmem:[#allocation22 + $0x74] sm:$0xf]
    %v1385 = vld [vmem:[#allocation22 + $0x78] sm:$0xf]
    %v1386 = vld [vmem:[#allocation22 + $0x7c] sm:$0xf]
    %v1387 = vld [vmem:[#allocation24] sm:$0x1]
    %v1389 = vlaneseq
    %v1390 = vshrl.u32 %v1389, 7
    %v1391 = vsub.s32 0, %v1390
    %v1392 = vrot.slane %v1387, %v1391
    %v1426 = vunpack.c.l.b16 %v1355
    %v1427 = vunpack.c.l.b16 %v1356
    %v1428 = vunpack.c.l.b16 %v1357
    %v1429 = vunpack.c.l.b16 %v1358
    %v1430 = vunpack.c.l.b16 %v1359
    %v1431 = vunpack.c.l.b16 %v1360
    %v1432 = vunpack.c.l.b16 %v1361
    %v1433 = vunpack.c.l.b16 %v1362
    %v1434 = vunpack.c.l.b16 %v1363
    %v1435 = vunpack.c.l.b16 %v1364
    %v1436 = vunpack.c.l.b16 %v1365
    %v1437 = vunpack.c.l.b16 %v1366
    %v1438 = vunpack.c.l.b16 %v1367
    %v1439 = vunpack.c.l.b16 %v1368
    %v1440 = vunpack.c.l.b16 %v1369
    %v1441 = vunpack.c.l.b16 %v1370
    %v1442 = vunpack.c.l.b16 %v1371
    %v1443 = vunpack.c.l.b16 %v1372
    %v1444 = vunpack.c.l.b16 %v1373
    %v1445 = vunpack.c.l.b16 %v1374
    %v1446 = vunpack.c.l.b16 %v1375
    %v1447 = vunpack.c.l.b16 %v1376
    %v1448 = vunpack.c.l.b16 %v1377
    %v1449 = vunpack.c.l.b16 %v1378
    %v1450 = vunpack.c.l.b16 %v1379
    %v1451 = vunpack.c.l.b16 %v1380
    %v1452 = vunpack.c.l.b16 %v1381
    %v1453 = vunpack.c.l.b16 %v1382
    %v1454 = vunpack.c.l.b16 %v1383
    %v1455 = vunpack.c.l.b16 %v1384
    %v1456 = vunpack.c.l.b16 %v1385
    %v1457 = vunpack.c.l.b16 %v1386
    %v1458 = vpack.c.b16 %v1427, %v1426
    %v1459 = vpack.c.b16 %v1429, %v1428
    %v1460 = vpack.c.b16 %v1431, %v1430
    %v1461 = vpack.c.b16 %v1433, %v1432
    %v1462 = vpack.c.b16 %v1435, %v1434
    %v1463 = vpack.c.b16 %v1437, %v1436
    %v1464 = vpack.c.b16 %v1439, %v1438
    %v1465 = vpack.c.b16 %v1441, %v1440
    %v1466 = vpack.c.b16 %v1443, %v1442
    %v1467 = vpack.c.b16 %v1445, %v1444
    %v1468 = vpack.c.b16 %v1447, %v1446
    %v1469 = vpack.c.b16 %v1449, %v1448
    %v1470 = vpack.c.b16 %v1451, %v1450
    %v1471 = vpack.c.b16 %v1453, %v1452
    %v1472 = vpack.c.b16 %v1455, %v1454
    %v1473 = vpack.c.b16 %v1457, %v1456
    %1490 = vmatprep.subr.bf16.mxu0 0
    %1491 = vmatpush1.bf16.msra.mxu0 %v1465
    %1492 = vmatprep.subr.bf16.mxu0 0
    %1493 = vmatpush1.bf16.msra.mxu0 %v1464
    %1494 = vmatprep.subr.bf16.mxu0 0
    %1495 = vmatpush1.bf16.msra.mxu0 %v1463
    %1496 = vmatprep.subr.bf16.mxu0 0
    %1497 = vmatpush1.bf16.msra.mxu0 %v1462
    %1498 = vmatprep.subr.bf16.mxu0 0
    %1499 = vmatpush1.bf16.msra.mxu0 %v1461
    %1500 = vmatprep.subr.bf16.mxu0 0
    %1501 = vmatpush1.bf16.msra.mxu0 %v1460
    %1502 = vmatprep.subr.bf16.mxu0 0
    %1503 = vmatpush1.bf16.msra.mxu0 %v1459
    %1504 = vmatprep.subr.bf16.mxu0 0
    %1505 = vmatpush1.bf16.msra.mxu0 %v1458
    %1506 = vmatprep.subr.bf16.mxu0 0
    %1507 = vmatpush2.bf16.msra.mxu0 %v1473
    %1508 = vmatprep.subr.bf16.mxu0 0
    %1509 = vmatpush2.bf16.msra.mxu0 %v1472
    %1510 = vmatprep.subr.bf16.mxu0 0
    %1511 = vmatpush2.bf16.msra.mxu0 %v1471
    %1512 = vmatprep.subr.bf16.mxu0 0
    %1513 = vmatpush2.bf16.msra.mxu0 %v1470
    %1514 = vmatprep.subr.bf16.mxu0 0
    %1515 = vmatpush2.bf16.msra.mxu0 %v1469
    %1516 = vmatprep.subr.bf16.mxu0 0
    %1517 = vmatpush2.bf16.msra.mxu0 %v1468
    %1518 = vmatprep.subr.bf16.mxu0 0
    %1519 = vmatpush2.bf16.msra.mxu0 %v1467
    %1520 = vmatprep.subr.bf16.mxu0 0
    %1521 = vmatpush2.bf16.msra.mxu0 %v1466
    %1522 = vmatprep.mubr.bf16.mxu0 %v1354
    %1523 = vmatmul.mubr.bf16.gmra.mxu0 %v1310
    %v1524 = vpop.f32.mrf.mxu0
    %v1525 = vadd.f32 %v1392, %v1524
    %v1526 = vpop.f32.mrf.mxu0
    %v1527 = vpop.f32.mrf.mxu0
    %v1528 = vadd.f32 %v1392, %v1527
    %v1529 = vpop.f32.mrf.mxu0
    %1530 = vdwg.mxu0
    %1531 = vmatprep.subr.bf16.mxu0 0
    %1532 = vmatpush1.bf16.msra.mxu0 0
    %1533 = vmatprep.subr.bf16.mxu0 0
    %1534 = vmatpush1.bf16.msra.mxu0 0
    %1535 = vmatprep.subr.bf16.mxu0 0
    %1536 = vmatpush1.bf16.msra.mxu0 0
    %1537 = vmatprep.subr.bf16.mxu0 0
    %1538 = vmatpush1.bf16.msra.mxu0 0
    %1539 = vmatprep.subr.bf16.mxu0 0
    %1540 = vmatpush1.bf16.msra.mxu0 0
    %1541 = vmatprep.subr.bf16.mxu0 0
    %1542 = vmatpush1.bf16.msra.mxu0 0
    %1543 = vmatprep.subr.bf16.mxu0 0
    %1544 = vmatpush1.bf16.msra.mxu0 0
    %1545 = vmatprep.subr.bf16.mxu0 0
    %1546 = vmatpush1.bf16.msra.mxu0 %v1310
    %1547 = vmatprep.subr.bf16.mxu0 0
    %1548 = vmatpush2.bf16.msra.mxu0 0
    %1549 = vmatprep.subr.bf16.mxu0 0
    %1550 = vmatpush2.bf16.msra.mxu0 0
    %1551 = vmatprep.subr.bf16.mxu0 0
    %1552 = vmatpush2.bf16.msra.mxu0 0
    %1553 = vmatprep.subr.bf16.mxu0 0
    %1554 = vmatpush2.bf16.msra.mxu0 0
    %1555 = vmatprep.subr.bf16.mxu0 0
    %1556 = vmatpush2.bf16.msra.mxu0 0
    %1557 = vmatprep.subr.bf16.mxu0 0
    %1558 = vmatpush2.bf16.msra.mxu0 0
    %1559 = vmatprep.subr.bf16.mxu0 0
    %1560 = vmatpush2.bf16.msra.mxu0 0
    %1561 = vmatprep.subr.bf16.mxu0 0
    %1562 = vmatpush2.bf16.msra.mxu0 0
    %1563 = vmatprep.mubr.bf16.mxu0 0
    %1564 = vmatmul.mubr.bf16.gmra.mxu0 %v938
    %v1565 = vpop.f32.mrf.mxu0
    %v1566 = vadd.f32 0.0, %v1565
    %v1567 = vpop.f32.mrf.mxu0
    %v1568 = vpop.f32.mrf.mxu0
    %v1569 = vadd.f32 0.0, %v1568
    %v1570 = vpop.f32.mrf.mxu0
    %1571 = vmatprep.mubr.bf16.mxu0 0
    %1572 = vmatmul.mubr.bf16.gmra.mxu0 %v941
    %v1573 = vpop.f32.mrf.mxu0
    %v1574 = vadd.f32 0.0, %v1573
    %v1575 = vpop.f32.mrf.mxu0
    %v1576 = vpop.f32.mrf.mxu0
    %v1577 = vadd.f32 0.0, %v1576
    %v1578 = vpop.f32.mrf.mxu0
    %1579 = vdwg.mxu0
    %v1580 = vpack.c.bf16 %v1569, %v1566
    %v1581 = vpack.c.bf16 %v1577, %v1574
    %v1582 = vld [vmem:[#allocation25] sm:$0xf]
    %v1583 = vld [vmem:[#allocation25 + $0x4] sm:$0xf]
    %v1584 = vld [vmem:[#allocation25 + $0x8] sm:$0xf]
    %v1585 = vld [vmem:[#allocation25 + $0xc] sm:$0xf]
    %v1586 = vld [vmem:[#allocation25 + $0x10] sm:$0xf]
    %v1587 = vld [vmem:[#allocation25 + $0x14] sm:$0xf]
    %v1588 = vld [vmem:[#allocation25 + $0x18] sm:$0xf]
    %v1589 = vld [vmem:[#allocation25 + $0x1c] sm:$0xf]
    %v1590 = vld [vmem:[#allocation25 + $0x20] sm:$0xf]
    %v1591 = vld [vmem:[#allocation25 + $0x24] sm:$0xf]
    %v1592 = vld [vmem:[#allocation25 + $0x28] sm:$0xf]
    %v1593 = vld [vmem:[#allocation25 + $0x2c] sm:$0xf]
    %v1594 = vld [vmem:[#allocation25 + $0x30] sm:$0xf]
    %v1595 = vld [vmem:[#allocation25 + $0x34] sm:$0xf]
    %v1596 = vld [vmem:[#allocation25 + $0x38] sm:$0xf]
    %v1597 = vld [vmem:[#allocation25 + $0x3c] sm:$0xf]
    %v1598 = vld [vmem:[#allocation25 + $0x40] sm:$0xf]
    %v1599 = vld [vmem:[#allocation25 + $0x44] sm:$0xf]
    %v1600 = vld [vmem:[#allocation25 + $0x48] sm:$0xf]
    %v1601 = vld [vmem:[#allocation25 + $0x4c] sm:$0xf]
    %v1602 = vld [vmem:[#allocation25 + $0x50] sm:$0xf]
    %v1603 = vld [vmem:[#allocation25 + $0x54] sm:$0xf]
    %v1604 = vld [vmem:[#allocation25 + $0x58] sm:$0xf]
    %v1605 = vld [vmem:[#allocation25 + $0x5c] sm:$0xf]
    %v1606 = vld [vmem:[#allocation25 + $0x60] sm:$0xf]
    %v1607 = vld [vmem:[#allocation25 + $0x64] sm:$0xf]
    %v1608 = vld [vmem:[#allocation25 + $0x68] sm:$0xf]
    %v1609 = vld [vmem:[#allocation25 + $0x6c] sm:$0xf]
    %v1610 = vld [vmem:[#allocation25 + $0x70] sm:$0xf]
    %v1611 = vld [vmem:[#allocation25 + $0x74] sm:$0xf]
    %v1612 = vld [vmem:[#allocation25 + $0x78] sm:$0xf]
    %v1613 = vld [vmem:[#allocation25 + $0x7c] sm:$0xf]
    %v1614 = vld [vmem:[#allocation27] sm:$0x1]
    %v1616 = vlaneseq
    %v1617 = vshrl.u32 %v1616, 7
    %v1618 = vsub.s32 0, %v1617
    %v1619 = vrot.slane %v1614, %v1618
    %v1653 = vunpack.c.l.b16 %v1582
    %v1654 = vunpack.c.l.b16 %v1583
    %v1655 = vunpack.c.l.b16 %v1584
    %v1656 = vunpack.c.l.b16 %v1585
    %v1657 = vunpack.c.l.b16 %v1586
    %v1658 = vunpack.c.l.b16 %v1587
    %v1659 = vunpack.c.l.b16 %v1588
    %v1660 = vunpack.c.l.b16 %v1589
    %v1661 = vunpack.c.l.b16 %v1590
    %v1662 = vunpack.c.l.b16 %v1591
    %v1663 = vunpack.c.l.b16 %v1592
    %v1664 = vunpack.c.l.b16 %v1593
    %v1665 = vunpack.c.l.b16 %v1594
    %v1666 = vunpack.c.l.b16 %v1595
    %v1667 = vunpack.c.l.b16 %v1596
    %v1668 = vunpack.c.l.b16 %v1597
    %v1669 = vunpack.c.l.b16 %v1598
    %v1670 = vunpack.c.l.b16 %v1599
    %v1671 = vunpack.c.l.b16 %v1600
    %v1672 = vunpack.c.l.b16 %v1601
    %v1673 = vunpack.c.l.b16 %v1602
    %v1674 = vunpack.c.l.b16 %v1603
    %v1675 = vunpack.c.l.b16 %v1604
    %v1676 = vunpack.c.l.b16 %v1605
    %v1677 = vunpack.c.l.b16 %v1606
    %v1678 = vunpack.c.l.b16 %v1607
    %v1679 = vunpack.c.l.b16 %v1608
    %v1680 = vunpack.c.l.b16 %v1609
    %v1681 = vunpack.c.l.b16 %v1610
    %v1682 = vunpack.c.l.b16 %v1611
    %v1683 = vunpack.c.l.b16 %v1612
    %v1684 = vunpack.c.l.b16 %v1613
    %v1685 = vpack.c.b16 %v1654, %v1653
    %v1686 = vpack.c.b16 %v1656, %v1655
    %v1687 = vpack.c.b16 %v1658, %v1657
    %v1688 = vpack.c.b16 %v1660, %v1659
    %v1689 = vpack.c.b16 %v1662, %v1661
    %v1690 = vpack.c.b16 %v1664, %v1663
    %v1691 = vpack.c.b16 %v1666, %v1665
    %v1692 = vpack.c.b16 %v1668, %v1667
    %v1693 = vpack.c.b16 %v1670, %v1669
    %v1694 = vpack.c.b16 %v1672, %v1671
    %v1695 = vpack.c.b16 %v1674, %v1673
    %v1696 = vpack.c.b16 %v1676, %v1675
    %v1697 = vpack.c.b16 %v1678, %v1677
    %v1698 = vpack.c.b16 %v1680, %v1679
    %v1699 = vpack.c.b16 %v1682, %v1681
    %v1700 = vpack.c.b16 %v1684, %v1683
    %1717 = vmatprep.subr.bf16.mxu0 0
    %1718 = vmatpush1.bf16.msra.mxu0 %v1692
    %1719 = vmatprep.subr.bf16.mxu0 0
    %1720 = vmatpush1.bf16.msra.mxu0 %v1691
    %1721 = vmatprep.subr.bf16.mxu0 0
    %1722 = vmatpush1.bf16.msra.mxu0 %v1690
    %1723 = vmatprep.subr.bf16.mxu0 0
    %1724 = vmatpush1.bf16.msra.mxu0 %v1689
    %1725 = vmatprep.subr.bf16.mxu0 0
    %1726 = vmatpush1.bf16.msra.mxu0 %v1688
    %1727 = vmatprep.subr.bf16.mxu0 0
    %1728 = vmatpush1.bf16.msra.mxu0 %v1687
    %1729 = vmatprep.subr.bf16.mxu0 0
    %1730 = vmatpush1.bf16.msra.mxu0 %v1686
    %1731 = vmatprep.subr.bf16.mxu0 0
    %1732 = vmatpush1.bf16.msra.mxu0 %v1685
    %1733 = vmatprep.subr.bf16.mxu0 0
    %1734 = vmatpush2.bf16.msra.mxu0 %v1700
    %1735 = vmatprep.subr.bf16.mxu0 0
    %1736 = vmatpush2.bf16.msra.mxu0 %v1699
    %1737 = vmatprep.subr.bf16.mxu0 0
    %1738 = vmatpush2.bf16.msra.mxu0 %v1698
    %1739 = vmatprep.subr.bf16.mxu0 0
    %1740 = vmatpush2.bf16.msra.mxu0 %v1697
    %1741 = vmatprep.subr.bf16.mxu0 0
    %1742 = vmatpush2.bf16.msra.mxu0 %v1696
    %1743 = vmatprep.subr.bf16.mxu0 0
    %1744 = vmatpush2.bf16.msra.mxu0 %v1695
    %1745 = vmatprep.subr.bf16.mxu0 0
    %1746 = vmatpush2.bf16.msra.mxu0 %v1694
    %1747 = vmatprep.subr.bf16.mxu0 0
    %1748 = vmatpush2.bf16.msra.mxu0 %v1693
    %1749 = vmatprep.mubr.bf16.mxu0 %v1580
    %1750 = vmatmul.mubr.bf16.gmra.mxu0 %v1311
    %v1751 = vpop.f32.mrf.mxu0
    %v1752 = vadd.f32 %v1619, %v1751
    %v1753 = vpop.f32.mrf.mxu0
    %v1754 = vpop.f32.mrf.mxu0
    %v1755 = vadd.f32 %v1619, %v1754
    %v1756 = vpop.f32.mrf.mxu0
    %1757 = vmatprep.mubr.bf16.mxu0 %v1581
    %1758 = vmatmul.mubr.bf16.gmra.mxu0 %v1312
    %v1759 = vpop.f32.mrf.mxu0
    %v1760 = vadd.f32 %v1619, %v1759
    %v1761 = vpop.f32.mrf.mxu0
    %v1762 = vpop.f32.mrf.mxu0
    %v1763 = vadd.f32 %v1619, %v1762
    %v1764 = vpop.f32.mrf.mxu0
    %1765 = vdwg.mxu0
    %v1766 = vmax.f32 %v1525, 0.0
    %v1767 = vmax.f32 %v1528, 0.0
    %v1768 = vadd.f32 %v1766, %v1304
    %v1769 = vadd.f32 %v1767, %v1305
    %1770 = vadd.xlane.f32.xlu0 %v1768
    %v1771 = vpop.xlane.xlu0 %1770
    %1772 = vadd.xlane.f32.xlu0 %v1769
    %v1773 = vpop.xlane.xlu0 %1772
    %v1774 = vmul.f32 %v1771, 0.03125
    %v1775 = vmul.f32 %v1773, 0.03125
    %v1776 = vmul.f32 %v1774, %v417
    %v1777 = vmul.f32 %v1775, %v417
    %v1778 = vsub.f32 %v1768, %v1776
    %v1779 = vsub.f32 %v1769, %v1777
    %v1780 = vmul.f32 %v1778, %v1778
    %v1781 = vmul.f32 %v1779, %v1779
    %1782 = vadd.xlane.f32.xlu0 %v1780
    %v1783 = vpop.xlane.xlu0 %1782
    %1784 = vadd.xlane.f32.xlu0 %v1781
    %v1785 = vpop.xlane.xlu0 %1784
    %v1786 = vmul.f32 %v1783, 0.03125
    %v1787 = vmul.f32 %v1785, 0.03125
    %v1788 = vadd.f32 %v1786, 1e-05
    %v1789 = vadd.f32 %v1787, 1e-05
    %v1790 = vrsqrt.pop %v1788
    %v1791 = vrsqrt.pop %v1789
    %v1792 = vmul.f32 %v1778, %v1790
    %v1793 = vmul.f32 %v1779, %v1791
    %v1794 = vmul.f32 %v1792, %v1210
    %v1795 = vmul.f32 %v1793, %v1210
    %v1796 = vadd.f32 %v1794, %v1218
    %v1797 = vadd.f32 %v1795, %v1218
    %1798 = vst [vmem:[#allocation2] sm:$0xff] %v1796
    %1799 = vst [vmem:[#allocation2 + $0x8] sm:$0xff] %v1797
    %v1800 = vmax.f32 %v1752, 0.0
    %v1801 = vmax.f32 %v1755, 0.0
    %v1802 = vmax.f32 %v1760, 0.0
    %v1803 = vmax.f32 %v1763, 0.0
    %v1804 = vadd.f32 %v1800, %v1306
    %v1805 = vadd.f32 %v1801, %v1307
    %v1806 = vadd.f32 %v1802, %v1308
    %v1807 = vadd.f32 %v1803, %v1309
    %1808 = vadd.xlane.f32.xlu0 %v1804
    %v1809 = vpop.xlane.xlu0 %1808
    %1810 = vadd.xlane.f32.xlu0 %v1805
    %v1811 = vpop.xlane.xlu0 %1810
    %1812 = vadd.xlane.f32.xlu0 %v1806
    %v1813 = vpop.xlane.xlu0 %1812
    %1814 = vadd.xlane.f32.xlu0 %v1807
    %v1815 = vpop.xlane.xlu0 %1814
    %v1816 = vmul.f32 %v1809, 0.03125
    %v1817 = vmul.f32 %v1811, 0.03125
    %v1818 = vmul.f32 %v1813, 0.03125
    %v1819 = vmul.f32 %v1815, 0.03125
    %v1820 = vmul.f32 %v1816, %v417
    %v1821 = vmul.f32 %v1817, %v417
    %v1822 = vmul.f32 %v1818, %v417
    %v1823 = vmul.f32 %v1819, %v417
    %v1824 = vsub.f32 %v1804, %v1820
    %v1825 = vsub.f32 %v1805, %v1821
    %v1826 = vsub.f32 %v1806, %v1822
    %v1827 = vsub.f32 %v1807, %v1823
    %v1828 = vmul.f32 %v1824, %v1824
    %v1829 = vmul.f32 %v1825, %v1825
    %v1830 = vmul.f32 %v1826, %v1826
    %v1831 = vmul.f32 %v1827, %v1827
    %1832 = vadd.xlane.f32.xlu0 %v1828
    %v1833 = vpop.xlane.xlu0 %1832
    %1834 = vadd.xlane.f32.xlu0 %v1829
    %v1835 = vpop.xlane.xlu0 %1834
    %1836 = vadd.xlane.f32.xlu0 %v1830
    %v1837 = vpop.xlane.xlu0 %1836
    %1838 = vadd.xlane.f32.xlu0 %v1831
    %v1839 = vpop.xlane.xlu0 %1838
    %v1840 = vmul.f32 %v1833, 0.03125
    %v1841 = vmul.f32 %v1835, 0.03125
    %v1842 = vmul.f32 %v1837, 0.03125
    %v1843 = vmul.f32 %v1839, 0.03125
    %v1844 = vadd.f32 %v1840, 1e-05
    %v1845 = vadd.f32 %v1841, 1e-05
    %v1846 = vadd.f32 %v1842, 1e-05
    %v1847 = vadd.f32 %v1843, 1e-05
    %v1848 = vrsqrt.pop %v1844
    %v1849 = vrsqrt.pop %v1845
    %v1850 = vrsqrt.pop %v1846
    %v1851 = vrsqrt.pop %v1847
    %v1852 = vmul.f32 %v1824, %v1848
    %v1853 = vmul.f32 %v1825, %v1849
    %v1854 = vmul.f32 %v1826, %v1850
    %v1855 = vmul.f32 %v1827, %v1851
    %v1856 = vmul.f32 %v1852, %v1284
    %v1857 = vmul.f32 %v1853, %v1284
    %v1858 = vmul.f32 %v1854, %v1284
    %v1859 = vmul.f32 %v1855, %v1284
    %v1860 = vadd.f32 %v1856, %v1294
    %v1861 = vadd.f32 %v1857, %v1294
    %v1862 = vadd.f32 %v1858, %v1294
    %v1863 = vadd.f32 %v1859, %v1294
    %1864 = vst [vmem:[#allocation3] sm:$0xff] %v1860
    %1865 = vst [vmem:[#allocation3 + $0x8] sm:$0xff] %v1861
    %1866 = vst [vmem:[#allocation3 + $0x10] sm:$0xff] %v1862
    %1867 = vst [vmem:[#allocation3 + $0x18] sm:$0xff] %v1863
    %v1868 = vld [vmem:[#allocation2] sm:$0xff]
    %v1869 = vld [vmem:[#allocation2 + $0x8] sm:$0xff]
    %v1870 = vpack.c.bf16 %v1869, %v1868
    %v1871 = vld [vmem:[#allocation34] sm:$0xf]
    %v1872 = vld [vmem:[#allocation34 + $0x4] sm:$0xf]
    %v1873 = vld [vmem:[#allocation34 + $0x8] sm:$0xf]
    %v1874 = vld [vmem:[#allocation34 + $0xc] sm:$0xf]
    %v1875 = vld [vmem:[#allocation34 + $0x10] sm:$0xf]
    %v1876 = vld [vmem:[#allocation34 + $0x14] sm:$0xf]
    %v1877 = vld [vmem:[#allocation34 + $0x18] sm:$0xf]
    %v1878 = vld [vmem:[#allocation34 + $0x1c] sm:$0xf]
    %v1879 = vld [vmem:[#allocation34 + $0x20] sm:$0xf]
    %v1880 = vld [vmem:[#allocation34 + $0x24] sm:$0xf]
    %v1881 = vld [vmem:[#allocation34 + $0x28] sm:$0xf]
    %v1882 = vld [vmem:[#allocation34 + $0x2c] sm:$0xf]
    %v1883 = vld [vmem:[#allocation34 + $0x30] sm:$0xf]
    %v1884 = vld [vmem:[#allocation34 + $0x34] sm:$0xf]
    %v1885 = vld [vmem:[#allocation34 + $0x38] sm:$0xf]
    %v1886 = vld [vmem:[#allocation34 + $0x3c] sm:$0xf]
    %v1887 = vld [vmem:[#allocation36] sm:$0x1]
    %v1889 = vlaneseq
    %v1890 = vshrl.u32 %v1889, 7
    %v1891 = vsub.s32 0, %v1890
    %v1892 = vrot.slane %v1887, %v1891
    %v1910 = vunpack.c.l.b16 %v1871
    %v1911 = vunpack.c.l.b16 %v1872
    %v1912 = vunpack.c.l.b16 %v1873
    %v1913 = vunpack.c.l.b16 %v1874
    %v1914 = vunpack.c.l.b16 %v1875
    %v1915 = vunpack.c.l.b16 %v1876
    %v1916 = vunpack.c.l.b16 %v1877
    %v1917 = vunpack.c.l.b16 %v1878
    %v1918 = vunpack.c.l.b16 %v1879
    %v1919 = vunpack.c.l.b16 %v1880
    %v1920 = vunpack.c.l.b16 %v1881
    %v1921 = vunpack.c.l.b16 %v1882
    %v1922 = vunpack.c.l.b16 %v1883
    %v1923 = vunpack.c.l.b16 %v1884
    %v1924 = vunpack.c.l.b16 %v1885
    %v1925 = vunpack.c.l.b16 %v1886
    %v1926 = vpack.c.b16 %v1911, %v1910
    %v1927 = vpack.c.b16 %v1913, %v1912
    %v1928 = vpack.c.b16 %v1915, %v1914
    %v1929 = vpack.c.b16 %v1917, %v1916
    %v1930 = vpack.c.b16 %v1919, %v1918
    %v1931 = vpack.c.b16 %v1921, %v1920
    %v1932 = vpack.c.b16 %v1923, %v1922
    %v1933 = vpack.c.b16 %v1925, %v1924
    %1942 = vmatprep.subr.bf16.mxu0 0
    %1943 = vmatpush1.bf16.msra.mxu0 %v1933
    %1944 = vmatprep.subr.bf16.mxu0 0
    %1945 = vmatpush1.bf16.msra.mxu0 %v1932
    %1946 = vmatprep.subr.bf16.mxu0 0
    %1947 = vmatpush1.bf16.msra.mxu0 %v1931
    %1948 = vmatprep.subr.bf16.mxu0 0
    %1949 = vmatpush1.bf16.msra.mxu0 %v1930
    %1950 = vmatprep.subr.bf16.mxu0 0
    %1951 = vmatpush1.bf16.msra.mxu0 %v1929
    %1952 = vmatprep.subr.bf16.mxu0 0
    %1953 = vmatpush1.bf16.msra.mxu0 %v1928
    %1954 = vmatprep.subr.bf16.mxu0 0
    %1955 = vmatpush1.bf16.msra.mxu0 %v1927
    %1956 = vmatprep.subr.bf16.mxu0 0
    %1957 = vmatpush1.bf16.msra.mxu0 %v1926
    %1958 = vmatprep.subr.bf16.mxu0 0
    %1959 = vmatpush2.bf16.msra.mxu0 0
    %1960 = vmatprep.subr.bf16.mxu0 0
    %1961 = vmatpush2.bf16.msra.mxu0 0
    %1962 = vmatprep.subr.bf16.mxu0 0
    %1963 = vmatpush2.bf16.msra.mxu0 0
    %1964 = vmatprep.subr.bf16.mxu0 0
    %1965 = vmatpush2.bf16.msra.mxu0 0
    %1966 = vmatprep.subr.bf16.mxu0 0
    %1967 = vmatpush2.bf16.msra.mxu0 0
    %1968 = vmatprep.subr.bf16.mxu0 0
    %1969 = vmatpush2.bf16.msra.mxu0 0
    %1970 = vmatprep.subr.bf16.mxu0 0
    %1971 = vmatpush2.bf16.msra.mxu0 0
    %1972 = vmatprep.subr.bf16.mxu0 0
    %1973 = vmatpush2.bf16.msra.mxu0 0
    %1974 = vmatprep.mubr.bf16.mxu0 0
    %1975 = vmatmul.mubr.bf16.gmra.mxu0 %v1870
    %v1976 = vpop.f32.mrf.mxu0
    %v1977 = vadd.f32 %v1892, %v1976
    %v1978 = vpop.f32.mrf.mxu0
    %v1979 = vpop.f32.mrf.mxu0
    %v1980 = vadd.f32 %v1892, %v1979
    %v1981 = vpop.f32.mrf.mxu0
    %1982 = vdwg.mxu0
    %v1983 = vmax.f32 %v1977, 0.0
    %v1984 = vmax.f32 %v1980, 0.0
    %v1985 = vpack.c.bf16 %v1984, %v1983
    %v1986 = vld [vmem:[%s45] sm:$0xf]
    %v1987 = vld [vmem:[%s45 + $0x4] sm:$0xf]
    %v1988 = vld [vmem:[%s45 + $0x8] sm:$0xf]
    %v1989 = vld [vmem:[%s45 + $0xc] sm:$0xf]
    %v1990 = vld [vmem:[%s45 + $0x10] sm:$0xf]
    %v1991 = vld [vmem:[%s45 + $0x14] sm:$0xf]
    %v1992 = vld [vmem:[%s45 + $0x18] sm:$0xf]
    %v1993 = vld [vmem:[%s45 + $0x1c] sm:$0xf]
    %v1994 = vld [vmem:[%s45 + $0x20] sm:$0xf]
    %v1995 = vld [vmem:[%s45 + $0x24] sm:$0xf]
    %v1996 = vld [vmem:[%s45 + $0x28] sm:$0xf]
    %v1997 = vld [vmem:[%s45 + $0x2c] sm:$0xf]
    %v1998 = vld [vmem:[%s45 + $0x30] sm:$0xf]
    %v1999 = vld [vmem:[%s45 + $0x34] sm:$0xf]
    %v2000 = vld [vmem:[%s45 + $0x38] sm:$0xf]
    %v2001 = vld [vmem:[%s45 + $0x3c] sm:$0xf]
    %v2002 = vld [vmem:[%s47] sm:$0x1]
    %v2004 = vlaneseq
    %v2005 = vshrl.u32 %v2004, 7
    %v2006 = vsub.s32 0, %v2005
    %v2007 = vrot.slane %v2002, %v2006
    %v2025 = vunpack.c.l.b16 %v1986
    %v2026 = vunpack.c.l.b16 %v1987
    %v2027 = vunpack.c.l.b16 %v1988
    %v2028 = vunpack.c.l.b16 %v1989
    %v2029 = vunpack.c.l.b16 %v1990
    %v2030 = vunpack.c.l.b16 %v1991
    %v2031 = vunpack.c.l.b16 %v1992
    %v2032 = vunpack.c.l.b16 %v1993
    %v2033 = vunpack.c.l.b16 %v1994
    %v2034 = vunpack.c.l.b16 %v1995
    %v2035 = vunpack.c.l.b16 %v1996
    %v2036 = vunpack.c.l.b16 %v1997
    %v2037 = vunpack.c.l.b16 %v1998
    %v2038 = vunpack.c.l.b16 %v1999
    %v2039 = vunpack.c.l.b16 %v2000
    %v2040 = vunpack.c.l.b16 %v2001
    %v2041 = vpack.c.b16 %v2026, %v2025
    %v2042 = vpack.c.b16 %v2028, %v2027
    %v2043 = vpack.c.b16 %v2030, %v2029
    %v2044 = vpack.c.b16 %v2032, %v2031
    %v2045 = vpack.c.b16 %v2034, %v2033
    %v2046 = vpack.c.b16 %v2036, %v2035
    %v2047 = vpack.c.b16 %v2038, %v2037
    %v2048 = vpack.c.b16 %v2040, %v2039
    %2057 = vmatprep.subr.bf16.mxu0 0
    %2058 = vmatpush1.bf16.msra.mxu0 %v2048
    %2059 = vmatprep.subr.bf16.mxu0 0
    %2060 = vmatpush1.bf16.msra.mxu0 %v2047
    %2061 = vmatprep.subr.bf16.mxu0 0
    %2062 = vmatpush1.bf16.msra.mxu0 %v2046
    %2063 = vmatprep.subr.bf16.mxu0 0
    %2064 = vmatpush1.bf16.msra.mxu0 %v2045
    %2065 = vmatprep.subr.bf16.mxu0 0
    %2066 = vmatpush1.bf16.msra.mxu0 %v2044
    %2067 = vmatprep.subr.bf16.mxu0 0
    %2068 = vmatpush1.bf16.msra.mxu0 %v2043
    %2069 = vmatprep.subr.bf16.mxu0 0
    %2070 = vmatpush1.bf16.msra.mxu0 %v2042
    %2071 = vmatprep.subr.bf16.mxu0 0
    %2072 = vmatpush1.bf16.msra.mxu0 %v2041
    %2073 = vmatprep.subr.bf16.mxu0 0
    %2074 = vmatpush2.bf16.msra.mxu0 0
    %2075 = vmatprep.subr.bf16.mxu0 0
    %2076 = vmatpush2.bf16.msra.mxu0 0
    %2077 = vmatprep.subr.bf16.mxu0 0
    %2078 = vmatpush2.bf16.msra.mxu0 0
    %2079 = vmatprep.subr.bf16.mxu0 0
    %2080 = vmatpush2.bf16.msra.mxu0 0
    %2081 = vmatprep.subr.bf16.mxu0 0
    %2082 = vmatpush2.bf16.msra.mxu0 0
    %2083 = vmatprep.subr.bf16.mxu0 0
    %2084 = vmatpush2.bf16.msra.mxu0 0
    %2085 = vmatprep.subr.bf16.mxu0 0
    %2086 = vmatpush2.bf16.msra.mxu0 0
    %2087 = vmatprep.subr.bf16.mxu0 0
    %2088 = vmatpush2.bf16.msra.mxu0 0
    %2089 = vmatprep.mubr.bf16.mxu0 0
    %2090 = vmatmul.mubr.bf16.gmra.mxu0 %v1985
    %v2091 = vpop.f32.mrf.mxu0
    %v2092 = vadd.f32 %v2007, %v2091
    %v2093 = vpop.f32.mrf.mxu0
    %v2094 = vpop.f32.mrf.mxu0
    %v2095 = vadd.f32 %v2007, %v2094
    %v2096 = vpop.f32.mrf.mxu0
    %2097 = vdwg.mxu0
    %vm2098 = vcmp.lt.s32.totalorder %v414, 8
    %v2099 = vsel %vm2098, %v2092, -1e+30
    %v2100 = vsel %vm2098, %v2095, -1e+30
    %2101 = vmax.xlane.f32.xlu0 %v2099
    %v2102 = vpop.xlane.xlu0 %2101
    %2103 = vmax.xlane.f32.xlu0 %v2100
    %v2104 = vpop.xlane.xlu0 %2103
    %v2105 = vsub.f32 %v2099, %v2102
    %v2106 = vsub.f32 %v2100, %v2104
    %v2107 = vmul.f32 %v2105, 1.442695
    %v2108 = vpow.pop %v2107
    %v2109 = vmul.f32 %v2106, 1.442695
    %v2110 = vpow.pop %v2109
    %2111 = vadd.xlane.f32.xlu0 %v2108
    %v2112 = vpop.xlane.xlu0 %2111
    %2113 = vadd.xlane.f32.xlu0 %v2110
    %v2114 = vpop.xlane.xlu0 %2113
    %v2115 = vlog2.pop %v2112
    %v2116 = vmul.f32 %v2115, 0.6931472
    %v2117 = vlog2.pop %v2114
    %v2118 = vmul.f32 %v2117, 0.6931472
    %v2119 = vsub.f32 %v2092, %v2102
    %v2120 = vsub.f32 %v2095, %v2104
    %v2121 = vsub.f32 %v2119, %v2116
    %v2122 = vsub.f32 %v2120, %v2118
    %v2123 = vsel %vm2098, %v2121, 0.0
    %v2124 = vsel %vm2098, %v2122, 0.0
    %2125 = vst [vmem:[#allocation40] sm:$0xff] %v2123
    %2126 = vst [vmem:[#allocation40 + $0x8] sm:$0xff] %v2124
    %v2127 = vld [vmem:[#allocation3] sm:$0xff]
    %v2128 = vld [vmem:[#allocation3 + $0x8] sm:$0xff]
    %v2129 = vld [vmem:[#allocation3 + $0x10] sm:$0xff]
    %v2130 = vld [vmem:[#allocation3 + $0x18] sm:$0xff]
    %v2131 = vpack.c.bf16 %v2128, %v2127
    %v2132 = vpack.c.bf16 %v2130, %v2129
    %v2133 = vld [vmem:[#allocation37] sm:$0xf]
    %v2134 = vld [vmem:[#allocation37 + $0x4] sm:$0xf]
    %v2135 = vld [vmem:[#allocation37 + $0x8] sm:$0xf]
    %v2136 = vld [vmem:[#allocation37 + $0xc] sm:$0xf]
    %v2137 = vld [vmem:[#allocation37 + $0x10] sm:$0xf]
    %v2138 = vld [vmem:[#allocation37 + $0x14] sm:$0xf]
    %v2139 = vld [vmem:[#allocation37 + $0x18] sm:$0xf]
    %v2140 = vld [vmem:[#allocation37 + $0x1c] sm:$0xf]
    %v2141 = vld [vmem:[#allocation37 + $0x20] sm:$0xf]
    %v2142 = vld [vmem:[#allocation37 + $0x24] sm:$0xf]
    %v2143 = vld [vmem:[#allocation37 + $0x28] sm:$0xf]
    %v2144 = vld [vmem:[#allocation37 + $0x2c] sm:$0xf]
    %v2145 = vld [vmem:[#allocation37 + $0x30] sm:$0xf]
    %v2146 = vld [vmem:[#allocation37 + $0x34] sm:$0xf]
    %v2147 = vld [vmem:[#allocation37 + $0x38] sm:$0xf]
    %v2148 = vld [vmem:[#allocation37 + $0x3c] sm:$0xf]
    %v2149 = vld [vmem:[%s51] sm:$0x1]
    %v2151 = vlaneseq
    %v2152 = vshrl.u32 %v2151, 7
    %v2153 = vsub.s32 0, %v2152
    %v2154 = vrot.slane %v2149, %v2153
    %v2172 = vunpack.c.l.b16 %v2133
    %v2173 = vunpack.c.l.b16 %v2134
    %v2174 = vunpack.c.l.b16 %v2135
    %v2175 = vunpack.c.l.b16 %v2136
    %v2176 = vunpack.c.l.b16 %v2137
    %v2177 = vunpack.c.l.b16 %v2138
    %v2178 = vunpack.c.l.b16 %v2139
    %v2179 = vunpack.c.l.b16 %v2140
    %v2180 = vunpack.c.l.b16 %v2141
    %v2181 = vunpack.c.l.b16 %v2142
    %v2182 = vunpack.c.l.b16 %v2143
    %v2183 = vunpack.c.l.b16 %v2144
    %v2184 = vunpack.c.l.b16 %v2145
    %v2185 = vunpack.c.l.b16 %v2146
    %v2186 = vunpack.c.l.b16 %v2147
    %v2187 = vunpack.c.l.b16 %v2148
    %v2188 = vpack.c.b16 %v2173, %v2172
    %v2189 = vpack.c.b16 %v2175, %v2174
    %v2190 = vpack.c.b16 %v2177, %v2176
    %v2191 = vpack.c.b16 %v2179, %v2178
    %v2192 = vpack.c.b16 %v2181, %v2180
    %v2193 = vpack.c.b16 %v2183, %v2182
    %v2194 = vpack.c.b16 %v2185, %v2184
    %v2195 = vpack.c.b16 %v2187, %v2186
    %2204 = vmatprep.subr.bf16.mxu0 0
    %2205 = vmatpush1.bf16.msra.mxu0 %v2195
    %2206 = vmatprep.subr.bf16.mxu0 0
    %2207 = vmatpush1.bf16.msra.mxu0 %v2194
    %2208 = vmatprep.subr.bf16.mxu0 0
    %2209 = vmatpush1.bf16.msra.mxu0 %v2193
    %2210 = vmatprep.subr.bf16.mxu0 0
    %2211 = vmatpush1.bf16.msra.mxu0 %v2192
    %2212 = vmatprep.subr.bf16.mxu0 0
    %2213 = vmatpush1.bf16.msra.mxu0 %v2191
    %2214 = vmatprep.subr.bf16.mxu0 0
    %2215 = vmatpush1.bf16.msra.mxu0 %v2190
    %2216 = vmatprep.subr.bf16.mxu0 0
    %2217 = vmatpush1.bf16.msra.mxu0 %v2189
    %2218 = vmatprep.subr.bf16.mxu0 0
    %2219 = vmatpush1.bf16.msra.mxu0 %v2188
    %2220 = vmatprep.subr.bf16.mxu0 0
    %2221 = vmatpush2.bf16.msra.mxu0 0
    %2222 = vmatprep.subr.bf16.mxu0 0
    %2223 = vmatpush2.bf16.msra.mxu0 0
    %2224 = vmatprep.subr.bf16.mxu0 0
    %2225 = vmatpush2.bf16.msra.mxu0 0
    %2226 = vmatprep.subr.bf16.mxu0 0
    %2227 = vmatpush2.bf16.msra.mxu0 0
    %2228 = vmatprep.subr.bf16.mxu0 0
    %2229 = vmatpush2.bf16.msra.mxu0 0
    %2230 = vmatprep.subr.bf16.mxu0 0
    %2231 = vmatpush2.bf16.msra.mxu0 0
    %2232 = vmatprep.subr.bf16.mxu0 0
    %2233 = vmatpush2.bf16.msra.mxu0 0
    %2234 = vmatprep.subr.bf16.mxu0 0
    %2235 = vmatpush2.bf16.msra.mxu0 0
    %2236 = vmatprep.mubr.bf16.mxu0 0
    %2237 = vmatmul.mubr.bf16.gmra.mxu0 %v2131
    %v2238 = vpop.f32.mrf.mxu0
    %v2239 = vadd.f32 %v2154, %v2238
    %v2240 = vpop.f32.mrf.mxu0
    %v2241 = vpop.f32.mrf.mxu0
    %v2242 = vadd.f32 %v2154, %v2241
    %v2243 = vpop.f32.mrf.mxu0
    %2244 = vmatprep.mubr.bf16.mxu0 0
    %2245 = vmatmul.mubr.bf16.gmra.mxu0 %v2132
    %v2246 = vpop.f32.mrf.mxu0
    %v2247 = vadd.f32 %v2154, %v2246
    %v2248 = vpop.f32.mrf.mxu0
    %v2249 = vpop.f32.mrf.mxu0
    %v2250 = vadd.f32 %v2154, %v2249
    %v2251 = vpop.f32.mrf.mxu0
    %2252 = vdwg.mxu0
    %v2253 = vmax.f32 %v2239, 0.0
    %v2254 = vmax.f32 %v2242, 0.0
    %v2255 = vmax.f32 %v2247, 0.0
    %v2256 = vmax.f32 %v2250, 0.0
    %v2257 = vpack.c.bf16 %v2254, %v2253
    %v2258 = vpack.c.bf16 %v2256, %v2255
    %v2259 = vld [vmem:[#allocation39] sm:$0xf]
    %v2260 = vld [vmem:[#allocation39 + $0x4] sm:$0xf]
    %v2261 = vld [vmem:[#allocation39 + $0x8] sm:$0xf]
    %v2262 = vld [vmem:[#allocation39 + $0xc] sm:$0xf]
    %v2263 = vld [vmem:[#allocation39 + $0x10] sm:$0xf]
    %v2264 = vld [vmem:[#allocation39 + $0x14] sm:$0xf]
    %v2265 = vld [vmem:[#allocation39 + $0x18] sm:$0xf]
    %v2266 = vld [vmem:[#allocation39 + $0x1c] sm:$0xf]
    %v2267 = vld [vmem:[#allocation39 + $0x20] sm:$0xf]
    %v2268 = vld [vmem:[#allocation39 + $0x24] sm:$0xf]
    %v2269 = vld [vmem:[#allocation39 + $0x28] sm:$0xf]
    %v2270 = vld [vmem:[#allocation39 + $0x2c] sm:$0xf]
    %v2271 = vld [vmem:[#allocation39 + $0x30] sm:$0xf]
    %v2272 = vld [vmem:[#allocation39 + $0x34] sm:$0xf]
    %v2273 = vld [vmem:[#allocation39 + $0x38] sm:$0xf]
    %v2274 = vld [vmem:[#allocation39 + $0x3c] sm:$0xf]
    %v2275 = vld [vmem:[%s55] sm:$0x1]
    %v2277 = vlaneseq
    %v2278 = vshrl.u32 %v2277, 7
    %v2279 = vsub.s32 0, %v2278
    %v2280 = vrot.slane %v2275, %v2279
    %v2298 = vunpack.c.l.b16 %v2259
    %v2299 = vunpack.c.l.b16 %v2260
    %v2300 = vunpack.c.l.b16 %v2261
    %v2301 = vunpack.c.l.b16 %v2262
    %v2302 = vunpack.c.l.b16 %v2263
    %v2303 = vunpack.c.l.b16 %v2264
    %v2304 = vunpack.c.l.b16 %v2265
    %v2305 = vunpack.c.l.b16 %v2266
    %v2306 = vunpack.c.l.b16 %v2267
    %v2307 = vunpack.c.l.b16 %v2268
    %v2308 = vunpack.c.l.b16 %v2269
    %v2309 = vunpack.c.l.b16 %v2270
    %v2310 = vunpack.c.l.b16 %v2271
    %v2311 = vunpack.c.l.b16 %v2272
    %v2312 = vunpack.c.l.b16 %v2273
    %v2313 = vunpack.c.l.b16 %v2274
    %v2314 = vpack.c.b16 %v2299, %v2298
    %v2315 = vpack.c.b16 %v2301, %v2300
    %v2316 = vpack.c.b16 %v2303, %v2302
    %v2317 = vpack.c.b16 %v2305, %v2304
    %v2318 = vpack.c.b16 %v2307, %v2306
    %v2319 = vpack.c.b16 %v2309, %v2308
    %v2320 = vpack.c.b16 %v2311, %v2310
    %v2321 = vpack.c.b16 %v2313, %v2312
    %2330 = vmatprep.subr.bf16.mxu0 0
    %2331 = vmatpush1.bf16.msra.mxu0 %v2321
    %2332 = vmatprep.subr.bf16.mxu0 0
    %2333 = vmatpush1.bf16.msra.mxu0 %v2320
    %2334 = vmatprep.subr.bf16.mxu0 0
    %2335 = vmatpush1.bf16.msra.mxu0 %v2319
    %2336 = vmatprep.subr.bf16.mxu0 0
    %2337 = vmatpush1.bf16.msra.mxu0 %v2318
    %2338 = vmatprep.subr.bf16.mxu0 0
    %2339 = vmatpush1.bf16.msra.mxu0 %v2317
    %2340 = vmatprep.subr.bf16.mxu0 0
    %2341 = vmatpush1.bf16.msra.mxu0 %v2316
    %2342 = vmatprep.subr.bf16.mxu0 0
    %2343 = vmatpush1.bf16.msra.mxu0 %v2315
    %2344 = vmatprep.subr.bf16.mxu0 0
    %2345 = vmatpush1.bf16.msra.mxu0 %v2314
    %2346 = vmatprep.subr.bf16.mxu0 0
    %2347 = vmatpush2.bf16.msra.mxu0 0
    %2348 = vmatprep.subr.bf16.mxu0 0
    %2349 = vmatpush2.bf16.msra.mxu0 0
    %2350 = vmatprep.subr.bf16.mxu0 0
    %2351 = vmatpush2.bf16.msra.mxu0 0
    %2352 = vmatprep.subr.bf16.mxu0 0
    %2353 = vmatpush2.bf16.msra.mxu0 0
    %2354 = vmatprep.subr.bf16.mxu0 0
    %2355 = vmatpush2.bf16.msra.mxu0 0
    %2356 = vmatprep.subr.bf16.mxu0 0
    %2357 = vmatpush2.bf16.msra.mxu0 0
    %2358 = vmatprep.subr.bf16.mxu0 0
    %2359 = vmatpush2.bf16.msra.mxu0 0
    %2360 = vmatprep.subr.bf16.mxu0 0
    %2361 = vmatpush2.bf16.msra.mxu0 0
    %2362 = vmatprep.mubr.bf16.mxu0 0
    %2363 = vmatmul.mubr.bf16.gmra.mxu0 %v2257
    %v2364 = vpop.f32.mrf.mxu0
    %v2365 = vadd.f32 %v2280, %v2364
    %v2366 = vpop.f32.mrf.mxu0
    %v2367 = vpop.f32.mrf.mxu0
    %v2368 = vadd.f32 %v2280, %v2367
    %v2369 = vpop.f32.mrf.mxu0
    %2370 = vmatprep.mubr.bf16.mxu0 0
    %2371 = vmatmul.mubr.bf16.gmra.mxu0 %v2258
    %v2372 = vpop.f32.mrf.mxu0
    %v2373 = vadd.f32 %v2280, %v2372
    %v2374 = vpop.f32.mrf.mxu0
    %v2375 = vpop.f32.mrf.mxu0
    %v2376 = vadd.f32 %v2280, %v2375
    %v2377 = vpop.f32.mrf.mxu0
    %2378 = vdwg.mxu0
    %2379 = vst [vmem:[#allocation41] sm:$0xff] %v2365
    %2380 = vst [vmem:[#allocation41 + $0x8] sm:$0xff] %v2368
    %2381 = vst [vmem:[#allocation41 + $0x10] sm:$0xff] %v2373
    %2382 = vst [vmem:[#allocation41 + $0x18] sm:$0xff] %v2376
    // Predicated region
    $region206: #{tpu_custom_call.1} parent=1 // pred_check
      _
    $region207: #{tpu_custom_call.1} parent=1 // pred_check_branch
      %2384 = sbr.rel (0) target = $region209
    $region208: #{tpu_custom_call.1} parent=1 // pred_region
      %s2386 = ssub.s32 256, 256
      %2387 = vsyncadd [#allocation6], %s2386
      %s2388 = sshll.u32 [#allocation40], 4
      %s2389 = int_to_ptr.vmem [resolvable:$true] %s2388
      %2394 = dma.vmem_to_hbm [thread:$0]  %s2389, 256, %s57, [#allocation6], 128, 128, 8
    $region209: #{tpu_custom_call.1} parent=1 // pred_fallthru
      _
    // Predicated region
    $region210: #{tpu_custom_call.1} parent=1 // pred_check
      _
    $region211: #{tpu_custom_call.1} parent=1 // pred_check_branch
      %2396 = sbr.rel (0) target = $region213
    $region212: #{tpu_custom_call.1} parent=1 // pred_region
      %s2398 = ssub.s32 512, 512
      %2399 = vsyncadd [#allocation42], %s2398
      %s2400 = sshll.u32 [#allocation41], 4
      %s2401 = int_to_ptr.vmem [resolvable:$true] %s2400
      %2406 = dma.vmem_to_hbm [thread:$0]  %s2401, 512, %s59, [#allocation42], 128, 128, 8
    $region213: #{tpu_custom_call.1} parent=1 // pred_fallthru
      _
    // Predicated region
    $region214: #{tpu_custom_call.1} parent=1 // pred_check
      _
    $region215: #{tpu_custom_call.1} parent=1 // pred_check_branch
      %2408 = sbr.rel (0) target = $region217
    $region216: #{tpu_custom_call.1} parent=1 // pred_region
      %2409 = dma.done [#allocation6], 256
    $region217: #{tpu_custom_call.1} parent=1 // pred_fallthru
      _
    // Predicated region
    $region218: #{tpu_custom_call.1} parent=1 // pred_check
      _
    $region219: #{tpu_custom_call.1} parent=1 // pred_check_branch
      %2411 = sbr.rel (0) target = $region221
    $region220: #{tpu_custom_call.1} parent=1 // pred_region
      %2412 = dma.done [#allocation42], 512
    $region221: #{tpu_custom_call.1} parent=1 // pred_fallthru
      _
    %2413 = vsyncpa [#allocation5], 1
    %2414 = vsyncpa [#allocation8], 1
    %2415 = vsyncpa [#allocation11], 1
    %2416 = vsyncpa [#allocation14], 1
    %2417 = vsyncpa [#allocation17], 1
    %2418 = vsyncpa [#allocation20], 1
    %2419 = vsyncpa [#allocation23], 1
    %2420 = vsyncpa [#allocation26], 1
    %2421 = vsyncpa [#allocation29], 1
    %2422 = vsyncpa [#allocation32], 1
    %2423 = vsyncpa [#allocation35], 1
    %2424 = vsyncpa [#allocation38], 1
    %2425 = vsyncpa [#allocation6], 1
    %2426 = vsyncpa [#allocation42], 1

</llo_original>
